<compile_context>
chip_gen: v6e
topology: v6e:2x2x1
jax: 0.10.0
libtpu: 0.0.40
codegen_flags: <defaults>
</compile_context>

<pallas_src>
import functools

import jax
import jax.numpy as jnp
import numpy as np
from jax.experimental import pallas as pl
from jax.experimental.pallas import tpu as pltpu


def _round_up(v, m):
    return ((v + m - 1) // m) * m


def _ffn_kernel(x_ref, w1_ref, b1_ref, fs_ref, rd_ref, id_ref, rb_ref, ib_ref,
                w2_ref, b2_ref, o_ref, *, n_pad, multi_d):
    """One (batch, D-slice) step.  fs_ref = stacked [cos; sin], shape (2*Np, Np)."""
    cdt = fs_ref.dtype  # MXU compute dtype (bf16 or f32)

    # ---- fc1 (BN scale folded into w1, pre-transposed) + bias + ReLU -------
    h = jnp.dot(x_ref[0], w1_ref[...], preferred_element_type=jnp.float32)
    h = jnp.maximum(h + b1_ref[...], 0.0)                       # (Np, bd) f32

    # ---- forward FFT (ortho): ONE fused matmul with stacked [cos; sin].
    # real = cos@h, imag = -(sin@h); the minus sign is folded into the
    # diag-multiply below (saves a full VPU negate pass).
    cs = jnp.dot(fs_ref[...], h.astype(cdt), preferred_element_type=jnp.float32)
    c = cs[:n_pad]                                              # cos @ h
    s = cs[n_pad:]                                              # sin @ h

    # ---- complex einsum('bnc,cc->bnc') == elementwise * diag(r), diag(i) ---
    rd = rd_ref[...]
    idg = id_ref[...]
    y_real = jnp.maximum(c * rd + s * idg + rb_ref[...], 0.0)
    y_imag = jnp.maximum(c * idg - s * rd + ib_ref[...], 0.0)

    # ---- IFFT (ortho), real part only: cos @ y_real - sin @ y_imag ---------
    z = (jnp.dot(fs_ref[pl.ds(0, n_pad), :], y_real.astype(cdt),
                 preferred_element_type=jnp.float32)
         - jnp.dot(fs_ref[pl.ds(n_pad, n_pad), :], y_imag.astype(cdt),
                   preferred_element_type=jnp.float32))

    # ---- fc2 (BN scale folded into w2): accumulate this D-slice straight
    # into the resident f32 output block (no scratch, no epilogue copy).
    contrib = jnp.dot(z.astype(cdt), w2_ref[...],
                      preferred_element_type=jnp.float32)

    if multi_d:
        d = pl.program_id(1)

        @pl.when(d == 0)
        def _():
            o_ref[0] = (contrib + b2_ref[...]).astype(o_ref.dtype)

        @pl.when(d > 0)
        def _():
            o_ref[0] += contrib.astype(o_ref.dtype)
    else:
        o_ref[0] = (contrib + b2_ref[...]).astype(o_ref.dtype)


def _device_prefs():
    """Generation-aware (D-tile preference, VMEM cap) with safe fallbacks."""
    kind = ""
    try:
        kind = jax.devices()[0].device_kind.lower()
    except Exception:
        pass
    old_gen = any(t in kind for t in ("v2", "v3", "v4", "v5"))
    bd_pref = 128 if old_gen else 256            # v6e/v7x MXU is 2x256^2
    try:
        cap = int(pltpu.get_tpu_info().vmem_capacity_bytes)
    except Exception:
        cap = 128 * 2 ** 20
    # Leave headroom: ~100 MiB on 128-MiB parts (v5e/v6e), ~54 MiB on v7x.
    vmem_cap = int(min(100 * 2 ** 20, 0.85 * cap))
    return bd_pref, vmem_cap


def frequencydomain_ffn(x, raw, *, block_d=None,
                        compute_dtype=jnp.bfloat16, eps=1e-5):
    """x: (B, N, C) float32; raw: PyTorch-shaped parameter dict."""
    B, N, C = x.shape
    D = raw["w1"].shape[0]
    bd_pref, vmem_cap = _device_prefs()

    # ---- fold eval-mode BN into the conv weights, pre-transpose for the MXU
    s1 = raw["bn1_gamma"] / jnp.sqrt(raw["bn1_var"] + eps)
    sh1 = raw["bn1_beta"] - raw["bn1_mean"] * s1
    s2 = raw["bn2_gamma"] / jnp.sqrt(raw["bn2_var"] + eps)
    sh2 = raw["bn2_beta"] - raw["bn2_mean"] * s2
    w1t = (raw["w1"] * s1[:, None]).T            # (C, D)
    w2t = (raw["w2"] * s2[:, None]).T            # (D, C)
    rd = jnp.diagonal(raw["r"])
    idg = jnp.diagonal(raw["i"])

    # ---- orthonormal DFT cos/sin matrices (already / sqrt(N)) --------------
    n = np.arange(N)
    theta = 2.0 * np.pi * np.outer(n, n) / N
    cosM = (np.cos(theta) / np.sqrt(N)).astype(np.float32)
    sinM = (np.sin(theta) / np.sqrt(N)).astype(np.float32)

    # ---- pad everything to multiples of 128 (full MXU tiles, unmasked vst,
    # bf16 sublane packing).  Exactness relies on ZERO padding of cos/sin.
    Np = _round_up(N, 128)
    Cp = _round_up(C, 128)
    Dp = _round_up(D, 128)

    # D tile: full Dp when small (nd == 1: no accumulation pass, weights
    # resident per batch), else generation preference (256 on v6e/v7x, 128 v5e).
    if block_d is not None and block_d % 128 == 0 and Dp % block_d == 0:
        bd = block_d
    elif Dp <= 512:
        bd = Dp
    elif Dp % bd_pref == 0:
        bd = bd_pref
    else:
        bd = 128
    nd = Dp // bd
    multi_d = nd > 1

    def pad2(a, r, c):
        return jnp.pad(a, ((0, r - a.shape[0]), (0, c - a.shape[1])))

    def pad1(a, m):
        return jnp.pad(a, (0, m - a.shape[0])).reshape(1, m).astype(jnp.float32)

    x_p = jnp.pad(x, ((0, 0), (0, Np - N), (0, Cp - C))).astype(compute_dtype)
    w1_p = pad2(w1t, Cp, Dp).astype(compute_dtype)
    w2_p = pad2(w2t, Dp, Cp).astype(compute_dtype)
    # Stacked [cos; sin] — zero-padded (NOT identity): the zero rows/cols are
    # what cancels the relu(b1) leakage of the padded x rows.
    fs_np = np.zeros((2 * Np, Np), np.float32)
    fs_np[:N, :N] = cosM
    fs_np[Np:Np + N, :N] = sinM
    fs_p = jnp.asarray(fs_np, compute_dtype)
    b1_p = pad1(sh1, Dp)
    rd_p = pad1(rd, Dp)
    id_p = pad1(idg, Dp)
    rb_p = pad1(raw["rb"], Dp)
    ib_p = pad1(raw["ib"], Dp)
    b2_p = pad1(sh2, Cp)

    operands = (x_p, w1_p, b1_p, fs_p, rd_p, id_p, rb_p, ib_p, w2_p, b2_p)

    itm = jnp.dtype(compute_dtype).itemsize
    flops = int(B * (4 * Np * Cp * Dp + 8 * Np * Np * Dp))
    bytes_accessed = int(sum(int(np.prod(a.shape)) * a.dtype.itemsize
                             for a in operands) + B * Np * Cp * 4)

    kernel = functools.partial(_ffn_kernel, n_pad=Np, multi_d=multi_d)

    def _invoke(single_buffer):
        def bs(shape, imap, invariant):
            if single_buffer and invariant:
                return pl.BlockSpec(shape, imap, pipeline_mode=pl.Buffered(1))
            return pl.BlockSpec(shape, imap)

        w_inv = not multi_d  # w1/w2 & per-D vectors are grid-invariant iff nd==1
        in_specs = [
            bs((1, Np, Cp), lambda b, d: (b, 0, 0), False),  # x (per batch)
            bs((Cp, bd),    lambda b, d: (0, d), w_inv),     # w1 (BN folded)
            bs((1, bd),     lambda b, d: (0, d), w_inv),     # bn1 shift
            bs((2 * Np, Np), lambda b, d: (0, 0), True),     # [cos; sin]/sqrt(N)
            bs((1, bd),     lambda b, d: (0, d), w_inv),     # diag(r)
            bs((1, bd),     lambda b, d: (0, d), w_inv),     # diag(i)
            bs((1, bd),     lambda b, d: (0, d), w_inv),     # rb
            bs((1, bd),     lambda b, d: (0, d), w_inv),     # ib
            bs((bd, Cp),    lambda b, d: (d, 0), w_inv),     # w2 (BN folded)
            bs((1, Cp),     lambda b, d: (0, 0), True),      # bn2 shift
        ]

        n_fs = 1 if single_buffer else 2
        n_w = 1 if (single_buffer and w_inv) else 2
        vmem_bytes = (2 * Np * Cp * itm                     # x block (2 bufs)
                      + n_fs * 2 * Np * Np * itm            # [cos; sin]
                      + n_w * 2 * bd * Cp * itm             # w1 + w2 tiles
                      + n_w * 5 * bd * 4 + n_fs * Cp * 4    # per-channel vectors
                      + 2 * Np * Cp * 4                     # output block (f32)
                      + (7 * Np * bd + 2 * Np * Cp) * 4)    # f32 intermediates
        vmem_limit = int(min(vmem_cap, max(32 * 2 ** 20, 2 * vmem_bytes)))

        grid_spec = pltpu.PrefetchScalarGridSpec(
            num_scalar_prefetch=0,
            grid=(B, nd),
            in_specs=in_specs,
            out_specs=pl.BlockSpec((1, Np, Cp), lambda b, d: (b, 0, 0)),
        )
        return pl.pallas_call(
            kernel,
            out_shape=jax.ShapeDtypeStruct((B, Np, Cp), jnp.float32),
            grid_spec=grid_spec,
            compiler_params=pltpu.CompilerParams(
                dimension_semantics=("parallel", "arbitrary"),
                vmem_limit_bytes=vmem_limit),
            cost_estimate=pl.CostEstimate(flops=flops, transcendentals=0,
                                          bytes_accessed=bytes_accessed),
        )(*operands)

    try:
        out = jax.block_until_ready(_invoke(True))
    except Exception:
        # TODO(synk): drop this fallback once pipeline_mode=pl.Buffered(1)
        # (single-buffered grid-invariant operands) is supported everywhere.
        out = jax.block_until_ready(_invoke(False))

    return out[:, :N, :C]


def make_raw_params(key, dim, mlp_ratio):
    """Deterministic synthetic parameters matching the PyTorch module shapes."""
    D = dim * mlp_ratio
    ks = jax.random.split(key, 12)
    scale = 0.02
    return {
        "r": scale * jax.random.normal(ks[0], (D, D), jnp.float32),
        "i": scale * jax.random.normal(ks[1], (D, D), jnp.float32),
        "rb": scale * jax.random.normal(ks[2], (D,), jnp.float32),
        "ib": scale * jax.random.normal(ks[3], (D,), jnp.float32),
        # fc1: Conv1d(dim -> D, k=1, bias=False) + BatchNorm1d(D)
        "w1": jax.random.normal(ks[4], (D, dim), jnp.float32) / np.sqrt(dim),
        "bn1_gamma": 1.0 + 0.1 * jax.random.normal(ks[5], (D,), jnp.float32),
        "bn1_beta": 0.05 * jax.random.normal(ks[6], (D,), jnp.float32),
        "bn1_mean": 0.1 * jax.random.normal(ks[7], (D,), jnp.float32),
        "bn1_var": 1.0 + 0.1 * jnp.abs(jax.random.normal(ks[8], (D,), jnp.float32)),
        # fc2: Conv1d(D -> dim, k=1, bias=False) + BatchNorm1d(dim)
        "w2": jax.random.normal(ks[9], (dim, D), jnp.float32) / np.sqrt(D),
        "bn2_gamma": 1.0 + 0.1 * jax.random.normal(ks[10], (dim,), jnp.float32),
        "bn2_beta": 0.05 * jax.random.normal(ks[11], (dim,), jnp.float32),
        "bn2_mean": jnp.zeros((dim,), jnp.float32),
        "bn2_var": jnp.ones((dim,), jnp.float32),
    }


def reference_forward(x, raw, eps=1e-5):
    """Pure-JAX (f32) reference mirroring the PyTorch forward (eval-mode BN)."""
    s1 = raw["bn1_gamma"] / jnp.sqrt(raw["bn1_var"] + eps)
    sh1 = raw["bn1_beta"] - raw["bn1_mean"] * s1
    s2 = raw["bn2_gamma"] / jnp.sqrt(raw["bn2_var"] + eps)
    sh2 = raw["bn2_beta"] - raw["bn2_mean"] * s2
    h = jnp.einsum("bnc,dc->bnd", x, raw["w1"])
    h = jnp.maximum(h * s1 + sh1, 0.0)
    xf = jnp.fft.fft(h, axis=1, norm="ortho")
    rd = jnp.diagonal(raw["r"])
    idg = jnp.diagonal(raw["i"])
    xr = jnp.maximum(xf.real * rd - xf.imag * idg + raw["rb"], 0.0)
    xi = jnp.maximum(xf.imag * rd + xf.real * idg + raw["ib"], 0.0)
    z = jnp.fft.ifft(xr + 1j * xi, axis=1, norm="ortho").real.astype(jnp.float32)
    out = jnp.einsum("bnd,cd->bnc", z, raw["w2"])
    return out * s2 + sh2


if __name__ == "__main__":
    key = jax.random.PRNGKey(0)

    # ---- Test A: float32 MXU path, nd == 1, tight tolerance vs. jnp.fft ----
    B, N, dim, mlp_ratio = 2, 8, 4, 2
    kx, kp, key = jax.random.split(key, 3)
    x = jax.random.normal(kx, (B, N, dim), jnp.float32)
    raw = make_raw_params(kp, dim, mlp_ratio)
    out = jax.block_until_ready(
        frequencydomain_ffn(x, raw, compute_dtype=jnp.float32))
    ref = jax.block_until_ready(reference_forward(x, raw))
    np.testing.assert_allclose(np.asarray(out), np.asarray(ref),
                               rtol=1e-4, atol=1e-4)

    # ---- Test B: bf16, forced block_d=128 -> nd=2 (output-resident D reduce)
    B, N, dim, mlp_ratio = 2, 32, 64, 4
    kx, kp = jax.random.split(key)
    x = jax.random.normal(kx, (B, N, dim), jnp.float32)
    raw = make_raw_params(kp, dim, mlp_ratio)
    ref = jax.block_until_ready(reference_forward(x, raw))
    out = jax.block_until_ready(
        frequencydomain_ffn(x, raw, block_d=128, compute_dtype=jnp.bfloat16))
    np.testing.assert_allclose(np.asarray(out), np.asarray(ref),
                               rtol=3e-2, atol=3e-2)

    # ---- Test C: bf16, default tiling -> full-D single tile (nd == 1) ------
    out = jax.block_until_ready(
        frequencydomain_ffn(x, raw, compute_dtype=jnp.bfloat16))
    np.testing.assert_allclose(np.asarray(out), np.asarray(ref),
                               rtol=3e-2, atol=3e-2)

    print("KERNEL_OK")
</pallas_src>

<mosaic_0001>
module attributes {stable_mosaic.version = 11 : i64} {
  func.func @_ffn_kernel(%arg0: i32, %arg1: i32, %arg2: memref<1x128x128xf32, #tpu.memory_space<vmem>>, %arg3: memref<128x128xf32, #tpu.memory_space<vmem>>, %arg4: memref<1x128xf32, #tpu.memory_space<vmem>>, %arg5: memref<256x128xf32, #tpu.memory_space<vmem>>, %arg6: memref<1x128xf32, #tpu.memory_space<vmem>>, %arg7: memref<1x128xf32, #tpu.memory_space<vmem>>, %arg8: memref<1x128xf32, #tpu.memory_space<vmem>>, %arg9: memref<1x128xf32, #tpu.memory_space<vmem>>, %arg10: memref<128x128xf32, #tpu.memory_space<vmem>>, %arg11: memref<1x128xf32, #tpu.memory_space<vmem>>, %arg12: memref<1x128x128xf32, #tpu.memory_space<vmem>>) attributes {dimension_semantics = [#tpu.dimension_semantics<parallel>, #tpu.dimension_semantics<arbitrary>], iteration_bounds = array<i64: 2, 1>, scalar_prefetch = 0 : i64, scratch_operands = 0 : i64, tpu.core_type = #tpu.core_type<tc>, window_params = [{transform_indices = @transform_0, window_bounds = array<i64: 1, 128, 128>}, {pipeline_mode = #tpu.pipeline_mode<synchronous>, transform_indices = @transform_1, window_bounds = array<i64: 128, 128>}, {pipeline_mode = #tpu.pipeline_mode<synchronous>, transform_indices = @transform_2, window_bounds = array<i64: 1, 128>}, {pipeline_mode = #tpu.pipeline_mode<synchronous>, transform_indices = @transform_3, window_bounds = array<i64: 256, 128>}, {pipeline_mode = #tpu.pipeline_mode<synchronous>, transform_indices = @transform_4, window_bounds = array<i64: 1, 128>}, {pipeline_mode = #tpu.pipeline_mode<synchronous>, transform_indices = @transform_5, window_bounds = array<i64: 1, 128>}, {pipeline_mode = #tpu.pipeline_mode<synchronous>, transform_indices = @transform_6, window_bounds = array<i64: 1, 128>}, {pipeline_mode = #tpu.pipeline_mode<synchronous>, transform_indices = @transform_7, window_bounds = array<i64: 1, 128>}, {pipeline_mode = #tpu.pipeline_mode<synchronous>, transform_indices = @transform_8, window_bounds = array<i64: 128, 128>}, {pipeline_mode = #tpu.pipeline_mode<synchronous>, transform_indices = @transform_9, window_bounds = array<i64: 1, 128>}, {transform_indices = @transform_10, window_bounds = array<i64: 1, 128, 128>}]} {
    %c0 = arith.constant 0 : index
    %c0_0 = arith.constant 0 : index
    %c0_1 = arith.constant 0 : index
    %0 = vector.load %arg2[%c0, %c0_0, %c0_1] : memref<1x128x128xf32, #tpu.memory_space<vmem>>, vector<1x128x128xf32>
    %1 = vector.shape_cast %0 : vector<1x128x128xf32> to vector<128x128xf32>
    %c0_2 = arith.constant 0 : index
    %c0_3 = arith.constant 0 : index
    %2 = vector.load %arg3[%c0_2, %c0_3] : memref<128x128xf32, #tpu.memory_space<vmem>>, vector<128x128xf32>
    %cst = arith.constant dense<0.000000e+00> : vector<128x128xf32>
    %3 = tpu.matmul %1, %2, %cst {dimension_numbers = #tpu.dot_dimension_numbers<[1], [0], [0], [1], [0, 0, 1, 1], [], []>} : vector<128x128xf32>, vector<128x128xf32>, vector<128x128xf32> -> vector<128x128xf32>
    %c0_4 = arith.constant 0 : index
    %c0_5 = arith.constant 0 : index
    %4 = vector.load %arg4[%c0_4, %c0_5] : memref<1x128xf32, #tpu.memory_space<vmem>>, vector<1x128xf32>
    %5 = vector.broadcast %4 : vector<1x128xf32> to vector<128x128xf32>
    %6 = arith.addf %3, %5 : vector<128x128xf32>
    %cst_6 = arith.constant 0.000000e+00 : f32
    %7 = vector.broadcast %cst_6 : f32 to vector<128x128xf32>
    %8 = arith.maximumf %6, %7 : vector<128x128xf32>
    %c0_7 = arith.constant 0 : index
    %c0_8 = arith.constant 0 : index
    %9 = vector.load %arg5[%c0_7, %c0_8] : memref<256x128xf32, #tpu.memory_space<vmem>>, vector<256x128xf32>
    %cst_9 = arith.constant dense<0.000000e+00> : vector<256x128xf32>
    %10 = tpu.matmul %9, %8, %cst_9 {dimension_numbers = #tpu.dot_dimension_numbers<[1], [0], [0], [1], [0, 0, 1, 1], [], []>} : vector<256x128xf32>, vector<128x128xf32>, vector<256x128xf32> -> vector<256x128xf32>
    %11 = vector.extract_strided_slice %10 {offsets = [0, 0], sizes = [128, 128], strides = [1, 1]} : vector<256x128xf32> to vector<128x128xf32>
    %12 = vector.extract_strided_slice %10 {offsets = [128, 0], sizes = [128, 128], strides = [1, 1]} : vector<256x128xf32> to vector<128x128xf32>
    %c0_10 = arith.constant 0 : index
    %c0_11 = arith.constant 0 : index
    %13 = vector.load %arg6[%c0_10, %c0_11] : memref<1x128xf32, #tpu.memory_space<vmem>>, vector<1x128xf32>
    %c0_12 = arith.constant 0 : index
    %c0_13 = arith.constant 0 : index
    %14 = vector.load %arg7[%c0_12, %c0_13] : memref<1x128xf32, #tpu.memory_space<vmem>>, vector<1x128xf32>
    %15 = vector.broadcast %13 : vector<1x128xf32> to vector<128x128xf32>
    %16 = arith.mulf %11, %15 : vector<128x128xf32>
    %17 = vector.broadcast %14 : vector<1x128xf32> to vector<128x128xf32>
    %18 = arith.mulf %12, %17 : vector<128x128xf32>
    %19 = arith.addf %16, %18 : vector<128x128xf32>
    %c0_14 = arith.constant 0 : index
    %c0_15 = arith.constant 0 : index
    %20 = vector.load %arg8[%c0_14, %c0_15] : memref<1x128xf32, #tpu.memory_space<vmem>>, vector<1x128xf32>
    %21 = vector.broadcast %20 : vector<1x128xf32> to vector<128x128xf32>
    %22 = arith.addf %19, %21 : vector<128x128xf32>
    %cst_16 = arith.constant 0.000000e+00 : f32
    %23 = vector.broadcast %cst_16 : f32 to vector<128x128xf32>
    %24 = arith.maximumf %22, %23 : vector<128x128xf32>
    %25 = vector.broadcast %14 : vector<1x128xf32> to vector<128x128xf32>
    %26 = arith.mulf %11, %25 : vector<128x128xf32>
    %27 = vector.broadcast %13 : vector<1x128xf32> to vector<128x128xf32>
    %28 = arith.mulf %12, %27 : vector<128x128xf32>
    %29 = arith.subf %26, %28 : vector<128x128xf32>
    %c0_17 = arith.constant 0 : index
    %c0_18 = arith.constant 0 : index
    %30 = vector.load %arg9[%c0_17, %c0_18] : memref<1x128xf32, #tpu.memory_space<vmem>>, vector<1x128xf32>
    %31 = vector.broadcast %30 : vector<1x128xf32> to vector<128x128xf32>
    %32 = arith.addf %29, %31 : vector<128x128xf32>
    %cst_19 = arith.constant 0.000000e+00 : f32
    %33 = vector.broadcast %cst_19 : f32 to vector<128x128xf32>
    %34 = arith.maximumf %32, %33 : vector<128x128xf32>
    %c0_20 = arith.constant 0 : index
    %c0_21 = arith.constant 0 : index
    %35 = vector.load %arg5[%c0_20, %c0_21] : memref<256x128xf32, #tpu.memory_space<vmem>>, vector<128x128xf32>
    %cst_22 = arith.constant dense<0.000000e+00> : vector<128x128xf32>
    %36 = tpu.matmul %35, %24, %cst_22 {dimension_numbers = #tpu.dot_dimension_numbers<[1], [0], [0], [1], [0, 0, 1, 1], [], []>} : vector<128x128xf32>, vector<128x128xf32>, vector<128x128xf32> -> vector<128x128xf32>
    %c128 = arith.constant 128 : index
    %c0_23 = arith.constant 0 : index
    %37 = vector.load %arg5[%c128, %c0_23] : memref<256x128xf32, #tpu.memory_space<vmem>>, vector<128x128xf32>
    %cst_24 = arith.constant dense<0.000000e+00> : vector<128x128xf32>
    %38 = tpu.matmul %37, %34, %cst_24 {dimension_numbers = #tpu.dot_dimension_numbers<[1], [0], [0], [1], [0, 0, 1, 1], [], []>} : vector<128x128xf32>, vector<128x128xf32>, vector<128x128xf32> -> vector<128x128xf32>
    %39 = arith.subf %36, %38 : vector<128x128xf32>
    %c0_25 = arith.constant 0 : index
    %c0_26 = arith.constant 0 : index
    %40 = vector.load %arg10[%c0_25, %c0_26] : memref<128x128xf32, #tpu.memory_space<vmem>>, vector<128x128xf32>
    %cst_27 = arith.constant dense<0.000000e+00> : vector<128x128xf32>
    %41 = tpu.matmul %39, %40, %cst_27 {dimension_numbers = #tpu.dot_dimension_numbers<[1], [0], [0], [1], [0, 0, 1, 1], [], []>} : vector<128x128xf32>, vector<128x128xf32>, vector<128x128xf32> -> vector<128x128xf32>
    %c0_28 = arith.constant 0 : index
    %c0_29 = arith.constant 0 : index
    %42 = vector.load %arg11[%c0_28, %c0_29] : memref<1x128xf32, #tpu.memory_space<vmem>>, vector<1x128xf32>
    %43 = vector.broadcast %42 : vector<1x128xf32> to vector<128x128xf32>
    %44 = arith.addf %41, %43 : vector<128x128xf32>
    %c0_30 = arith.constant 0 : index
    %c0_31 = arith.constant 0 : index
    %c0_32 = arith.constant 0 : index
    %45 = vector.load %arg12[%c0_30, %c0_31, %c0_32] : memref<1x128x128xf32, #tpu.memory_space<vmem>>, vector<1x128x128xf32>
    %46 = vector.shape_cast %45 : vector<1x128x128xf32> to vector<128x128xf32>
    %47 = vector.shape_cast %44 : vector<128x128xf32> to vector<1x128x128xf32>
    tpu.vector_store %arg12[%c0_30, %c0_31, %c0_32], %47 {strides = array<i32>} : memref<1x128x128xf32, #tpu.memory_space<vmem>>, vector<1x128x128xf32>,
    return
  }
  func.func @transform_0(%arg0: i32, %arg1: i32) -> (i32, i32, i32) {
    %c0_i32 = arith.constant 0 : i32
    %c0_i32_0 = arith.constant 0 : i32
    %c0_i32_1 = arith.constant 0 : i32
    return %arg0, %c0_i32, %c0_i32_0 : i32, i32, i32
  }
  func.func @transform_1(%arg0: i32, %arg1: i32) -> (i32, i32) {
    %c0_i32 = arith.constant 0 : i32
    %c0_i32_0 = arith.constant 0 : i32
    return %c0_i32, %arg1 : i32, i32
  }
  func.func @transform_2(%arg0: i32, %arg1: i32) -> (i32, i32) {
    %c0_i32 = arith.constant 0 : i32
    %c0_i32_0 = arith.constant 0 : i32
    return %c0_i32, %arg1 : i32, i32
  }
  func.func @transform_3(%arg0: i32, %arg1: i32) -> (i32, i32) {
    %c0_i32 = arith.constant 0 : i32
    %c0_i32_0 = arith.constant 0 : i32
    %c0_i32_1 = arith.constant 0 : i32
    return %c0_i32, %c0_i32_0 : i32, i32
  }
  func.func @transform_4(%arg0: i32, %arg1: i32) -> (i32, i32) {
    %c0_i32 = arith.constant 0 : i32
    %c0_i32_0 = arith.constant 0 : i32
    return %c0_i32, %arg1 : i32, i32
  }
  func.func @transform_5(%arg0: i32, %arg1: i32) -> (i32, i32) {
    %c0_i32 = arith.constant 0 : i32
    %c0_i32_0 = arith.constant 0 : i32
    return %c0_i32, %arg1 : i32, i32
  }
  func.func @transform_6(%arg0: i32, %arg1: i32) -> (i32, i32) {
    %c0_i32 = arith.constant 0 : i32
    %c0_i32_0 = arith.constant 0 : i32
    return %c0_i32, %arg1 : i32, i32
  }
  func.func @transform_7(%arg0: i32, %arg1: i32) -> (i32, i32) {
    %c0_i32 = arith.constant 0 : i32
    %c0_i32_0 = arith.constant 0 : i32
    return %c0_i32, %arg1 : i32, i32
  }
  func.func @transform_8(%arg0: i32, %arg1: i32) -> (i32, i32) {
    %c0_i32 = arith.constant 0 : i32
    %c0_i32_0 = arith.constant 0 : i32
    return %arg1, %c0_i32 : i32, i32
  }
  func.func @transform_9(%arg0: i32, %arg1: i32) -> (i32, i32) {
    %c0_i32 = arith.constant 0 : i32
    %c0_i32_0 = arith.constant 0 : i32
    %c0_i32_1 = arith.constant 0 : i32
    return %c0_i32, %c0_i32_0 : i32, i32
  }
  func.func @transform_10(%arg0: i32, %arg1: i32) -> (i32, i32, i32) {
    %c0_i32 = arith.constant 0 : i32
    %c0_i32_0 = arith.constant 0 : i32
    %c0_i32_1 = arith.constant 0 : i32
    return %arg0, %c0_i32, %c0_i32_0 : i32, i32, i32
  }
}

module attributes {stable_mosaic.version = 11 : i64} {
  func.func @_ffn_kernel(%arg0: i32, %arg1: i32, %arg2: memref<1x128x128xf32, #tpu.memory_space<vmem>>, %arg3: memref<128x128xf32, #tpu.memory_space<vmem>>, %arg4: memref<1x128xf32, #tpu.memory_space<vmem>>, %arg5: memref<256x128xf32, #tpu.memory_space<vmem>>, %arg6: memref<1x128xf32, #tpu.memory_space<vmem>>, %arg7: memref<1x128xf32, #tpu.memory_space<vmem>>, %arg8: memref<1x128xf32, #tpu.memory_space<vmem>>, %arg9: memref<1x128xf32, #tpu.memory_space<vmem>>, %arg10: memref<128x128xf32, #tpu.memory_space<vmem>>, %arg11: memref<1x128xf32, #tpu.memory_space<vmem>>, %arg12: memref<1x128x128xf32, #tpu.memory_space<vmem>>) attributes {dimension_semantics = [#tpu.dimension_semantics<parallel>, #tpu.dimension_semantics<arbitrary>], iteration_bounds = array<i64: 2, 1>, scalar_prefetch = 0 : i64, scratch_operands = 0 : i64, tpu.core_type = #tpu.core_type<tc>, window_params = [{transform_indices = @transform_0, window_bounds = array<i64: 1, 128, 128>}, {transform_indices = @transform_1, window_bounds = array<i64: 128, 128>}, {transform_indices = @transform_2, window_bounds = array<i64: 1, 128>}, {pipeline_mode = #tpu.pipeline_mode<synchronous>, transform_indices = @transform_3, window_bounds = array<i64: 256, 128>}, {transform_indices = @transform_4, window_bounds = array<i64: 1, 128>}, {transform_indices = @transform_5, window_bounds = array<i64: 1, 128>}, {transform_indices = @transform_6, window_bounds = array<i64: 1, 128>}, {transform_indices = @transform_7, window_bounds = array<i64: 1, 128>}, {transform_indices = @transform_8, window_bounds = array<i64: 128, 128>}, {pipeline_mode = #tpu.pipeline_mode<synchronous>, transform_indices = @transform_9, window_bounds = array<i64: 1, 128>}, {transform_indices = @transform_10, window_bounds = array<i64: 1, 128, 128>}]} {
    %c0 = arith.constant 0 : index
    %c0_0 = arith.constant 0 : index
    %c0_1 = arith.constant 0 : index
    %0 = vector.load %arg2[%c0, %c0_0, %c0_1] : memref<1x128x128xf32, #tpu.memory_space<vmem>>, vector<1x128x128xf32>
    %1 = vector.shape_cast %0 : vector<1x128x128xf32> to vector<128x128xf32>
    %c0_2 = arith.constant 0 : index
    %c0_3 = arith.constant 0 : index
    %2 = vector.load %arg3[%c0_2, %c0_3] : memref<128x128xf32, #tpu.memory_space<vmem>>, vector<128x128xf32>
    %cst = arith.constant dense<0.000000e+00> : vector<128x128xf32>
    %3 = tpu.matmul %1, %2, %cst {dimension_numbers = #tpu.dot_dimension_numbers<[1], [0], [0], [1], [0, 0, 1, 1], [], []>} : vector<128x128xf32>, vector<128x128xf32>, vector<128x128xf32> -> vector<128x128xf32>
    %c0_4 = arith.constant 0 : index
    %c0_5 = arith.constant 0 : index
    %4 = vector.load %arg4[%c0_4, %c0_5] : memref<1x128xf32, #tpu.memory_space<vmem>>, vector<1x128xf32>
    %5 = vector.broadcast %4 : vector<1x128xf32> to vector<128x128xf32>
    %6 = arith.addf %3, %5 : vector<128x128xf32>
    %cst_6 = arith.constant 0.000000e+00 : f32
    %7 = vector.broadcast %cst_6 : f32 to vector<128x128xf32>
    %8 = arith.maximumf %6, %7 : vector<128x128xf32>
    %c0_7 = arith.constant 0 : index
    %c0_8 = arith.constant 0 : index
    %9 = vector.load %arg5[%c0_7, %c0_8] : memref<256x128xf32, #tpu.memory_space<vmem>>, vector<256x128xf32>
    %cst_9 = arith.constant dense<0.000000e+00> : vector<256x128xf32>
    %10 = tpu.matmul %9, %8, %cst_9 {dimension_numbers = #tpu.dot_dimension_numbers<[1], [0], [0], [1], [0, 0, 1, 1], [], []>} : vector<256x128xf32>, vector<128x128xf32>, vector<256x128xf32> -> vector<256x128xf32>
    %11 = vector.extract_strided_slice %10 {offsets = [0, 0], sizes = [128, 128], strides = [1, 1]} : vector<256x128xf32> to vector<128x128xf32>
    %12 = vector.extract_strided_slice %10 {offsets = [128, 0], sizes = [128, 128], strides = [1, 1]} : vector<256x128xf32> to vector<128x128xf32>
    %c0_10 = arith.constant 0 : index
    %c0_11 = arith.constant 0 : index
    %13 = vector.load %arg6[%c0_10, %c0_11] : memref<1x128xf32, #tpu.memory_space<vmem>>, vector<1x128xf32>
    %c0_12 = arith.constant 0 : index
    %c0_13 = arith.constant 0 : index
    %14 = vector.load %arg7[%c0_12, %c0_13] : memref<1x128xf32, #tpu.memory_space<vmem>>, vector<1x128xf32>
    %15 = vector.broadcast %13 : vector<1x128xf32> to vector<128x128xf32>
    %16 = arith.mulf %11, %15 : vector<128x128xf32>
    %17 = vector.broadcast %14 : vector<1x128xf32> to vector<128x128xf32>
    %18 = arith.mulf %12, %17 : vector<128x128xf32>
    %19 = arith.addf %16, %18 : vector<128x128xf32>
    %c0_14 = arith.constant 0 : index
    %c0_15 = arith.constant 0 : index
    %20 = vector.load %arg8[%c0_14, %c0_15] : memref<1x128xf32, #tpu.memory_space<vmem>>, vector<1x128xf32>
    %21 = vector.broadcast %20 : vector<1x128xf32> to vector<128x128xf32>
    %22 = arith.addf %19, %21 : vector<128x128xf32>
    %cst_16 = arith.constant 0.000000e+00 : f32
    %23 = vector.broadcast %cst_16 : f32 to vector<128x128xf32>
    %24 = arith.maximumf %22, %23 : vector<128x128xf32>
    %25 = vector.broadcast %14 : vector<1x128xf32> to vector<128x128xf32>
    %26 = arith.mulf %11, %25 : vector<128x128xf32>
    %27 = vector.broadcast %13 : vector<1x128xf32> to vector<128x128xf32>
    %28 = arith.mulf %12, %27 : vector<128x128xf32>
    %29 = arith.subf %26, %28 : vector<128x128xf32>
    %c0_17 = arith.constant 0 : index
    %c0_18 = arith.constant 0 : index
    %30 = vector.load %arg9[%c0_17, %c0_18] : memref<1x128xf32, #tpu.memory_space<vmem>>, vector<1x128xf32>
    %31 = vector.broadcast %30 : vector<1x128xf32> to vector<128x128xf32>
    %32 = arith.addf %29, %31 : vector<128x128xf32>
    %cst_19 = arith.constant 0.000000e+00 : f32
    %33 = vector.broadcast %cst_19 : f32 to vector<128x128xf32>
    %34 = arith.maximumf %32, %33 : vector<128x128xf32>
    %c0_20 = arith.constant 0 : index
    %c0_21 = arith.constant 0 : index
    %35 = vector.load %arg5[%c0_20, %c0_21] : memref<256x128xf32, #tpu.memory_space<vmem>>, vector<128x128xf32>
    %cst_22 = arith.constant dense<0.000000e+00> : vector<128x128xf32>
    %36 = tpu.matmul %35, %24, %cst_22 {dimension_numbers = #tpu.dot_dimension_numbers<[1], [0], [0], [1], [0, 0, 1, 1], [], []>} : vector<128x128xf32>, vector<128x128xf32>, vector<128x128xf32> -> vector<128x128xf32>
    %c128 = arith.constant 128 : index
    %c0_23 = arith.constant 0 : index
    %37 = vector.load %arg5[%c128, %c0_23] : memref<256x128xf32, #tpu.memory_space<vmem>>, vector<128x128xf32>
    %cst_24 = arith.constant dense<0.000000e+00> : vector<128x128xf32>
    %38 = tpu.matmul %37, %34, %cst_24 {dimension_numbers = #tpu.dot_dimension_numbers<[1], [0], [0], [1], [0, 0, 1, 1], [], []>} : vector<128x128xf32>, vector<128x128xf32>, vector<128x128xf32> -> vector<128x128xf32>
    %39 = arith.subf %36, %38 : vector<128x128xf32>
    %c0_25 = arith.constant 0 : index
    %c0_26 = arith.constant 0 : index
    %40 = vector.load %arg10[%c0_25, %c0_26] : memref<128x128xf32, #tpu.memory_space<vmem>>, vector<128x128xf32>
    %cst_27 = arith.constant dense<0.000000e+00> : vector<128x128xf32>
    %41 = tpu.matmul %39, %40, %cst_27 {dimension_numbers = #tpu.dot_dimension_numbers<[1], [0], [0], [1], [0, 0, 1, 1], [], []>} : vector<128x128xf32>, vector<128x128xf32>, vector<128x128xf32> -> vector<128x128xf32>
    %c0_28 = arith.constant 0 : index
    %c0_29 = arith.constant 0 : index
    %42 = vector.load %arg11[%c0_28, %c0_29] : memref<1x128xf32, #tpu.memory_space<vmem>>, vector<1x128xf32>
    %43 = vector.broadcast %42 : vector<1x128xf32> to vector<128x128xf32>
    %44 = arith.addf %41, %43 : vector<128x128xf32>
    %c0_30 = arith.constant 0 : index
    %c0_31 = arith.constant 0 : index
    %c0_32 = arith.constant 0 : index
    %45 = vector.load %arg12[%c0_30, %c0_31, %c0_32] : memref<1x128x128xf32, #tpu.memory_space<vmem>>, vector<1x128x128xf32>
    %46 = vector.shape_cast %45 : vector<1x128x128xf32> to vector<128x128xf32>
    %47 = vector.shape_cast %44 : vector<128x128xf32> to vector<1x128x128xf32>
    tpu.vector_store %arg12[%c0_30, %c0_31, %c0_32], %47 {strides = array<i32>} : memref<1x128x128xf32, #tpu.memory_space<vmem>>, vector<1x128x128xf32>,
    return
  }
  func.func @transform_0(%arg0: i32, %arg1: i32) -> (i32, i32, i32) {
    %c0_i32 = arith.constant 0 : i32
    %c0_i32_0 = arith.constant 0 : i32
    %c0_i32_1 = arith.constant 0 : i32
    return %arg0, %c0_i32, %c0_i32_0 : i32, i32, i32
  }
  func.func @transform_1(%arg0: i32, %arg1: i32) -> (i32, i32) {
    %c0_i32 = arith.constant 0 : i32
    %c0_i32_0 = arith.constant 0 : i32
    return %c0_i32, %arg1 : i32, i32
  }
  func.func @transform_2(%arg0: i32, %arg1: i32) -> (i32, i32) {
    %c0_i32 = arith.constant 0 : i32
    %c0_i32_0 = arith.constant 0 : i32
    return %c0_i32, %arg1 : i32, i32
  }
  func.func @transform_3(%arg0: i32, %arg1: i32) -> (i32, i32) {
    %c0_i32 = arith.constant 0 : i32
    %c0_i32_0 = arith.constant 0 : i32
    %c0_i32_1 = arith.constant 0 : i32
    return %c0_i32, %c0_i32_0 : i32, i32
  }
  func.func @transform_4(%arg0: i32, %arg1: i32) -> (i32, i32) {
    %c0_i32 = arith.constant 0 : i32
    %c0_i32_0 = arith.constant 0 : i32
    return %c0_i32, %arg1 : i32, i32
  }
  func.func @transform_5(%arg0: i32, %arg1: i32) -> (i32, i32) {
    %c0_i32 = arith.constant 0 : i32
    %c0_i32_0 = arith.constant 0 : i32
    return %c0_i32, %arg1 : i32, i32
  }
  func.func @transform_6(%arg0: i32, %arg1: i32) -> (i32, i32) {
    %c0_i32 = arith.constant 0 : i32
    %c0_i32_0 = arith.constant 0 : i32
    return %c0_i32, %arg1 : i32, i32
  }
  func.func @transform_7(%arg0: i32, %arg1: i32) -> (i32, i32) {
    %c0_i32 = arith.constant 0 : i32
    %c0_i32_0 = arith.constant 0 : i32
    return %c0_i32, %arg1 : i32, i32
  }
  func.func @transform_8(%arg0: i32, %arg1: i32) -> (i32, i32) {
    %c0_i32 = arith.constant 0 : i32
    %c0_i32_0 = arith.constant 0 : i32
    return %arg1, %c0_i32 : i32, i32
  }
  func.func @transform_9(%arg0: i32, %arg1: i32) -> (i32, i32) {
    %c0_i32 = arith.constant 0 : i32
    %c0_i32_0 = arith.constant 0 : i32
    %c0_i32_1 = arith.constant 0 : i32
    return %c0_i32, %c0_i32_0 : i32, i32
  }
  func.func @transform_10(%arg0: i32, %arg1: i32) -> (i32, i32, i32) {
    %c0_i32 = arith.constant 0 : i32
    %c0_i32_0 = arith.constant 0 : i32
    %c0_i32_1 = arith.constant 0 : i32
    return %arg0, %c0_i32, %c0_i32_0 : i32, i32, i32
  }
}

</mosaic_0001>

<llo_original>
// kernel: tpu_custom_call.1
$region0: #{tpu_custom_call.1}
  #allocation0 [shape = 'u32[]', space=smem, size = 0x4, offset = 0x4, fixed_abs, tag = 'smem constant byte address 0x4 - core index']
  #allocation1 [shape = 'u32[144,128]{1,0:T(1,128)}', space=vmem, size = 0x12000, scoped, tag = 'internal scratch']
  %s0 = inlined_call_operand.hbm [shape: f32[2,128,128], index: 0, kind: input, shape index: {}]
  %s1 = inlined_call_operand.hbm [shape: f32[128,128], index: 1, kind: input, shape index: {}]
  %s2 = inlined_call_operand.vmem [shape: f32[1,128], index: 2, kind: input, shape index: {}]
  %s3 = inlined_call_operand.hbm [shape: f32[256,128], index: 3, kind: input, shape index: {}]
  %s4 = inlined_call_operand.vmem [shape: f32[1,128], index: 4, kind: input, shape index: {}]
  %s5 = inlined_call_operand.vmem [shape: f32[1,128], index: 5, kind: input, shape index: {}]
  %s6 = inlined_call_operand.vmem [shape: f32[1,128], index: 6, kind: input, shape index: {}]
  %s7 = inlined_call_operand.vmem [shape: f32[1,128], index: 7, kind: input, shape index: {}]
  %s8 = inlined_call_operand.hbm [shape: f32[128,128], index: 8, kind: input, shape index: {}]
  %s9 = inlined_call_operand.vmem [shape: f32[1,128], index: 9, kind: input, shape index: {}]
  %s10 = inlined_call_operand.hbm [shape: f32[2,128,128], index: 10, kind: output, shape index: {}]
  %s11 = sld [smem:[#allocation0]]
  $region89: #{tpu_custom_call.1} parent=0
    _
  %s13 = ssub.s32 1, %s11
  %s14 = scalar_select 0, %s13, %s11
  $region1: #{tpu_custom_call.1} parent=0
    #allocation2 [shape = 'u8[131072]{0}', space=vmem, size = 0x20000, scoped, tag = 'input window, operand 0']
    #allocation3 [shape = 's32[2]{0}', space=sflag, size = 0x8, scoped, tag = 'scoped memory for tpu_custom_call.1']
    #allocation4 [shape = 's32[2]{0}', space=sflag, size = 0x8, scoped, tag = 'scoped memory for tpu_custom_call.1']
    #allocation5 [shape = 'u8[65536]{0}', space=vmem, size = 0x10000, scoped, tag = 'input window, operand 1, single buffered']
    #allocation6 [shape = 's32[1]{0}', space=sflag, size = 0x4, scoped, tag = 'scoped memory for tpu_custom_call.1']
    #allocation7 [shape = 'u8[131072]{0}', space=vmem, size = 0x20000, scoped, tag = 'input window, operand 3, single buffered']
    #allocation8 [shape = 'u8[65536]{0}', space=vmem, size = 0x10000, scoped, tag = 'input window, operand 8, single buffered']
    #allocation9 [shape = 's32[1]{0}', space=sflag, size = 0x4, scoped, tag = 'scoped memory for tpu_custom_call.1']
    #allocation10 [shape = 'u8[131072]{0}', space=vmem, size = 0x20000, scoped, tag = 'output window, operand 0']
    %15 = vsyncpa [#allocation3], 0
    %s16 = scalar_lea.sflag [#allocation3], 1
    %17 = vsyncpa %s16, 0
    %18 = vsyncpa [#allocation6], 0
    %19 = vsyncpa [#allocation9], 0
    %20 = vsyncpa [#allocation4], 0
    %s21 = scalar_lea.sflag [#allocation4], 1
    %22 = vsyncpa %s21, 0
    loop: start=0, step=1, limit=4
    $region2: #{tpu_custom_call.1} parent=1 // loop_pre_header
      _
    $region3: #{tpu_custom_call.1} parent=1 // loop_header
      %s24 = sphi 0, %s28
      %p25 = scmp.ge.s32.totalorder %s24, 4
      %s31 = sphi 0, %s43
      %s32 = sphi 0, %s39
      %s33 = sphi 0, %s31
      %s34 = sphi 0, %s32
      %s35 = sphi 0, %s33
      %s36 = sphi 0, %s34
      %s46 = sphi 0, %s48
      %s49 = sphi 0, %s46
      %s50 = sphi 0, %s49
      %s66 = sphi 0, %s50
      %s72 = sphi 0, %s74
      %s75 = sphi 0, %s72
      %s76 = sphi 0, %s75
      %s92 = sphi 0, %s76
      %s98 = sphi 0, %s100
      %s101 = sphi 0, %s98
      %s102 = sphi 0, %s101
      %s118 = sphi 0, %s102
      %s122 = sphi 0, %s122
      %s124 = sphi 0, %s122
      %s125 = sphi 0, %s124
      %s139 = sphi 0, %s125
      %s145 = sphi 0, %s147
      %s148 = sphi 0, %s145
      %s149 = sphi 0, %s148
      %s165 = sphi 0, %s149
      %s171 = sphi 0, %s173
      %s174 = sphi 0, %s171
      %s175 = sphi 0, %s174
      %s191 = sphi 0, %s175
      %s197 = sphi 0, %s199
      %s200 = sphi 0, %s197
      %s201 = sphi 0, %s200
      %s217 = sphi 0, %s201
      %s223 = sphi 0, %s225
      %s226 = sphi 0, %s223
      %s227 = sphi 0, %s226
      %s243 = sphi 0, %s227
      %s249 = sphi 0, %s251
      %s252 = sphi 0, %s249
      %s253 = sphi 0, %s252
      %s269 = sphi 0, %s253
      %s273 = sphi 0, %s273
      %s275 = sphi 0, %s273
      %s276 = sphi 0, %s275
      %s290 = sphi 0, %s276
      %s296 = sphi 0, %s298
      %s299 = sphi 0, %s296
      %s300 = sphi 0, %s299
      %s316 = sphi 0, %s300
    $region4: #{tpu_custom_call.1} parent=1 // loop_header_branch
      %27 = sbr.rel (%p25) target = $region8
    $region5: #{tpu_custom_call.1} parent=1 // loop_body
      %s29 = ssub.s32 %s24, 1
      %s30 = ssub.s32 %s24, 2
      %s37 = sadd.s32 1, %s32
      %p38 = scmp.ge.s32.totalorder %s37, 1
      %s39 = scalar_select %p38, 0, %s37
      %s40 = sadd.s32 1, %s31
      %s41 = scalar_select %p38, %s40, %s31
      %p42 = scmp.ge.s32.totalorder %s41, 2
      %s43 = scalar_select %p42, 0, %s41
      %s44 = ssub.s32 %s31, %s43
      %p45 = scmp.eq.s32.totalorder %s44, 0
      %s47 = sadd.s32 %s46, 1
      %s48 = scalar_select %p45, %s46, %s47
      %p51 = pneg %p45
      %p52 = scmp.eq.s32.totalorder %s24, 1
      %p53 = por %p51, %p52
      %p54 = scmp.ne.s32.totalorder %s46, %s49
      %p55 = scmp.eq.s32.totalorder %s24, 0
      %p56 = por %p54, %p55
      %p57 = scmp.ne.s32.totalorder %s46, %s49
      %p58 = scmp.eq.s32.totalorder %s29, 1
      %p59 = por %p57, %p58
      %p60 = scmp.ne.s32.totalorder %s49, %s50
      %p61 = scmp.eq.s32.totalorder %s29, 0
      %p62 = por %p60, %p61
      %p63 = scmp.ne.s32.totalorder %s49, %s50
      %p64 = scmp.eq.s32.totalorder %s30, 1
      %p65 = por %p63, %p64
      %p67 = scmp.ne.s32.totalorder %s50, %s66
      %p68 = scmp.eq.s32.totalorder %s30, 0
      %p69 = por %p67, %p68
      %s70 = ssub.s32 %s32, %s39
      %p71 = scmp.eq.s32.totalorder %s70, 0
      %s73 = sadd.s32 %s72, 1
      %s74 = scalar_select %p71, %s72, %s73
      %p77 = pneg %p71
      %p78 = scmp.eq.s32.totalorder %s24, 1
      %p79 = por %p77, %p78
      %p80 = scmp.ne.s32.totalorder %s72, %s75
      %p81 = scmp.eq.s32.totalorder %s24, 0
      %p82 = por %p80, %p81
      %p83 = scmp.ne.s32.totalorder %s72, %s75
      %p84 = scmp.eq.s32.totalorder %s29, 1
      %p85 = por %p83, %p84
      %p86 = scmp.ne.s32.totalorder %s75, %s76
      %p87 = scmp.eq.s32.totalorder %s29, 0
      %p88 = por %p86, %p87
      %p89 = scmp.ne.s32.totalorder %s75, %s76
      %p90 = scmp.eq.s32.totalorder %s30, 1
      %p91 = por %p89, %p90
      %p93 = scmp.ne.s32.totalorder %s76, %s92
      %p94 = scmp.eq.s32.totalorder %s30, 0
      %p95 = por %p93, %p94
      %s96 = ssub.s32 %s32, %s39
      %p97 = scmp.eq.s32.totalorder %s96, 0
      %s99 = sadd.s32 %s98, 1
      %s100 = scalar_select %p97, %s98, %s99
      %p103 = pneg %p97
      %p104 = scmp.eq.s32.totalorder %s24, 1
      %p105 = por %p103, %p104
      %p106 = scmp.ne.s32.totalorder %s98, %s101
      %p107 = scmp.eq.s32.totalorder %s24, 0
      %p108 = por %p106, %p107
      %p109 = scmp.ne.s32.totalorder %s98, %s101
      %p110 = scmp.eq.s32.totalorder %s29, 1
      %p111 = por %p109, %p110
      %p112 = scmp.ne.s32.totalorder %s101, %s102
      %p113 = scmp.eq.s32.totalorder %s29, 0
      %p114 = por %p112, %p113
      %p115 = scmp.ne.s32.totalorder %s101, %s102
      %p116 = scmp.eq.s32.totalorder %s30, 1
      %p117 = por %p115, %p116
      %p119 = scmp.ne.s32.totalorder %s102, %s118
      %p120 = scmp.eq.s32.totalorder %s30, 0
      %p121 = por %p119, %p120
      %s123 = sadd.s32 %s122, 1
      %p126 = scmp.eq.s32.totalorder %s24, 1
      %p127 = scmp.ne.s32.totalorder %s122, %s124
      %p128 = scmp.eq.s32.totalorder %s24, 0
      %p129 = por %p127, %p128
      %p130 = scmp.ne.s32.totalorder %s122, %s124
      %p131 = scmp.eq.s32.totalorder %s29, 1
      %p132 = por %p130, %p131
      %p133 = scmp.ne.s32.totalorder %s124, %s125
      %p134 = scmp.eq.s32.totalorder %s29, 0
      %p135 = por %p133, %p134
      %p136 = scmp.ne.s32.totalorder %s124, %s125
      %p137 = scmp.eq.s32.totalorder %s30, 1
      %p138 = por %p136, %p137
      %p140 = scmp.ne.s32.totalorder %s125, %s139
      %p141 = scmp.eq.s32.totalorder %s30, 0
      %p142 = por %p140, %p141
      %s143 = ssub.s32 %s32, %s39
      %p144 = scmp.eq.s32.totalorder %s143, 0
      %s146 = sadd.s32 %s145, 1
      %s147 = scalar_select %p144, %s145, %s146
      %p150 = pneg %p144
      %p151 = scmp.eq.s32.totalorder %s24, 1
      %p152 = por %p150, %p151
      %p153 = scmp.ne.s32.totalorder %s145, %s148
      %p154 = scmp.eq.s32.totalorder %s24, 0
      %p155 = por %p153, %p154
      %p156 = scmp.ne.s32.totalorder %s145, %s148
      %p157 = scmp.eq.s32.totalorder %s29, 1
      %p158 = por %p156, %p157
      %p159 = scmp.ne.s32.totalorder %s148, %s149
      %p160 = scmp.eq.s32.totalorder %s29, 0
      %p161 = por %p159, %p160
      %p162 = scmp.ne.s32.totalorder %s148, %s149
      %p163 = scmp.eq.s32.totalorder %s30, 1
      %p164 = por %p162, %p163
      %p166 = scmp.ne.s32.totalorder %s149, %s165
      %p167 = scmp.eq.s32.totalorder %s30, 0
      %p168 = por %p166, %p167
      %s169 = ssub.s32 %s32, %s39
      %p170 = scmp.eq.s32.totalorder %s169, 0
      %s172 = sadd.s32 %s171, 1
      %s173 = scalar_select %p170, %s171, %s172
      %p176 = pneg %p170
      %p177 = scmp.eq.s32.totalorder %s24, 1
      %p178 = por %p176, %p177
      %p179 = scmp.ne.s32.totalorder %s171, %s174
      %p180 = scmp.eq.s32.totalorder %s24, 0
      %p181 = por %p179, %p180
      %p182 = scmp.ne.s32.totalorder %s171, %s174
      %p183 = scmp.eq.s32.totalorder %s29, 1
      %p184 = por %p182, %p183
      %p185 = scmp.ne.s32.totalorder %s174, %s175
      %p186 = scmp.eq.s32.totalorder %s29, 0
      %p187 = por %p185, %p186
      %p188 = scmp.ne.s32.totalorder %s174, %s175
      %p189 = scmp.eq.s32.totalorder %s30, 1
      %p190 = por %p188, %p189
      %p192 = scmp.ne.s32.totalorder %s175, %s191
      %p193 = scmp.eq.s32.totalorder %s30, 0
      %p194 = por %p192, %p193
      %s195 = ssub.s32 %s32, %s39
      %p196 = scmp.eq.s32.totalorder %s195, 0
      %s198 = sadd.s32 %s197, 1
      %s199 = scalar_select %p196, %s197, %s198
      %p202 = pneg %p196
      %p203 = scmp.eq.s32.totalorder %s24, 1
      %p204 = por %p202, %p203
      %p205 = scmp.ne.s32.totalorder %s197, %s200
      %p206 = scmp.eq.s32.totalorder %s24, 0
      %p207 = por %p205, %p206
      %p208 = scmp.ne.s32.totalorder %s197, %s200
      %p209 = scmp.eq.s32.totalorder %s29, 1
      %p210 = por %p208, %p209
      %p211 = scmp.ne.s32.totalorder %s200, %s201
      %p212 = scmp.eq.s32.totalorder %s29, 0
      %p213 = por %p211, %p212
      %p214 = scmp.ne.s32.totalorder %s200, %s201
      %p215 = scmp.eq.s32.totalorder %s30, 1
      %p216 = por %p214, %p215
      %p218 = scmp.ne.s32.totalorder %s201, %s217
      %p219 = scmp.eq.s32.totalorder %s30, 0
      %p220 = por %p218, %p219
      %s221 = ssub.s32 %s32, %s39
      %p222 = scmp.eq.s32.totalorder %s221, 0
      %s224 = sadd.s32 %s223, 1
      %s225 = scalar_select %p222, %s223, %s224
      %p228 = pneg %p222
      %p229 = scmp.eq.s32.totalorder %s24, 1
      %p230 = por %p228, %p229
      %p231 = scmp.ne.s32.totalorder %s223, %s226
      %p232 = scmp.eq.s32.totalorder %s24, 0
      %p233 = por %p231, %p232
      %p234 = scmp.ne.s32.totalorder %s223, %s226
      %p235 = scmp.eq.s32.totalorder %s29, 1
      %p236 = por %p234, %p235
      %p237 = scmp.ne.s32.totalorder %s226, %s227
      %p238 = scmp.eq.s32.totalorder %s29, 0
      %p239 = por %p237, %p238
      %p240 = scmp.ne.s32.totalorder %s226, %s227
      %p241 = scmp.eq.s32.totalorder %s30, 1
      %p242 = por %p240, %p241
      %p244 = scmp.ne.s32.totalorder %s227, %s243
      %p245 = scmp.eq.s32.totalorder %s30, 0
      %p246 = por %p244, %p245
      %s247 = ssub.s32 %s32, %s39
      %p248 = scmp.eq.s32.totalorder %s247, 0
      %s250 = sadd.s32 %s249, 1
      %s251 = scalar_select %p248, %s249, %s250
      %p254 = pneg %p248
      %p255 = scmp.eq.s32.totalorder %s24, 1
      %p256 = por %p254, %p255
      %p257 = scmp.ne.s32.totalorder %s249, %s252
      %p258 = scmp.eq.s32.totalorder %s24, 0
      %p259 = por %p257, %p258
      %p260 = scmp.ne.s32.totalorder %s249, %s252
      %p261 = scmp.eq.s32.totalorder %s29, 1
      %p262 = por %p260, %p261
      %p263 = scmp.ne.s32.totalorder %s252, %s253
      %p264 = scmp.eq.s32.totalorder %s29, 0
      %p265 = por %p263, %p264
      %p266 = scmp.ne.s32.totalorder %s252, %s253
      %p267 = scmp.eq.s32.totalorder %s30, 1
      %p268 = por %p266, %p267
      %p270 = scmp.ne.s32.totalorder %s253, %s269
      %p271 = scmp.eq.s32.totalorder %s30, 0
      %p272 = por %p270, %p271
      %s274 = sadd.s32 %s273, 1
      %p277 = scmp.eq.s32.totalorder %s24, 1
      %p278 = scmp.ne.s32.totalorder %s273, %s275
      %p279 = scmp.eq.s32.totalorder %s24, 0
      %p280 = por %p278, %p279
      %p281 = scmp.ne.s32.totalorder %s273, %s275
      %p282 = scmp.eq.s32.totalorder %s29, 1
      %p283 = por %p281, %p282
      %p284 = scmp.ne.s32.totalorder %s275, %s276
      %p285 = scmp.eq.s32.totalorder %s29, 0
      %p286 = por %p284, %p285
      %p287 = scmp.ne.s32.totalorder %s275, %s276
      %p288 = scmp.eq.s32.totalorder %s30, 1
      %p289 = por %p287, %p288
      %p291 = scmp.ne.s32.totalorder %s276, %s290
      %p292 = scmp.eq.s32.totalorder %s30, 0
      %p293 = por %p291, %p292
      %s294 = ssub.s32 %s31, %s43
      %p295 = scmp.eq.s32.totalorder %s294, 0
      %s297 = sadd.s32 %s296, 1
      %s298 = scalar_select %p295, %s296, %s297
      %p301 = pneg %p295
      %p302 = scmp.eq.s32.totalorder %s24, 1
      %p303 = por %p301, %p302
      %p304 = scmp.ne.s32.totalorder %s296, %s299
      %p305 = scmp.eq.s32.totalorder %s24, 0
      %p306 = por %p304, %p305
      %p307 = scmp.ne.s32.totalorder %s296, %s299
      %p308 = scmp.eq.s32.totalorder %s29, 1
      %p309 = por %p307, %p308
      %p310 = scmp.ne.s32.totalorder %s299, %s300
      %p311 = scmp.eq.s32.totalorder %s29, 0
      %p312 = por %p310, %p311
      %p313 = scmp.ne.s32.totalorder %s299, %s300
      %p314 = scmp.eq.s32.totalorder %s30, 1
      %p315 = por %p313, %p314
      %p317 = scmp.ne.s32.totalorder %s300, %s316
      %p318 = scmp.eq.s32.totalorder %s30, 0
      %p319 = por %p317, %p318
      %p320 = scmp.le.s32.totalorder 1, %s24
      %p321 = scmp.lt.s32.totalorder %s24, 3
      %p322 = pnand %p320, %p321
      %p323 = pneg %p322
      // Predicated region
      $region9: #{tpu_custom_call.1} parent=5 // pred_check
        _
      $region10: #{tpu_custom_call.1} parent=5 // pred_check_branch
        %325 = sbr.rel (%p322) target = $region12
      $region11: #{tpu_custom_call.1} parent=5 // pred_region
        %s326 = ssub.s32 %s24, 1
        // Predicated region
        $region13: #{tpu_custom_call.1} parent=11 // pred_check
          %p327 = pneg %p88
        $region14: #{tpu_custom_call.1} parent=11 // pred_check_branch
          %329 = sbr.rel (%p327) target = $region16
        $region15: #{tpu_custom_call.1} parent=11 // pred_region
          %s331 = ssub.s32 2048, 2048
          %332 = vsyncadd [#allocation6], %s331
          %s333 = smul.addr %s34, 128
          %s334 = scalar_lea.hbm %s1, %s333
          %s335 = sshll.u32 [#allocation5], 4
          %s336 = int_to_ptr.vmem [resolvable:$true] %s335
          %341 = dma.hbm_to_vmem [thread:$0]  %s334, 2048, %s336, [#allocation6], 128, 128, 8
        $region16: #{tpu_custom_call.1} parent=11 // pred_fallthru
          _
        // Predicated region
        $region17: #{tpu_custom_call.1} parent=11 // pred_check
          %p342 = pneg %p114
        $region18: #{tpu_custom_call.1} parent=11 // pred_check_branch
          %344 = sbr.rel (%p342) target = $region20
        $region19: #{tpu_custom_call.1} parent=11 // pred_region
          %p345 = scmp.lt.s32.totalorder %s34, 0
          %s346 = scalar_select %p345, %s34, 0
          %s347 = scalar_lea.vmem %s2, %s346
        $region20: #{tpu_custom_call.1} parent=11 // pred_fallthru
          _
        // Predicated region
        $region21: #{tpu_custom_call.1} parent=11 // pred_check
          %p348 = pneg %p135
        $region22: #{tpu_custom_call.1} parent=11 // pred_check_branch
          %350 = sbr.rel (%p348) target = $region24
        $region23: #{tpu_custom_call.1} parent=11 // pred_region
          %s352 = ssub.s32 4096, 4096
          %353 = vsyncadd [#allocation6], %s352
          %s354 = sshll.u32 [#allocation7], 4
          %s355 = int_to_ptr.vmem [resolvable:$true] %s354
          %360 = dma.hbm_to_vmem [thread:$0]  %s3, 4096, %s355, [#allocation6], 128, 128, 8
        $region24: #{tpu_custom_call.1} parent=11 // pred_fallthru
          _
        // Predicated region
        $region25: #{tpu_custom_call.1} parent=11 // pred_check
          %p361 = pneg %p161
        $region26: #{tpu_custom_call.1} parent=11 // pred_check_branch
          %363 = sbr.rel (%p361) target = $region28
        $region27: #{tpu_custom_call.1} parent=11 // pred_region
          %p364 = scmp.lt.s32.totalorder %s34, 0
          %s365 = scalar_select %p364, %s34, 0
          %s366 = scalar_lea.vmem %s4, %s365
        $region28: #{tpu_custom_call.1} parent=11 // pred_fallthru
          _
        // Predicated region
        $region29: #{tpu_custom_call.1} parent=11 // pred_check
          %p367 = pneg %p187
        $region30: #{tpu_custom_call.1} parent=11 // pred_check_branch
          %369 = sbr.rel (%p367) target = $region32
        $region31: #{tpu_custom_call.1} parent=11 // pred_region
          %p370 = scmp.lt.s32.totalorder %s34, 0
          %s371 = scalar_select %p370, %s34, 0
          %s372 = scalar_lea.vmem %s5, %s371
        $region32: #{tpu_custom_call.1} parent=11 // pred_fallthru
          _
        // Predicated region
        $region33: #{tpu_custom_call.1} parent=11 // pred_check
          %p373 = pneg %p213
        $region34: #{tpu_custom_call.1} parent=11 // pred_check_branch
          %375 = sbr.rel (%p373) target = $region36
        $region35: #{tpu_custom_call.1} parent=11 // pred_region
          %p376 = scmp.lt.s32.totalorder %s34, 0
          %s377 = scalar_select %p376, %s34, 0
          %s378 = scalar_lea.vmem %s6, %s377
        $region36: #{tpu_custom_call.1} parent=11 // pred_fallthru
          _
        // Predicated region
        $region37: #{tpu_custom_call.1} parent=11 // pred_check
          %p379 = pneg %p239
        $region38: #{tpu_custom_call.1} parent=11 // pred_check_branch
          %381 = sbr.rel (%p379) target = $region40
        $region39: #{tpu_custom_call.1} parent=11 // pred_region
          %p382 = scmp.lt.s32.totalorder %s34, 0
          %s383 = scalar_select %p382, %s34, 0
          %s384 = scalar_lea.vmem %s7, %s383
        $region40: #{tpu_custom_call.1} parent=11 // pred_fallthru
          _
        // Predicated region
        $region41: #{tpu_custom_call.1} parent=11 // pred_check
          %p385 = pneg %p265
        $region42: #{tpu_custom_call.1} parent=11 // pred_check_branch
          %387 = sbr.rel (%p385) target = $region44
        $region43: #{tpu_custom_call.1} parent=11 // pred_region
          %s388 = smul.u32 16, %s34
          %s390 = ssub.s32 2048, 2048
          %391 = vsyncadd [#allocation9], %s390
          %s392 = smul.addr %s388, 128
          %s393 = scalar_lea.hbm %s8, %s392
          %s394 = sshll.u32 [#allocation8], 4
          %s395 = int_to_ptr.vmem [resolvable:$true] %s394
          %400 = dma.hbm_to_vmem [thread:$0]  %s393, 2048, %s395, [#allocation9], 128, 128, 8
        $region44: #{tpu_custom_call.1} parent=11 // pred_fallthru
          _
        // Predicated region
        $region45: #{tpu_custom_call.1} parent=11 // pred_check
          %p401 = pneg %p286
        $region46: #{tpu_custom_call.1} parent=11 // pred_check_branch
          %403 = sbr.rel (%p401) target = $region48
        $region47: #{tpu_custom_call.1} parent=11 // pred_region
          _
        $region48: #{tpu_custom_call.1} parent=11 // pred_fallthru
          _
      $region12: #{tpu_custom_call.1} parent=5 // pred_fallthru
        _
      %p404 = scmp.lt.s32.totalorder %s24, 2
      // Predicated region
      $region49: #{tpu_custom_call.1} parent=5 // pred_check
        %p405 = pneg %p404
      $region50: #{tpu_custom_call.1} parent=5 // pred_check_branch
        %407 = sbr.rel (%p405) target = $region52
      $region51: #{tpu_custom_call.1} parent=5 // pred_region
        // Predicated region
        $region53: #{tpu_custom_call.1} parent=51 // pred_check
          %p408 = pneg %p56
        $region54: #{tpu_custom_call.1} parent=51 // pred_check_branch
          %410 = sbr.rel (%p408) target = $region56
        $region55: #{tpu_custom_call.1} parent=51 // pred_region
          %s411 = sand.u32 %s46, 1
          %s412 = scalar_lea.sflag [#allocation3], %s411
          %s413 = sand.u32 %s46, 1
          %s414 = smul.addr %s413, 128
          %s415 = scalar_lea.vmem [#allocation2], %s414
          %s417 = ssub.s32 2048, 2048
          %418 = vsyncadd %s412, %s417
          %s419 = smul.addr %s31, 16
          %s420 = smul.addr %s419, 128
          %s421 = scalar_lea.hbm %s0, %s420
          %s422 = sshll.u32 %s415, 4
          %s423 = int_to_ptr.vmem [resolvable:$true] %s422
          %428 = dma.hbm_to_vmem [thread:$0]  %s421, 2048, %s423, %s412, 128, 128, 8
        $region56: #{tpu_custom_call.1} parent=51 // pred_fallthru
          _
      $region52: #{tpu_custom_call.1} parent=5 // pred_fallthru
        _
      %p429 = scmp.le.s32.totalorder 1, %s24
      %p430 = scmp.lt.s32.totalorder %s24, 3
      %p431 = pnand %p429, %p430
      %p432 = pneg %p431
      // Predicated region
      $region57: #{tpu_custom_call.1} parent=5 // pred_check
        _
      $region58: #{tpu_custom_call.1} parent=5 // pred_check_branch
        %434 = sbr.rel (%p431) target = $region60
      $region59: #{tpu_custom_call.1} parent=5 // pred_region
        %s435 = ssub.s32 %s24, 1
        %s436 = sand.u32 %s49, 1
        %s437 = scalar_lea.sflag [#allocation3], %s436
        %s438 = sand.u32 %s49, 1
        %s439 = smul.addr %s438, 128
        %s440 = scalar_lea.vmem [#allocation2], %s439
        // Predicated region
        $region61: #{tpu_custom_call.1} parent=59 // pred_check
          %p441 = pneg %p62
        $region62: #{tpu_custom_call.1} parent=59 // pred_check_branch
          %443 = sbr.rel (%p441) target = $region64
        $region63: #{tpu_custom_call.1} parent=59 // pred_region
          %444 = dma.done %s437, 2048
        $region64: #{tpu_custom_call.1} parent=59 // pred_fallthru
          _
        // Predicated region
        $region65: #{tpu_custom_call.1} parent=59 // pred_check
          %p445 = pneg %p88
        $region66: #{tpu_custom_call.1} parent=59 // pred_check_branch
          %447 = sbr.rel (%p445) target = $region68
        $region67: #{tpu_custom_call.1} parent=59 // pred_region
          %448 = dma.done [#allocation6], 2048
        $region68: #{tpu_custom_call.1} parent=59 // pred_fallthru
          _
        // Predicated region
        $region69: #{tpu_custom_call.1} parent=59 // pred_check
          %p449 = pneg %p135
        $region70: #{tpu_custom_call.1} parent=59 // pred_check_branch
          %451 = sbr.rel (%p449) target = $region72
        $region71: #{tpu_custom_call.1} parent=59 // pred_region
          %452 = dma.done [#allocation6], 4096
        $region72: #{tpu_custom_call.1} parent=59 // pred_fallthru
          _
        // Predicated region
        $region73: #{tpu_custom_call.1} parent=59 // pred_check
          %p453 = pneg %p265
        $region74: #{tpu_custom_call.1} parent=59 // pred_check_branch
          %455 = sbr.rel (%p453) target = $region76
        $region75: #{tpu_custom_call.1} parent=59 // pred_region
          %456 = dma.done [#allocation9], 2048
        $region76: #{tpu_custom_call.1} parent=59 // pred_fallthru
          _
        %s457 = sand.u32 %s49, 1
        %s458 = scalar_lea.sflag [#allocation3], %s457
        %s459 = sand.u32 %s49, 1
        %s460 = smul.addr %s459, 128
        %s461 = scalar_lea.vmem [#allocation2], %s460
        %p462 = pneg %p62
        %p463 = pneg %p59
        %p464 = pneg %p88
        %p465 = pneg %p85
        %p466 = scmp.lt.s32.totalorder %s34, 0
        %s467 = scalar_select %p466, %s34, 0
        %s468 = scalar_lea.vmem %s2, %s467
        %p469 = pneg %p114
        %p470 = pneg %p111
        %p471 = pneg %p135
        %p472 = pneg %p132
        %p473 = scmp.lt.s32.totalorder %s34, 0
        %s474 = scalar_select %p473, %s34, 0
        %s475 = scalar_lea.vmem %s4, %s474
        %p476 = pneg %p161
        %p477 = pneg %p158
        %p478 = scmp.lt.s32.totalorder %s34, 0
        %s479 = scalar_select %p478, %s34, 0
        %s480 = scalar_lea.vmem %s5, %s479
        %p481 = pneg %p187
        %p482 = pneg %p184
        %p483 = scmp.lt.s32.totalorder %s34, 0
        %s484 = scalar_select %p483, %s34, 0
        %s485 = scalar_lea.vmem %s6, %s484
        %p486 = pneg %p213
        %p487 = pneg %p210
        %p488 = scmp.lt.s32.totalorder %s34, 0
        %s489 = scalar_select %p488, %s34, 0
        %s490 = scalar_lea.vmem %s7, %s489
        %p491 = pneg %p239
        %p492 = pneg %p236
        %p493 = pneg %p265
        %p494 = pneg %p262
        %p495 = pneg %p286
        %p496 = pneg %p283
        %p497 = pneg %p312
        %p498 = pneg %p309
        %s499 = sand.u32 %s299, 1
        %s500 = scalar_lea.sflag [#allocation4], %s499
        %s501 = sand.u32 %s299, 1
        %s502 = smul.addr %s501, 128
        %s503 = scalar_lea.vmem [#allocation10], %s502
        %p504 = scmp.lt.s32.totalorder %s34, 0
        %s505 = scalar_select %p504, %s34, 0
        %s506 = scalar_lea.vmem %s2, %s505
        %p507 = scmp.lt.s32.totalorder %s34, 0
        %s508 = scalar_select %p507, %s34, 0
        %s509 = scalar_lea.vmem %s4, %s508
        %p510 = scmp.lt.s32.totalorder %s34, 0
        %s511 = scalar_select %p510, %s34, 0
        %s512 = scalar_lea.vmem %s5, %s511
        %p513 = scmp.lt.s32.totalorder %s34, 0
        %s514 = scalar_select %p513, %s34, 0
        %s515 = scalar_lea.vmem %s6, %s514
        %p516 = scmp.lt.s32.totalorder %s34, 0
        %s517 = scalar_select %p516, %s34, 0
        %s518 = scalar_lea.vmem %s7, %s517
        %s519 = smul.u32 16, %s34
        %v520 = vld [vmem:[%s440] sm:$0xff]
        %v521 = vld [vmem:[%s440 + $0x8] sm:$0xff]
        %v522 = vld [vmem:[%s440 + $0x10] sm:$0xff]
        %v523 = vld [vmem:[%s440 + $0x18] sm:$0xff]
        %v524 = vld [vmem:[%s440 + $0x20] sm:$0xff]
        %v525 = vld [vmem:[%s440 + $0x28] sm:$0xff]
        %v526 = vld [vmem:[%s440 + $0x30] sm:$0xff]
        %v527 = vld [vmem:[%s440 + $0x38] sm:$0xff]
        %v528 = vld [vmem:[%s440 + $0x40] sm:$0xff]
        %v529 = vld [vmem:[%s440 + $0x48] sm:$0xff]
        %v530 = vld [vmem:[%s440 + $0x50] sm:$0xff]
        %v531 = vld [vmem:[%s440 + $0x58] sm:$0xff]
        %v532 = vld [vmem:[%s440 + $0x60] sm:$0xff]
        %v533 = vld [vmem:[%s440 + $0x68] sm:$0xff]
        %v534 = vld [vmem:[%s440 + $0x70] sm:$0xff]
        %v535 = vld [vmem:[%s440 + $0x78] sm:$0xff]
        %v536 = vld [vmem:[#allocation5] sm:$0xff]
        %v537 = vld [vmem:[#allocation5 + $0x8] sm:$0xff]
        %v538 = vld [vmem:[#allocation5 + $0x10] sm:$0xff]
        %v539 = vld [vmem:[#allocation5 + $0x18] sm:$0xff]
        %v540 = vld [vmem:[#allocation5 + $0x20] sm:$0xff]
        %v541 = vld [vmem:[#allocation5 + $0x28] sm:$0xff]
        %v542 = vld [vmem:[#allocation5 + $0x30] sm:$0xff]
        %v543 = vld [vmem:[#allocation5 + $0x38] sm:$0xff]
        %v544 = vld [vmem:[#allocation5 + $0x40] sm:$0xff]
        %v545 = vld [vmem:[#allocation5 + $0x48] sm:$0xff]
        %v546 = vld [vmem:[#allocation5 + $0x50] sm:$0xff]
        %v547 = vld [vmem:[#allocation5 + $0x58] sm:$0xff]
        %v548 = vld [vmem:[#allocation5 + $0x60] sm:$0xff]
        %v549 = vld [vmem:[#allocation5 + $0x68] sm:$0xff]
        %v550 = vld [vmem:[#allocation5 + $0x70] sm:$0xff]
        %v551 = vld [vmem:[#allocation5 + $0x78] sm:$0xff]
        %v552 = vld [vmem:[%s506] sm:$0x1]
        %v554 = vlaneseq
        %v555 = vshrl.u32 %v554, 7
        %v556 = vsub.s32 0, %v555
        %v557 = vrot.slane %v552, %v556
        %559 = vmatprep.subr.mxu0 0.0
        %560 = vmatpush1.msra.mxu0 %v551
        %561 = vmatprep.subr.mxu0 0.0
        %562 = vmatpush1.msra.mxu0 %v550
        %563 = vmatprep.subr.mxu0 0.0
        %564 = vmatpush1.msra.mxu0 %v549
        %565 = vmatprep.subr.mxu0 0.0
        %566 = vmatpush1.msra.mxu0 %v548
        %567 = vmatprep.subr.mxu0 0.0
        %568 = vmatpush1.msra.mxu0 %v547
        %569 = vmatprep.subr.mxu0 0.0
        %570 = vmatpush1.msra.mxu0 %v546
        %571 = vmatprep.subr.mxu0 0.0
        %572 = vmatpush1.msra.mxu0 %v545
        %573 = vmatprep.subr.mxu0 0.0
        %574 = vmatpush1.msra.mxu0 %v544
        %575 = vmatprep.subr.mxu0 0.0
        %576 = vmatpush1.msra.mxu0 %v543
        %577 = vmatprep.subr.mxu0 0.0
        %578 = vmatpush1.msra.mxu0 %v542
        %579 = vmatprep.subr.mxu0 0.0
        %580 = vmatpush1.msra.mxu0 %v541
        %581 = vmatprep.subr.mxu0 0.0
        %582 = vmatpush1.msra.mxu0 %v540
        %583 = vmatprep.subr.mxu0 0.0
        %584 = vmatpush1.msra.mxu0 %v539
        %585 = vmatprep.subr.mxu0 0.0
        %586 = vmatpush1.msra.mxu0 %v538
        %587 = vmatprep.subr.mxu0 0.0
        %588 = vmatpush1.msra.mxu0 %v537
        %589 = vmatprep.subr.mxu0 0.0
        %590 = vmatpush1.msra.mxu0 %v536
        %591 = vmatprep.subr.mxu0 0.0
        %592 = vmatpush2.msra.mxu0 0.0
        %593 = vmatprep.subr.mxu0 0.0
        %594 = vmatpush2.msra.mxu0 0.0
        %595 = vmatprep.subr.mxu0 0.0
        %596 = vmatpush2.msra.mxu0 0.0
        %597 = vmatprep.subr.mxu0 0.0
        %598 = vmatpush2.msra.mxu0 0.0
        %599 = vmatprep.subr.mxu0 0.0
        %600 = vmatpush2.msra.mxu0 0.0
        %601 = vmatprep.subr.mxu0 0.0
        %602 = vmatpush2.msra.mxu0 0.0
        %603 = vmatprep.subr.mxu0 0.0
        %604 = vmatpush2.msra.mxu0 0.0
        %605 = vmatprep.subr.mxu0 0.0
        %606 = vmatpush2.msra.mxu0 0.0
        %607 = vmatprep.subr.mxu0 0.0
        %608 = vmatpush2.msra.mxu0 0.0
        %609 = vmatprep.subr.mxu0 0.0
        %610 = vmatpush2.msra.mxu0 0.0
        %611 = vmatprep.subr.mxu0 0.0
        %612 = vmatpush2.msra.mxu0 0.0
        %613 = vmatprep.subr.mxu0 0.0
        %614 = vmatpush2.msra.mxu0 0.0
        %615 = vmatprep.subr.mxu0 0.0
        %616 = vmatpush2.msra.mxu0 0.0
        %617 = vmatprep.subr.mxu0 0.0
        %618 = vmatpush2.msra.mxu0 0.0
        %619 = vmatprep.subr.mxu0 0.0
        %620 = vmatpush2.msra.mxu0 0.0
        %621 = vmatprep.subr.mxu0 0.0
        %622 = vmatpush2.msra.mxu0 0.0
        %623 = vmatprep.mubr.f32.mxu0 0.0
        %624 = vmatmul.mubr.f32.gmra.mxu0 %v520
        %v625 = vpop.f32.mrf.mxu0
        %v626 = vadd.f32 %v557, %v625
        %v627 = vpop.f32.mrf.mxu0
        %628 = vmatprep.mubr.f32.mxu0 0.0
        %629 = vmatmul.mubr.f32.gmra.mxu0 %v521
        %v630 = vpop.f32.mrf.mxu0
        %v631 = vadd.f32 %v557, %v630
        %v632 = vpop.f32.mrf.mxu0
        %633 = vmatprep.mubr.f32.mxu0 0.0
        %634 = vmatmul.mubr.f32.gmra.mxu0 %v522
        %v635 = vpop.f32.mrf.mxu0
        %v636 = vadd.f32 %v557, %v635
        %v637 = vpop.f32.mrf.mxu0
        %638 = vmatprep.mubr.f32.mxu0 0.0
        %639 = vmatmul.mubr.f32.gmra.mxu0 %v523
        %v640 = vpop.f32.mrf.mxu0
        %v641 = vadd.f32 %v557, %v640
        %v642 = vpop.f32.mrf.mxu0
        %643 = vmatprep.mubr.f32.mxu0 0.0
        %644 = vmatmul.mubr.f32.gmra.mxu0 %v524
        %v645 = vpop.f32.mrf.mxu0
        %v646 = vadd.f32 %v557, %v645
        %v647 = vpop.f32.mrf.mxu0
        %648 = vmatprep.mubr.f32.mxu0 0.0
        %649 = vmatmul.mubr.f32.gmra.mxu0 %v525
        %v650 = vpop.f32.mrf.mxu0
        %v651 = vadd.f32 %v557, %v650
        %v652 = vpop.f32.mrf.mxu0
        %653 = vmatprep.mubr.f32.mxu0 0.0
        %654 = vmatmul.mubr.f32.gmra.mxu0 %v526
        %v655 = vpop.f32.mrf.mxu0
        %v656 = vadd.f32 %v557, %v655
        %v657 = vpop.f32.mrf.mxu0
        %658 = vmatprep.mubr.f32.mxu0 0.0
        %659 = vmatmul.mubr.f32.gmra.mxu0 %v527
        %v660 = vpop.f32.mrf.mxu0
        %v661 = vadd.f32 %v557, %v660
        %v662 = vpop.f32.mrf.mxu0
        %663 = vmatprep.mubr.f32.mxu0 0.0
        %664 = vmatmul.mubr.f32.gmra.mxu0 %v528
        %v665 = vpop.f32.mrf.mxu0
        %v666 = vadd.f32 %v557, %v665
        %v667 = vpop.f32.mrf.mxu0
        %668 = vmatprep.mubr.f32.mxu0 0.0
        %669 = vmatmul.mubr.f32.gmra.mxu0 %v529
        %v670 = vpop.f32.mrf.mxu0
        %v671 = vadd.f32 %v557, %v670
        %v672 = vpop.f32.mrf.mxu0
        %673 = vmatprep.mubr.f32.mxu0 0.0
        %674 = vmatmul.mubr.f32.gmra.mxu0 %v530
        %v675 = vpop.f32.mrf.mxu0
        %v676 = vadd.f32 %v557, %v675
        %v677 = vpop.f32.mrf.mxu0
        %678 = vmatprep.mubr.f32.mxu0 0.0
        %679 = vmatmul.mubr.f32.gmra.mxu0 %v531
        %v680 = vpop.f32.mrf.mxu0
        %v681 = vadd.f32 %v557, %v680
        %v682 = vpop.f32.mrf.mxu0
        %683 = vmatprep.mubr.f32.mxu0 0.0
        %684 = vmatmul.mubr.f32.gmra.mxu0 %v532
        %v685 = vpop.f32.mrf.mxu0
        %v686 = vadd.f32 %v557, %v685
        %v687 = vpop.f32.mrf.mxu0
        %688 = vmatprep.mubr.f32.mxu0 0.0
        %689 = vmatmul.mubr.f32.gmra.mxu0 %v533
        %v690 = vpop.f32.mrf.mxu0
        %v691 = vadd.f32 %v557, %v690
        %v692 = vpop.f32.mrf.mxu0
        %693 = vmatprep.mubr.f32.mxu0 0.0
        %694 = vmatmul.mubr.f32.gmra.mxu0 %v534
        %v695 = vpop.f32.mrf.mxu0
        %v696 = vadd.f32 %v557, %v695
        %v697 = vpop.f32.mrf.mxu0
        %698 = vmatprep.mubr.f32.mxu0 0.0
        %699 = vmatmul.mubr.f32.gmra.mxu0 %v535
        %v700 = vpop.f32.mrf.mxu0
        %v701 = vadd.f32 %v557, %v700
        %v702 = vpop.f32.mrf.mxu0
        %703 = vdwg.mxu0
        %v704 = vmax.f32 %v626, 0.0
        %v705 = vmax.f32 %v631, 0.0
        %v706 = vmax.f32 %v636, 0.0
        %v707 = vmax.f32 %v641, 0.0
        %v708 = vmax.f32 %v646, 0.0
        %v709 = vmax.f32 %v651, 0.0
        %v710 = vmax.f32 %v656, 0.0
        %v711 = vmax.f32 %v661, 0.0
        %v712 = vmax.f32 %v666, 0.0
        %v713 = vmax.f32 %v671, 0.0
        %v714 = vmax.f32 %v676, 0.0
        %v715 = vmax.f32 %v681, 0.0
        %v716 = vmax.f32 %v686, 0.0
        %v717 = vmax.f32 %v691, 0.0
        %v718 = vmax.f32 %v696, 0.0
        %v719 = vmax.f32 %v701, 0.0
        %v720 = vld [vmem:[#allocation7] sm:$0xff]
        %v721 = vld [vmem:[#allocation7 + $0x8] sm:$0xff]
        %v722 = vld [vmem:[#allocation7 + $0x10] sm:$0xff]
        %v723 = vld [vmem:[#allocation7 + $0x18] sm:$0xff]
        %v724 = vld [vmem:[#allocation7 + $0x20] sm:$0xff]
        %v725 = vld [vmem:[#allocation7 + $0x28] sm:$0xff]
        %v726 = vld [vmem:[#allocation7 + $0x30] sm:$0xff]
        %v727 = vld [vmem:[#allocation7 + $0x38] sm:$0xff]
        %v728 = vld [vmem:[#allocation7 + $0x40] sm:$0xff]
        %v729 = vld [vmem:[#allocation7 + $0x48] sm:$0xff]
        %v730 = vld [vmem:[#allocation7 + $0x50] sm:$0xff]
        %v731 = vld [vmem:[#allocation7 + $0x58] sm:$0xff]
        %v732 = vld [vmem:[#allocation7 + $0x60] sm:$0xff]
        %v733 = vld [vmem:[#allocation7 + $0x68] sm:$0xff]
        %v734 = vld [vmem:[#allocation7 + $0x70] sm:$0xff]
        %v735 = vld [vmem:[#allocation7 + $0x78] sm:$0xff]
        %v736 = vld [vmem:[#allocation7 + $0x80] sm:$0xff]
        %v737 = vld [vmem:[#allocation7 + $0x88] sm:$0xff]
        %v738 = vld [vmem:[#allocation7 + $0x90] sm:$0xff]
        %v739 = vld [vmem:[#allocation7 + $0x98] sm:$0xff]
        %v740 = vld [vmem:[#allocation7 + $0xa0] sm:$0xff]
        %v741 = vld [vmem:[#allocation7 + $0xa8] sm:$0xff]
        %v742 = vld [vmem:[#allocation7 + $0xb0] sm:$0xff]
        %v743 = vld [vmem:[#allocation7 + $0xb8] sm:$0xff]
        %v744 = vld [vmem:[#allocation7 + $0xc0] sm:$0xff]
        %v745 = vld [vmem:[#allocation7 + $0xc8] sm:$0xff]
        %v746 = vld [vmem:[#allocation7 + $0xd0] sm:$0xff]
        %v747 = vld [vmem:[#allocation7 + $0xd8] sm:$0xff]
        %v748 = vld [vmem:[#allocation7 + $0xe0] sm:$0xff]
        %v749 = vld [vmem:[#allocation7 + $0xe8] sm:$0xff]
        %v750 = vld [vmem:[#allocation7 + $0xf0] sm:$0xff]
        %v751 = vld [vmem:[#allocation7 + $0xf8] sm:$0xff]
        %752 = vmatprep.subr.mxu0 0.0
        %753 = vmatpush1.msra.mxu0 %v719
        %754 = vmatprep.subr.mxu0 0.0
        %755 = vmatpush1.msra.mxu0 %v718
        %756 = vmatprep.subr.mxu0 0.0
        %757 = vmatpush1.msra.mxu0 %v717
        %758 = vmatprep.subr.mxu0 0.0
        %759 = vmatpush1.msra.mxu0 %v716
        %760 = vmatprep.subr.mxu0 0.0
        %761 = vmatpush1.msra.mxu0 %v715
        %762 = vmatprep.subr.mxu0 0.0
        %763 = vmatpush1.msra.mxu0 %v714
        %764 = vmatprep.subr.mxu0 0.0
        %765 = vmatpush1.msra.mxu0 %v713
        %766 = vmatprep.subr.mxu0 0.0
        %767 = vmatpush1.msra.mxu0 %v712
        %768 = vmatprep.subr.mxu0 0.0
        %769 = vmatpush1.msra.mxu0 %v711
        %770 = vmatprep.subr.mxu0 0.0
        %771 = vmatpush1.msra.mxu0 %v710
        %772 = vmatprep.subr.mxu0 0.0
        %773 = vmatpush1.msra.mxu0 %v709
        %774 = vmatprep.subr.mxu0 0.0
        %775 = vmatpush1.msra.mxu0 %v708
        %776 = vmatprep.subr.mxu0 0.0
        %777 = vmatpush1.msra.mxu0 %v707
        %778 = vmatprep.subr.mxu0 0.0
        %779 = vmatpush1.msra.mxu0 %v706
        %780 = vmatprep.subr.mxu0 0.0
        %781 = vmatpush1.msra.mxu0 %v705
        %782 = vmatprep.subr.mxu0 0.0
        %783 = vmatpush1.msra.mxu0 %v704
        %784 = vmatprep.subr.mxu0 0.0
        %785 = vmatpush2.msra.mxu0 0.0
        %786 = vmatprep.subr.mxu0 0.0
        %787 = vmatpush2.msra.mxu0 0.0
        %788 = vmatprep.subr.mxu0 0.0
        %789 = vmatpush2.msra.mxu0 0.0
        %790 = vmatprep.subr.mxu0 0.0
        %791 = vmatpush2.msra.mxu0 0.0
        %792 = vmatprep.subr.mxu0 0.0
        %793 = vmatpush2.msra.mxu0 0.0
        %794 = vmatprep.subr.mxu0 0.0
        %795 = vmatpush2.msra.mxu0 0.0
        %796 = vmatprep.subr.mxu0 0.0
        %797 = vmatpush2.msra.mxu0 0.0
        %798 = vmatprep.subr.mxu0 0.0
        %799 = vmatpush2.msra.mxu0 0.0
        %800 = vmatprep.subr.mxu0 0.0
        %801 = vmatpush2.msra.mxu0 0.0
        %802 = vmatprep.subr.mxu0 0.0
        %803 = vmatpush2.msra.mxu0 0.0
        %804 = vmatprep.subr.mxu0 0.0
        %805 = vmatpush2.msra.mxu0 0.0
        %806 = vmatprep.subr.mxu0 0.0
        %807 = vmatpush2.msra.mxu0 0.0
        %808 = vmatprep.subr.mxu0 0.0
        %809 = vmatpush2.msra.mxu0 0.0
        %810 = vmatprep.subr.mxu0 0.0
        %811 = vmatpush2.msra.mxu0 0.0
        %812 = vmatprep.subr.mxu0 0.0
        %813 = vmatpush2.msra.mxu0 0.0
        %814 = vmatprep.subr.mxu0 0.0
        %815 = vmatpush2.msra.mxu0 0.0
        %816 = vmatprep.mubr.f32.mxu0 0.0
        %817 = vmatmul.mubr.f32.gmra.mxu0 %v720
        %v818 = vpop.f32.mrf.mxu0
        %v819 = vadd.f32 0.0, %v818
        %v820 = vpop.f32.mrf.mxu0
        %821 = vmatprep.mubr.f32.mxu0 0.0
        %822 = vmatmul.mubr.f32.gmra.mxu0 %v721
        %v823 = vpop.f32.mrf.mxu0
        %v824 = vadd.f32 0.0, %v823
        %v825 = vpop.f32.mrf.mxu0
        %826 = vmatprep.mubr.f32.mxu0 0.0
        %827 = vmatmul.mubr.f32.gmra.mxu0 %v722
        %v828 = vpop.f32.mrf.mxu0
        %v829 = vadd.f32 0.0, %v828
        %v830 = vpop.f32.mrf.mxu0
        %831 = vmatprep.mubr.f32.mxu0 0.0
        %832 = vmatmul.mubr.f32.gmra.mxu0 %v723
        %v833 = vpop.f32.mrf.mxu0
        %v834 = vadd.f32 0.0, %v833
        %v835 = vpop.f32.mrf.mxu0
        %836 = vmatprep.mubr.f32.mxu0 0.0
        %837 = vmatmul.mubr.f32.gmra.mxu0 %v724
        %v838 = vpop.f32.mrf.mxu0
        %v839 = vadd.f32 0.0, %v838
        %v840 = vpop.f32.mrf.mxu0
        %841 = vmatprep.mubr.f32.mxu0 0.0
        %842 = vmatmul.mubr.f32.gmra.mxu0 %v725
        %v843 = vpop.f32.mrf.mxu0
        %v844 = vadd.f32 0.0, %v843
        %v845 = vpop.f32.mrf.mxu0
        %846 = vmatprep.mubr.f32.mxu0 0.0
        %847 = vmatmul.mubr.f32.gmra.mxu0 %v726
        %v848 = vpop.f32.mrf.mxu0
        %v849 = vadd.f32 0.0, %v848
        %v850 = vpop.f32.mrf.mxu0
        %851 = vmatprep.mubr.f32.mxu0 0.0
        %852 = vmatmul.mubr.f32.gmra.mxu0 %v727
        %v853 = vpop.f32.mrf.mxu0
        %v854 = vadd.f32 0.0, %v853
        %v855 = vpop.f32.mrf.mxu0
        %856 = vmatprep.mubr.f32.mxu0 0.0
        %857 = vmatmul.mubr.f32.gmra.mxu0 %v728
        %v858 = vpop.f32.mrf.mxu0
        %v859 = vadd.f32 0.0, %v858
        %v860 = vpop.f32.mrf.mxu0
        %861 = vmatprep.mubr.f32.mxu0 0.0
        %862 = vmatmul.mubr.f32.gmra.mxu0 %v729
        %v863 = vpop.f32.mrf.mxu0
        %v864 = vadd.f32 0.0, %v863
        %v865 = vpop.f32.mrf.mxu0
        %866 = vmatprep.mubr.f32.mxu0 0.0
        %867 = vmatmul.mubr.f32.gmra.mxu0 %v730
        %v868 = vpop.f32.mrf.mxu0
        %v869 = vadd.f32 0.0, %v868
        %v870 = vpop.f32.mrf.mxu0
        %871 = vmatprep.mubr.f32.mxu0 0.0
        %872 = vmatmul.mubr.f32.gmra.mxu0 %v731
        %v873 = vpop.f32.mrf.mxu0
        %v874 = vadd.f32 0.0, %v873
        %v875 = vpop.f32.mrf.mxu0
        %876 = vmatprep.mubr.f32.mxu0 0.0
        %877 = vmatmul.mubr.f32.gmra.mxu0 %v732
        %v878 = vpop.f32.mrf.mxu0
        %v879 = vadd.f32 0.0, %v878
        %v880 = vpop.f32.mrf.mxu0
        %881 = vmatprep.mubr.f32.mxu0 0.0
        %882 = vmatmul.mubr.f32.gmra.mxu0 %v733
        %v883 = vpop.f32.mrf.mxu0
        %v884 = vadd.f32 0.0, %v883
        %v885 = vpop.f32.mrf.mxu0
        %886 = vmatprep.mubr.f32.mxu0 0.0
        %887 = vmatmul.mubr.f32.gmra.mxu0 %v734
        %v888 = vpop.f32.mrf.mxu0
        %v889 = vadd.f32 0.0, %v888
        %v890 = vpop.f32.mrf.mxu0
        %891 = vmatprep.mubr.f32.mxu0 0.0
        %892 = vmatmul.mubr.f32.gmra.mxu0 %v735
        %v893 = vpop.f32.mrf.mxu0
        %v894 = vadd.f32 0.0, %v893
        %v895 = vpop.f32.mrf.mxu0
        %896 = vmatprep.mubr.f32.mxu0 0.0
        %897 = vmatmul.mubr.f32.gmra.mxu0 %v736
        %v898 = vpop.f32.mrf.mxu0
        %v899 = vadd.f32 0.0, %v898
        %v900 = vpop.f32.mrf.mxu0
        %901 = vmatprep.mubr.f32.mxu0 0.0
        %902 = vmatmul.mubr.f32.gmra.mxu0 %v737
        %v903 = vpop.f32.mrf.mxu0
        %v904 = vadd.f32 0.0, %v903
        %v905 = vpop.f32.mrf.mxu0
        %906 = vmatprep.mubr.f32.mxu0 0.0
        %907 = vmatmul.mubr.f32.gmra.mxu0 %v738
        %v908 = vpop.f32.mrf.mxu0
        %v909 = vadd.f32 0.0, %v908
        %v910 = vpop.f32.mrf.mxu0
        %911 = vmatprep.mubr.f32.mxu0 0.0
        %912 = vmatmul.mubr.f32.gmra.mxu0 %v739
        %v913 = vpop.f32.mrf.mxu0
        %v914 = vadd.f32 0.0, %v913
        %v915 = vpop.f32.mrf.mxu0
        %916 = vmatprep.mubr.f32.mxu0 0.0
        %917 = vmatmul.mubr.f32.gmra.mxu0 %v740
        %v918 = vpop.f32.mrf.mxu0
        %v919 = vadd.f32 0.0, %v918
        %v920 = vpop.f32.mrf.mxu0
        %921 = vmatprep.mubr.f32.mxu0 0.0
        %922 = vmatmul.mubr.f32.gmra.mxu0 %v741
        %v923 = vpop.f32.mrf.mxu0
        %v924 = vadd.f32 0.0, %v923
        %v925 = vpop.f32.mrf.mxu0
        %926 = vmatprep.mubr.f32.mxu0 0.0
        %927 = vmatmul.mubr.f32.gmra.mxu0 %v742
        %v928 = vpop.f32.mrf.mxu0
        %v929 = vadd.f32 0.0, %v928
        %v930 = vpop.f32.mrf.mxu0
        %931 = vmatprep.mubr.f32.mxu0 0.0
        %932 = vmatmul.mubr.f32.gmra.mxu0 %v743
        %v933 = vpop.f32.mrf.mxu0
        %v934 = vadd.f32 0.0, %v933
        %v935 = vpop.f32.mrf.mxu0
        %936 = vmatprep.mubr.f32.mxu0 0.0
        %937 = vmatmul.mubr.f32.gmra.mxu0 %v744
        %v938 = vpop.f32.mrf.mxu0
        %v939 = vadd.f32 0.0, %v938
        %v940 = vpop.f32.mrf.mxu0
        %941 = vmatprep.mubr.f32.mxu0 0.0
        %942 = vmatmul.mubr.f32.gmra.mxu0 %v745
        %v943 = vpop.f32.mrf.mxu0
        %v944 = vadd.f32 0.0, %v943
        %v945 = vpop.f32.mrf.mxu0
        %946 = vmatprep.mubr.f32.mxu0 0.0
        %947 = vmatmul.mubr.f32.gmra.mxu0 %v746
        %v948 = vpop.f32.mrf.mxu0
        %v949 = vadd.f32 0.0, %v948
        %v950 = vpop.f32.mrf.mxu0
        %951 = vmatprep.mubr.f32.mxu0 0.0
        %952 = vmatmul.mubr.f32.gmra.mxu0 %v747
        %v953 = vpop.f32.mrf.mxu0
        %v954 = vadd.f32 0.0, %v953
        %v955 = vpop.f32.mrf.mxu0
        %956 = vmatprep.mubr.f32.mxu0 0.0
        %957 = vmatmul.mubr.f32.gmra.mxu0 %v748
        %v958 = vpop.f32.mrf.mxu0
        %v959 = vadd.f32 0.0, %v958
        %v960 = vpop.f32.mrf.mxu0
        %961 = vmatprep.mubr.f32.mxu0 0.0
        %962 = vmatmul.mubr.f32.gmra.mxu0 %v749
        %v963 = vpop.f32.mrf.mxu0
        %v964 = vadd.f32 0.0, %v963
        %v965 = vpop.f32.mrf.mxu0
        %966 = vmatprep.mubr.f32.mxu0 0.0
        %967 = vmatmul.mubr.f32.gmra.mxu0 %v750
        %v968 = vpop.f32.mrf.mxu0
        %v969 = vadd.f32 0.0, %v968
        %v970 = vpop.f32.mrf.mxu0
        %971 = vmatprep.mubr.f32.mxu0 0.0
        %972 = vmatmul.mubr.f32.gmra.mxu0 %v751
        %v973 = vpop.f32.mrf.mxu0
        %v974 = vadd.f32 0.0, %v973
        %v975 = vpop.f32.mrf.mxu0
        %976 = vdwg.mxu0
        %v977 = vld [vmem:[%s509] sm:$0x1]
        %v978 = vld [vmem:[%s512] sm:$0x1]
        %v980 = vlaneseq
        %v981 = vshrl.u32 %v980, 7
        %v982 = vsub.s32 0, %v981
        %v983 = vrot.slane %v977, %v982
        %v985 = vmul.f32 %v819, %v983
        %v986 = vmul.f32 %v824, %v983
        %v987 = vmul.f32 %v829, %v983
        %v988 = vmul.f32 %v834, %v983
        %v989 = vmul.f32 %v839, %v983
        %v990 = vmul.f32 %v844, %v983
        %v991 = vmul.f32 %v849, %v983
        %v992 = vmul.f32 %v854, %v983
        %v993 = vmul.f32 %v859, %v983
        %v994 = vmul.f32 %v864, %v983
        %v995 = vmul.f32 %v869, %v983
        %v996 = vmul.f32 %v874, %v983
        %v997 = vmul.f32 %v879, %v983
        %v998 = vmul.f32 %v884, %v983
        %v999 = vmul.f32 %v889, %v983
        %v1000 = vmul.f32 %v894, %v983
        %v1002 = vlaneseq
        %v1003 = vshrl.u32 %v1002, 7
        %v1004 = vsub.s32 0, %v1003
        %v1005 = vrot.slane %v978, %v1004
        %v1007 = vmul.f32 %v899, %v1005
        %v1008 = vmul.f32 %v904, %v1005
        %v1009 = vmul.f32 %v909, %v1005
        %v1010 = vmul.f32 %v914, %v1005
        %v1011 = vmul.f32 %v919, %v1005
        %v1012 = vmul.f32 %v924, %v1005
        %v1013 = vmul.f32 %v929, %v1005
        %v1014 = vmul.f32 %v934, %v1005
        %v1015 = vmul.f32 %v939, %v1005
        %v1016 = vmul.f32 %v944, %v1005
        %v1017 = vmul.f32 %v949, %v1005
        %v1018 = vmul.f32 %v954, %v1005
        %v1019 = vmul.f32 %v959, %v1005
        %v1020 = vmul.f32 %v964, %v1005
        %v1021 = vmul.f32 %v969, %v1005
        %v1022 = vmul.f32 %v974, %v1005
        %v1023 = vadd.f32 %v985, %v1007
        %v1024 = vadd.f32 %v986, %v1008
        %v1025 = vadd.f32 %v987, %v1009
        %v1026 = vadd.f32 %v988, %v1010
        %v1027 = vadd.f32 %v989, %v1011
        %v1028 = vadd.f32 %v990, %v1012
        %v1029 = vadd.f32 %v991, %v1013
        %v1030 = vadd.f32 %v992, %v1014
        %v1031 = vadd.f32 %v993, %v1015
        %v1032 = vadd.f32 %v994, %v1016
        %v1033 = vadd.f32 %v995, %v1017
        %v1034 = vadd.f32 %v996, %v1018
        %v1035 = vadd.f32 %v997, %v1019
        %v1036 = vadd.f32 %v998, %v1020
        %v1037 = vadd.f32 %v999, %v1021
        %v1038 = vadd.f32 %v1000, %v1022
        %v1039 = vld [vmem:[%s515] sm:$0x1]
        %v1041 = vlaneseq
        %v1042 = vshrl.u32 %v1041, 7
        %v1043 = vsub.s32 0, %v1042
        %v1044 = vrot.slane %v1039, %v1043
        %v1046 = vadd.f32 %v1023, %v1044
        %v1047 = vadd.f32 %v1024, %v1044
        %v1048 = vadd.f32 %v1025, %v1044
        %v1049 = vadd.f32 %v1026, %v1044
        %v1050 = vadd.f32 %v1027, %v1044
        %v1051 = vadd.f32 %v1028, %v1044
        %v1052 = vadd.f32 %v1029, %v1044
        %v1053 = vadd.f32 %v1030, %v1044
        %v1054 = vadd.f32 %v1031, %v1044
        %v1055 = vadd.f32 %v1032, %v1044
        %v1056 = vadd.f32 %v1033, %v1044
        %v1057 = vadd.f32 %v1034, %v1044
        %v1058 = vadd.f32 %v1035, %v1044
        %v1059 = vadd.f32 %v1036, %v1044
        %v1060 = vadd.f32 %v1037, %v1044
        %v1061 = vadd.f32 %v1038, %v1044
        %v1062 = vmax.f32 %v1046, 0.0
        %v1063 = vmax.f32 %v1047, 0.0
        %v1064 = vmax.f32 %v1048, 0.0
        %v1065 = vmax.f32 %v1049, 0.0
        %v1066 = vmax.f32 %v1050, 0.0
        %v1067 = vmax.f32 %v1051, 0.0
        %v1068 = vmax.f32 %v1052, 0.0
        %v1069 = vmax.f32 %v1053, 0.0
        %v1070 = vmax.f32 %v1054, 0.0
        %v1071 = vmax.f32 %v1055, 0.0
        %v1072 = vmax.f32 %v1056, 0.0
        %v1073 = vmax.f32 %v1057, 0.0
        %v1074 = vmax.f32 %v1058, 0.0
        %v1075 = vmax.f32 %v1059, 0.0
        %v1076 = vmax.f32 %v1060, 0.0
        %v1077 = vmax.f32 %v1061, 0.0
        %v1078 = vmul.f32 %v819, %v1005
        %v1079 = vmul.f32 %v824, %v1005
        %v1080 = vmul.f32 %v829, %v1005
        %v1081 = vmul.f32 %v834, %v1005
        %v1082 = vmul.f32 %v839, %v1005
        %v1083 = vmul.f32 %v844, %v1005
        %v1084 = vmul.f32 %v849, %v1005
        %v1085 = vmul.f32 %v854, %v1005
        %v1086 = vmul.f32 %v859, %v1005
        %v1087 = vmul.f32 %v864, %v1005
        %v1088 = vmul.f32 %v869, %v1005
        %v1089 = vmul.f32 %v874, %v1005
        %v1090 = vmul.f32 %v879, %v1005
        %v1091 = vmul.f32 %v884, %v1005
        %v1092 = vmul.f32 %v889, %v1005
        %v1093 = vmul.f32 %v894, %v1005
        %v1094 = vmul.f32 %v899, %v983
        %v1095 = vmul.f32 %v904, %v983
        %v1096 = vmul.f32 %v909, %v983
        %v1097 = vmul.f32 %v914, %v983
        %v1098 = vmul.f32 %v919, %v983
        %v1099 = vmul.f32 %v924, %v983
        %v1100 = vmul.f32 %v929, %v983
        %v1101 = vmul.f32 %v934, %v983
        %v1102 = vmul.f32 %v939, %v983
        %v1103 = vmul.f32 %v944, %v983
        %v1104 = vmul.f32 %v949, %v983
        %v1105 = vmul.f32 %v954, %v983
        %v1106 = vmul.f32 %v959, %v983
        %v1107 = vmul.f32 %v964, %v983
        %v1108 = vmul.f32 %v969, %v983
        %v1109 = vmul.f32 %v974, %v983
        %v1110 = vsub.f32 %v1078, %v1094
        %v1111 = vsub.f32 %v1079, %v1095
        %v1112 = vsub.f32 %v1080, %v1096
        %v1113 = vsub.f32 %v1081, %v1097
        %v1114 = vsub.f32 %v1082, %v1098
        %v1115 = vsub.f32 %v1083, %v1099
        %v1116 = vsub.f32 %v1084, %v1100
        %v1117 = vsub.f32 %v1085, %v1101
        %v1118 = vsub.f32 %v1086, %v1102
        %v1119 = vsub.f32 %v1087, %v1103
        %v1120 = vsub.f32 %v1088, %v1104
        %v1121 = vsub.f32 %v1089, %v1105
        %v1122 = vsub.f32 %v1090, %v1106
        %v1123 = vsub.f32 %v1091, %v1107
        %v1124 = vsub.f32 %v1092, %v1108
        %v1125 = vsub.f32 %v1093, %v1109
        %v1126 = vld [vmem:[%s518] sm:$0x1]
        %v1128 = vlaneseq
        %v1129 = vshrl.u32 %v1128, 7
        %v1130 = vsub.s32 0, %v1129
        %v1131 = vrot.slane %v1126, %v1130
        %v1133 = vadd.f32 %v1110, %v1131
        %v1134 = vadd.f32 %v1111, %v1131
        %v1135 = vadd.f32 %v1112, %v1131
        %v1136 = vadd.f32 %v1113, %v1131
        %v1137 = vadd.f32 %v1114, %v1131
        %v1138 = vadd.f32 %v1115, %v1131
        %v1139 = vadd.f32 %v1116, %v1131
        %v1140 = vadd.f32 %v1117, %v1131
        %v1141 = vadd.f32 %v1118, %v1131
        %v1142 = vadd.f32 %v1119, %v1131
        %v1143 = vadd.f32 %v1120, %v1131
        %v1144 = vadd.f32 %v1121, %v1131
        %v1145 = vadd.f32 %v1122, %v1131
        %v1146 = vadd.f32 %v1123, %v1131
        %v1147 = vadd.f32 %v1124, %v1131
        %v1148 = vadd.f32 %v1125, %v1131
        %v1149 = vmax.f32 %v1133, 0.0
        %v1150 = vmax.f32 %v1134, 0.0
        %v1151 = vmax.f32 %v1135, 0.0
        %v1152 = vmax.f32 %v1136, 0.0
        %v1153 = vmax.f32 %v1137, 0.0
        %v1154 = vmax.f32 %v1138, 0.0
        %v1155 = vmax.f32 %v1139, 0.0
        %v1156 = vmax.f32 %v1140, 0.0
        %v1157 = vmax.f32 %v1141, 0.0
        %v1158 = vmax.f32 %v1142, 0.0
        %v1159 = vmax.f32 %v1143, 0.0
        %v1160 = vmax.f32 %v1144, 0.0
        %v1161 = vmax.f32 %v1145, 0.0
        %v1162 = vmax.f32 %v1146, 0.0
        %v1163 = vmax.f32 %v1147, 0.0
        %v1164 = vmax.f32 %v1148, 0.0
        %v1165 = vld [vmem:[#allocation7] sm:$0xff]
        %v1166 = vld [vmem:[#allocation7 + $0x8] sm:$0xff]
        %v1167 = vld [vmem:[#allocation7 + $0x10] sm:$0xff]
        %v1168 = vld [vmem:[#allocation7 + $0x18] sm:$0xff]
        %v1169 = vld [vmem:[#allocation7 + $0x20] sm:$0xff]
        %v1170 = vld [vmem:[#allocation7 + $0x28] sm:$0xff]
        %v1171 = vld [vmem:[#allocation7 + $0x30] sm:$0xff]
        %v1172 = vld [vmem:[#allocation7 + $0x38] sm:$0xff]
        %v1173 = vld [vmem:[#allocation7 + $0x40] sm:$0xff]
        %v1174 = vld [vmem:[#allocation7 + $0x48] sm:$0xff]
        %v1175 = vld [vmem:[#allocation7 + $0x50] sm:$0xff]
        %v1176 = vld [vmem:[#allocation7 + $0x58] sm:$0xff]
        %v1177 = vld [vmem:[#allocation7 + $0x60] sm:$0xff]
        %v1178 = vld [vmem:[#allocation7 + $0x68] sm:$0xff]
        %v1179 = vld [vmem:[#allocation7 + $0x70] sm:$0xff]
        %v1180 = vld [vmem:[#allocation7 + $0x78] sm:$0xff]
        %1181 = vmatprep.subr.mxu0 0.0
        %1182 = vmatpush1.msra.mxu0 %v1077
        %1183 = vmatprep.subr.mxu0 0.0
        %1184 = vmatpush1.msra.mxu0 %v1076
        %1185 = vmatprep.subr.mxu0 0.0
        %1186 = vmatpush1.msra.mxu0 %v1075
        %1187 = vmatprep.subr.mxu0 0.0
        %1188 = vmatpush1.msra.mxu0 %v1074
        %1189 = vmatprep.subr.mxu0 0.0
        %1190 = vmatpush1.msra.mxu0 %v1073
        %1191 = vmatprep.subr.mxu0 0.0
        %1192 = vmatpush1.msra.mxu0 %v1072
        %1193 = vmatprep.subr.mxu0 0.0
        %1194 = vmatpush1.msra.mxu0 %v1071
        %1195 = vmatprep.subr.mxu0 0.0
        %1196 = vmatpush1.msra.mxu0 %v1070
        %1197 = vmatprep.subr.mxu0 0.0
        %1198 = vmatpush1.msra.mxu0 %v1069
        %1199 = vmatprep.subr.mxu0 0.0
        %1200 = vmatpush1.msra.mxu0 %v1068
        %1201 = vmatprep.subr.mxu0 0.0
        %1202 = vmatpush1.msra.mxu0 %v1067
        %1203 = vmatprep.subr.mxu0 0.0
        %1204 = vmatpush1.msra.mxu0 %v1066
        %1205 = vmatprep.subr.mxu0 0.0
        %1206 = vmatpush1.msra.mxu0 %v1065
        %1207 = vmatprep.subr.mxu0 0.0
        %1208 = vmatpush1.msra.mxu0 %v1064
        %1209 = vmatprep.subr.mxu0 0.0
        %1210 = vmatpush1.msra.mxu0 %v1063
        %1211 = vmatprep.subr.mxu0 0.0
        %1212 = vmatpush1.msra.mxu0 %v1062
        %1213 = vmatprep.subr.mxu0 0.0
        %1214 = vmatpush2.msra.mxu0 0.0
        %1215 = vmatprep.subr.mxu0 0.0
        %1216 = vmatpush2.msra.mxu0 0.0
        %1217 = vmatprep.subr.mxu0 0.0
        %1218 = vmatpush2.msra.mxu0 0.0
        %1219 = vmatprep.subr.mxu0 0.0
        %1220 = vmatpush2.msra.mxu0 0.0
        %1221 = vmatprep.subr.mxu0 0.0
        %1222 = vmatpush2.msra.mxu0 0.0
        %1223 = vmatprep.subr.mxu0 0.0
        %1224 = vmatpush2.msra.mxu0 0.0
        %1225 = vmatprep.subr.mxu0 0.0
        %1226 = vmatpush2.msra.mxu0 0.0
        %1227 = vmatprep.subr.mxu0 0.0
        %1228 = vmatpush2.msra.mxu0 0.0
        %1229 = vmatprep.subr.mxu0 0.0
        %1230 = vmatpush2.msra.mxu0 0.0
        %1231 = vmatprep.subr.mxu0 0.0
        %1232 = vmatpush2.msra.mxu0 0.0
        %1233 = vmatprep.subr.mxu0 0.0
        %1234 = vmatpush2.msra.mxu0 0.0
        %1235 = vmatprep.subr.mxu0 0.0
        %1236 = vmatpush2.msra.mxu0 0.0
        %1237 = vmatprep.subr.mxu0 0.0
        %1238 = vmatpush2.msra.mxu0 0.0
        %1239 = vmatprep.subr.mxu0 0.0
        %1240 = vmatpush2.msra.mxu0 0.0
        %1241 = vmatprep.subr.mxu0 0.0
        %1242 = vmatpush2.msra.mxu0 0.0
        %1243 = vmatprep.subr.mxu0 0.0
        %1244 = vmatpush2.msra.mxu0 0.0
        %1245 = vmatprep.mubr.f32.mxu0 0.0
        %1246 = vmatmul.mubr.f32.gmra.mxu0 %v1165
        %v1247 = vpop.f32.mrf.mxu0
        %v1248 = vadd.f32 0.0, %v1247
        %v1249 = vpop.f32.mrf.mxu0
        %1250 = vmatprep.mubr.f32.mxu0 0.0
        %1251 = vmatmul.mubr.f32.gmra.mxu0 %v1166
        %v1252 = vpop.f32.mrf.mxu0
        %v1253 = vadd.f32 0.0, %v1252
        %v1254 = vpop.f32.mrf.mxu0
        %1255 = vmatprep.mubr.f32.mxu0 0.0
        %1256 = vmatmul.mubr.f32.gmra.mxu0 %v1167
        %v1257 = vpop.f32.mrf.mxu0
        %v1258 = vadd.f32 0.0, %v1257
        %v1259 = vpop.f32.mrf.mxu0
        %1260 = vmatprep.mubr.f32.mxu0 0.0
        %1261 = vmatmul.mubr.f32.gmra.mxu0 %v1168
        %v1262 = vpop.f32.mrf.mxu0
        %v1263 = vadd.f32 0.0, %v1262
        %v1264 = vpop.f32.mrf.mxu0
        %1265 = vmatprep.mubr.f32.mxu0 0.0
        %1266 = vmatmul.mubr.f32.gmra.mxu0 %v1169
        %v1267 = vpop.f32.mrf.mxu0
        %v1268 = vadd.f32 0.0, %v1267
        %v1269 = vpop.f32.mrf.mxu0
        %1270 = vmatprep.mubr.f32.mxu0 0.0
        %1271 = vmatmul.mubr.f32.gmra.mxu0 %v1170
        %v1272 = vpop.f32.mrf.mxu0
        %v1273 = vadd.f32 0.0, %v1272
        %v1274 = vpop.f32.mrf.mxu0
        %1275 = vmatprep.mubr.f32.mxu0 0.0
        %1276 = vmatmul.mubr.f32.gmra.mxu0 %v1171
        %v1277 = vpop.f32.mrf.mxu0
        %v1278 = vadd.f32 0.0, %v1277
        %v1279 = vpop.f32.mrf.mxu0
        %1280 = vmatprep.mubr.f32.mxu0 0.0
        %1281 = vmatmul.mubr.f32.gmra.mxu0 %v1172
        %v1282 = vpop.f32.mrf.mxu0
        %v1283 = vadd.f32 0.0, %v1282
        %v1284 = vpop.f32.mrf.mxu0
        %1285 = vmatprep.mubr.f32.mxu0 0.0
        %1286 = vmatmul.mubr.f32.gmra.mxu0 %v1173
        %v1287 = vpop.f32.mrf.mxu0
        %v1288 = vadd.f32 0.0, %v1287
        %v1289 = vpop.f32.mrf.mxu0
        %1290 = vmatprep.mubr.f32.mxu0 0.0
        %1291 = vmatmul.mubr.f32.gmra.mxu0 %v1174
        %v1292 = vpop.f32.mrf.mxu0
        %v1293 = vadd.f32 0.0, %v1292
        %v1294 = vpop.f32.mrf.mxu0
        %1295 = vmatprep.mubr.f32.mxu0 0.0
        %1296 = vmatmul.mubr.f32.gmra.mxu0 %v1175
        %v1297 = vpop.f32.mrf.mxu0
        %v1298 = vadd.f32 0.0, %v1297
        %v1299 = vpop.f32.mrf.mxu0
        %1300 = vmatprep.mubr.f32.mxu0 0.0
        %1301 = vmatmul.mubr.f32.gmra.mxu0 %v1176
        %v1302 = vpop.f32.mrf.mxu0
        %v1303 = vadd.f32 0.0, %v1302
        %v1304 = vpop.f32.mrf.mxu0
        %1305 = vmatprep.mubr.f32.mxu0 0.0
        %1306 = vmatmul.mubr.f32.gmra.mxu0 %v1177
        %v1307 = vpop.f32.mrf.mxu0
        %v1308 = vadd.f32 0.0, %v1307
        %v1309 = vpop.f32.mrf.mxu0
        %1310 = vmatprep.mubr.f32.mxu0 0.0
        %1311 = vmatmul.mubr.f32.gmra.mxu0 %v1178
        %v1312 = vpop.f32.mrf.mxu0
        %v1313 = vadd.f32 0.0, %v1312
        %v1314 = vpop.f32.mrf.mxu0
        %1315 = vmatprep.mubr.f32.mxu0 0.0
        %1316 = vmatmul.mubr.f32.gmra.mxu0 %v1179
        %v1317 = vpop.f32.mrf.mxu0
        %v1318 = vadd.f32 0.0, %v1317
        %v1319 = vpop.f32.mrf.mxu0
        %1320 = vmatprep.mubr.f32.mxu0 0.0
        %1321 = vmatmul.mubr.f32.gmra.mxu0 %v1180
        %v1322 = vpop.f32.mrf.mxu0
        %v1323 = vadd.f32 0.0, %v1322
        %v1324 = vpop.f32.mrf.mxu0
        %1325 = vdwg.mxu0
        %1326 = vmatprep.subr.mxu0 0.0
        %1327 = vmatpush1.msra.mxu0 %v1164
        %1328 = vmatprep.subr.mxu0 0.0
        %1329 = vmatpush1.msra.mxu0 %v1163
        %1330 = vmatprep.subr.mxu0 0.0
        %1331 = vmatpush1.msra.mxu0 %v1162
        %1332 = vmatprep.subr.mxu0 0.0
        %1333 = vmatpush1.msra.mxu0 %v1161
        %1334 = vmatprep.subr.mxu0 0.0
        %1335 = vmatpush1.msra.mxu0 %v1160
        %1336 = vmatprep.subr.mxu0 0.0
        %1337 = vmatpush1.msra.mxu0 %v1159
        %1338 = vmatprep.subr.mxu0 0.0
        %1339 = vmatpush1.msra.mxu0 %v1158
        %1340 = vmatprep.subr.mxu0 0.0
        %1341 = vmatpush1.msra.mxu0 %v1157
        %1342 = vmatprep.subr.mxu0 0.0
        %1343 = vmatpush1.msra.mxu0 %v1156
        %1344 = vmatprep.subr.mxu0 0.0
        %1345 = vmatpush1.msra.mxu0 %v1155
        %1346 = vmatprep.subr.mxu0 0.0
        %1347 = vmatpush1.msra.mxu0 %v1154
        %1348 = vmatprep.subr.mxu0 0.0
        %1349 = vmatpush1.msra.mxu0 %v1153
        %1350 = vmatprep.subr.mxu0 0.0
        %1351 = vmatpush1.msra.mxu0 %v1152
        %1352 = vmatprep.subr.mxu0 0.0
        %1353 = vmatpush1.msra.mxu0 %v1151
        %1354 = vmatprep.subr.mxu0 0.0
        %1355 = vmatpush1.msra.mxu0 %v1150
        %1356 = vmatprep.subr.mxu0 0.0
        %1357 = vmatpush1.msra.mxu0 %v1149
        %1358 = vmatprep.subr.mxu0 0.0
        %1359 = vmatpush2.msra.mxu0 0.0
        %1360 = vmatprep.subr.mxu0 0.0
        %1361 = vmatpush2.msra.mxu0 0.0
        %1362 = vmatprep.subr.mxu0 0.0
        %1363 = vmatpush2.msra.mxu0 0.0
        %1364 = vmatprep.subr.mxu0 0.0
        %1365 = vmatpush2.msra.mxu0 0.0
        %1366 = vmatprep.subr.mxu0 0.0
        %1367 = vmatpush2.msra.mxu0 0.0
        %1368 = vmatprep.subr.mxu0 0.0
        %1369 = vmatpush2.msra.mxu0 0.0
        %1370 = vmatprep.subr.mxu0 0.0
        %1371 = vmatpush2.msra.mxu0 0.0
        %1372 = vmatprep.subr.mxu0 0.0
        %1373 = vmatpush2.msra.mxu0 0.0
        %1374 = vmatprep.subr.mxu0 0.0
        %1375 = vmatpush2.msra.mxu0 0.0
        %1376 = vmatprep.subr.mxu0 0.0
        %1377 = vmatpush2.msra.mxu0 0.0
        %1378 = vmatprep.subr.mxu0 0.0
        %1379 = vmatpush2.msra.mxu0 0.0
        %1380 = vmatprep.subr.mxu0 0.0
        %1381 = vmatpush2.msra.mxu0 0.0
        %1382 = vmatprep.subr.mxu0 0.0
        %1383 = vmatpush2.msra.mxu0 0.0
        %1384 = vmatprep.subr.mxu0 0.0
        %1385 = vmatpush2.msra.mxu0 0.0
        %1386 = vmatprep.subr.mxu0 0.0
        %1387 = vmatpush2.msra.mxu0 0.0
        %1388 = vmatprep.subr.mxu0 0.0
        %1389 = vmatpush2.msra.mxu0 0.0
        %1390 = vmatprep.mubr.f32.mxu0 0.0
        %1391 = vmatmul.mubr.f32.gmra.mxu0 %v736
        %v1392 = vpop.f32.mrf.mxu0
        %v1393 = vadd.f32 0.0, %v1392
        %v1394 = vpop.f32.mrf.mxu0
        %1395 = vmatprep.mubr.f32.mxu0 0.0
        %1396 = vmatmul.mubr.f32.gmra.mxu0 %v737
        %v1397 = vpop.f32.mrf.mxu0
        %v1398 = vadd.f32 0.0, %v1397
        %v1399 = vpop.f32.mrf.mxu0
        %1400 = vmatprep.mubr.f32.mxu0 0.0
        %1401 = vmatmul.mubr.f32.gmra.mxu0 %v738
        %v1402 = vpop.f32.mrf.mxu0
        %v1403 = vadd.f32 0.0, %v1402
        %v1404 = vpop.f32.mrf.mxu0
        %1405 = vmatprep.mubr.f32.mxu0 0.0
        %1406 = vmatmul.mubr.f32.gmra.mxu0 %v739
        %v1407 = vpop.f32.mrf.mxu0
        %v1408 = vadd.f32 0.0, %v1407
        %v1409 = vpop.f32.mrf.mxu0
        %1410 = vmatprep.mubr.f32.mxu0 0.0
        %1411 = vmatmul.mubr.f32.gmra.mxu0 %v740
        %v1412 = vpop.f32.mrf.mxu0
        %v1413 = vadd.f32 0.0, %v1412
        %v1414 = vpop.f32.mrf.mxu0
        %1415 = vmatprep.mubr.f32.mxu0 0.0
        %1416 = vmatmul.mubr.f32.gmra.mxu0 %v741
        %v1417 = vpop.f32.mrf.mxu0
        %v1418 = vadd.f32 0.0, %v1417
        %v1419 = vpop.f32.mrf.mxu0
        %1420 = vmatprep.mubr.f32.mxu0 0.0
        %1421 = vmatmul.mubr.f32.gmra.mxu0 %v742
        %v1422 = vpop.f32.mrf.mxu0
        %v1423 = vadd.f32 0.0, %v1422
        %v1424 = vpop.f32.mrf.mxu0
        %1425 = vmatprep.mubr.f32.mxu0 0.0
        %1426 = vmatmul.mubr.f32.gmra.mxu0 %v743
        %v1427 = vpop.f32.mrf.mxu0
        %v1428 = vadd.f32 0.0, %v1427
        %v1429 = vpop.f32.mrf.mxu0
        %1430 = vmatprep.mubr.f32.mxu0 0.0
        %1431 = vmatmul.mubr.f32.gmra.mxu0 %v744
        %v1432 = vpop.f32.mrf.mxu0
        %v1433 = vadd.f32 0.0, %v1432
        %v1434 = vpop.f32.mrf.mxu0
        %1435 = vmatprep.mubr.f32.mxu0 0.0
        %1436 = vmatmul.mubr.f32.gmra.mxu0 %v745
        %v1437 = vpop.f32.mrf.mxu0
        %v1438 = vadd.f32 0.0, %v1437
        %v1439 = vpop.f32.mrf.mxu0
        %1440 = vmatprep.mubr.f32.mxu0 0.0
        %1441 = vmatmul.mubr.f32.gmra.mxu0 %v746
        %v1442 = vpop.f32.mrf.mxu0
        %v1443 = vadd.f32 0.0, %v1442
        %v1444 = vpop.f32.mrf.mxu0
        %1445 = vmatprep.mubr.f32.mxu0 0.0
        %1446 = vmatmul.mubr.f32.gmra.mxu0 %v747
        %v1447 = vpop.f32.mrf.mxu0
        %v1448 = vadd.f32 0.0, %v1447
        %v1449 = vpop.f32.mrf.mxu0
        %1450 = vmatprep.mubr.f32.mxu0 0.0
        %1451 = vmatmul.mubr.f32.gmra.mxu0 %v748
        %v1452 = vpop.f32.mrf.mxu0
        %v1453 = vadd.f32 0.0, %v1452
        %v1454 = vpop.f32.mrf.mxu0
        %1455 = vmatprep.mubr.f32.mxu0 0.0
        %1456 = vmatmul.mubr.f32.gmra.mxu0 %v749
        %v1457 = vpop.f32.mrf.mxu0
        %v1458 = vadd.f32 0.0, %v1457
        %v1459 = vpop.f32.mrf.mxu0
        %1460 = vmatprep.mubr.f32.mxu0 0.0
        %1461 = vmatmul.mubr.f32.gmra.mxu0 %v750
        %v1462 = vpop.f32.mrf.mxu0
        %v1463 = vadd.f32 0.0, %v1462
        %v1464 = vpop.f32.mrf.mxu0
        %1465 = vmatprep.mubr.f32.mxu0 0.0
        %1466 = vmatmul.mubr.f32.gmra.mxu0 %v751
        %v1467 = vpop.f32.mrf.mxu0
        %v1468 = vadd.f32 0.0, %v1467
        %v1469 = vpop.f32.mrf.mxu0
        %1470 = vdwg.mxu0
        %v1471 = vsub.f32 %v1248, %v1393
        %v1472 = vsub.f32 %v1253, %v1398
        %v1473 = vsub.f32 %v1258, %v1403
        %v1474 = vsub.f32 %v1263, %v1408
        %v1475 = vsub.f32 %v1268, %v1413
        %v1476 = vsub.f32 %v1273, %v1418
        %v1477 = vsub.f32 %v1278, %v1423
        %v1478 = vsub.f32 %v1283, %v1428
        %v1479 = vsub.f32 %v1288, %v1433
        %v1480 = vsub.f32 %v1293, %v1438
        %v1481 = vsub.f32 %v1298, %v1443
        %v1482 = vsub.f32 %v1303, %v1448
        %v1483 = vsub.f32 %v1308, %v1453
        %v1484 = vsub.f32 %v1313, %v1458
        %v1485 = vsub.f32 %v1318, %v1463
        %v1486 = vsub.f32 %v1323, %v1468
        %v1487 = vld [vmem:[#allocation8] sm:$0xff]
        %v1488 = vld [vmem:[#allocation8 + $0x8] sm:$0xff]
        %v1489 = vld [vmem:[#allocation8 + $0x10] sm:$0xff]
        %v1490 = vld [vmem:[#allocation8 + $0x18] sm:$0xff]
        %v1491 = vld [vmem:[#allocation8 + $0x20] sm:$0xff]
        %v1492 = vld [vmem:[#allocation8 + $0x28] sm:$0xff]
        %v1493 = vld [vmem:[#allocation8 + $0x30] sm:$0xff]
        %v1494 = vld [vmem:[#allocation8 + $0x38] sm:$0xff]
        %v1495 = vld [vmem:[#allocation8 + $0x40] sm:$0xff]
        %v1496 = vld [vmem:[#allocation8 + $0x48] sm:$0xff]
        %v1497 = vld [vmem:[#allocation8 + $0x50] sm:$0xff]
        %v1498 = vld [vmem:[#allocation8 + $0x58] sm:$0xff]
        %v1499 = vld [vmem:[#allocation8 + $0x60] sm:$0xff]
        %v1500 = vld [vmem:[#allocation8 + $0x68] sm:$0xff]
        %v1501 = vld [vmem:[#allocation8 + $0x70] sm:$0xff]
        %v1502 = vld [vmem:[#allocation8 + $0x78] sm:$0xff]
        %v1503 = vld [vmem:[%s9] sm:$0x1]
        %v1505 = vlaneseq
        %v1506 = vshrl.u32 %v1505, 7
        %v1507 = vsub.s32 0, %v1506
        %v1508 = vrot.slane %v1503, %v1507
        %1510 = vmatprep.subr.mxu0 0.0
        %1511 = vmatpush1.msra.mxu0 %v1502
        %1512 = vmatprep.subr.mxu0 0.0
        %1513 = vmatpush1.msra.mxu0 %v1501
        %1514 = vmatprep.subr.mxu0 0.0
        %1515 = vmatpush1.msra.mxu0 %v1500
        %1516 = vmatprep.subr.mxu0 0.0
        %1517 = vmatpush1.msra.mxu0 %v1499
        %1518 = vmatprep.subr.mxu0 0.0
        %1519 = vmatpush1.msra.mxu0 %v1498
        %1520 = vmatprep.subr.mxu0 0.0
        %1521 = vmatpush1.msra.mxu0 %v1497
        %1522 = vmatprep.subr.mxu0 0.0
        %1523 = vmatpush1.msra.mxu0 %v1496
        %1524 = vmatprep.subr.mxu0 0.0
        %1525 = vmatpush1.msra.mxu0 %v1495
        %1526 = vmatprep.subr.mxu0 0.0
        %1527 = vmatpush1.msra.mxu0 %v1494
        %1528 = vmatprep.subr.mxu0 0.0
        %1529 = vmatpush1.msra.mxu0 %v1493
        %1530 = vmatprep.subr.mxu0 0.0
        %1531 = vmatpush1.msra.mxu0 %v1492
        %1532 = vmatprep.subr.mxu0 0.0
        %1533 = vmatpush1.msra.mxu0 %v1491
        %1534 = vmatprep.subr.mxu0 0.0
        %1535 = vmatpush1.msra.mxu0 %v1490
        %1536 = vmatprep.subr.mxu0 0.0
        %1537 = vmatpush1.msra.mxu0 %v1489
        %1538 = vmatprep.subr.mxu0 0.0
        %1539 = vmatpush1.msra.mxu0 %v1488
        %1540 = vmatprep.subr.mxu0 0.0
        %1541 = vmatpush1.msra.mxu0 %v1487
        %1542 = vmatprep.subr.mxu0 0.0
        %1543 = vmatpush2.msra.mxu0 0.0
        %1544 = vmatprep.subr.mxu0 0.0
        %1545 = vmatpush2.msra.mxu0 0.0
        %1546 = vmatprep.subr.mxu0 0.0
        %1547 = vmatpush2.msra.mxu0 0.0
        %1548 = vmatprep.subr.mxu0 0.0
        %1549 = vmatpush2.msra.mxu0 0.0
        %1550 = vmatprep.subr.mxu0 0.0
        %1551 = vmatpush2.msra.mxu0 0.0
        %1552 = vmatprep.subr.mxu0 0.0
        %1553 = vmatpush2.msra.mxu0 0.0
        %1554 = vmatprep.subr.mxu0 0.0
        %1555 = vmatpush2.msra.mxu0 0.0
        %1556 = vmatprep.subr.mxu0 0.0
        %1557 = vmatpush2.msra.mxu0 0.0
        %1558 = vmatprep.subr.mxu0 0.0
        %1559 = vmatpush2.msra.mxu0 0.0
        %1560 = vmatprep.subr.mxu0 0.0
        %1561 = vmatpush2.msra.mxu0 0.0
        %1562 = vmatprep.subr.mxu0 0.0
        %1563 = vmatpush2.msra.mxu0 0.0
        %1564 = vmatprep.subr.mxu0 0.0
        %1565 = vmatpush2.msra.mxu0 0.0
        %1566 = vmatprep.subr.mxu0 0.0
        %1567 = vmatpush2.msra.mxu0 0.0
        %1568 = vmatprep.subr.mxu0 0.0
        %1569 = vmatpush2.msra.mxu0 0.0
        %1570 = vmatprep.subr.mxu0 0.0
        %1571 = vmatpush2.msra.mxu0 0.0
        %1572 = vmatprep.subr.mxu0 0.0
        %1573 = vmatpush2.msra.mxu0 0.0
        %1574 = vmatprep.mubr.f32.mxu0 0.0
        %1575 = vmatmul.mubr.f32.gmra.mxu0 %v1471
        %v1576 = vpop.f32.mrf.mxu0
        %v1577 = vadd.f32 %v1508, %v1576
        %v1578 = vpop.f32.mrf.mxu0
        %1579 = vmatprep.mubr.f32.mxu0 0.0
        %1580 = vmatmul.mubr.f32.gmra.mxu0 %v1472
        %v1581 = vpop.f32.mrf.mxu0
        %v1582 = vadd.f32 %v1508, %v1581
        %v1583 = vpop.f32.mrf.mxu0
        %1584 = vmatprep.mubr.f32.mxu0 0.0
        %1585 = vmatmul.mubr.f32.gmra.mxu0 %v1473
        %v1586 = vpop.f32.mrf.mxu0
        %v1587 = vadd.f32 %v1508, %v1586
        %v1588 = vpop.f32.mrf.mxu0
        %1589 = vmatprep.mubr.f32.mxu0 0.0
        %1590 = vmatmul.mubr.f32.gmra.mxu0 %v1474
        %v1591 = vpop.f32.mrf.mxu0
        %v1592 = vadd.f32 %v1508, %v1591
        %v1593 = vpop.f32.mrf.mxu0
        %1594 = vmatprep.mubr.f32.mxu0 0.0
        %1595 = vmatmul.mubr.f32.gmra.mxu0 %v1475
        %v1596 = vpop.f32.mrf.mxu0
        %v1597 = vadd.f32 %v1508, %v1596
        %v1598 = vpop.f32.mrf.mxu0
        %1599 = vmatprep.mubr.f32.mxu0 0.0
        %1600 = vmatmul.mubr.f32.gmra.mxu0 %v1476
        %v1601 = vpop.f32.mrf.mxu0
        %v1602 = vadd.f32 %v1508, %v1601
        %v1603 = vpop.f32.mrf.mxu0
        %1604 = vmatprep.mubr.f32.mxu0 0.0
        %1605 = vmatmul.mubr.f32.gmra.mxu0 %v1477
        %v1606 = vpop.f32.mrf.mxu0
        %v1607 = vadd.f32 %v1508, %v1606
        %v1608 = vpop.f32.mrf.mxu0
        %1609 = vmatprep.mubr.f32.mxu0 0.0
        %1610 = vmatmul.mubr.f32.gmra.mxu0 %v1478
        %v1611 = vpop.f32.mrf.mxu0
        %v1612 = vadd.f32 %v1508, %v1611
        %v1613 = vpop.f32.mrf.mxu0
        %1614 = vmatprep.mubr.f32.mxu0 0.0
        %1615 = vmatmul.mubr.f32.gmra.mxu0 %v1479
        %v1616 = vpop.f32.mrf.mxu0
        %v1617 = vadd.f32 %v1508, %v1616
        %v1618 = vpop.f32.mrf.mxu0
        %1619 = vmatprep.mubr.f32.mxu0 0.0
        %1620 = vmatmul.mubr.f32.gmra.mxu0 %v1480
        %v1621 = vpop.f32.mrf.mxu0
        %v1622 = vadd.f32 %v1508, %v1621
        %v1623 = vpop.f32.mrf.mxu0
        %1624 = vmatprep.mubr.f32.mxu0 0.0
        %1625 = vmatmul.mubr.f32.gmra.mxu0 %v1481
        %v1626 = vpop.f32.mrf.mxu0
        %v1627 = vadd.f32 %v1508, %v1626
        %v1628 = vpop.f32.mrf.mxu0
        %1629 = vmatprep.mubr.f32.mxu0 0.0
        %1630 = vmatmul.mubr.f32.gmra.mxu0 %v1482
        %v1631 = vpop.f32.mrf.mxu0
        %v1632 = vadd.f32 %v1508, %v1631
        %v1633 = vpop.f32.mrf.mxu0
        %1634 = vmatprep.mubr.f32.mxu0 0.0
        %1635 = vmatmul.mubr.f32.gmra.mxu0 %v1483
        %v1636 = vpop.f32.mrf.mxu0
        %v1637 = vadd.f32 %v1508, %v1636
        %v1638 = vpop.f32.mrf.mxu0
        %1639 = vmatprep.mubr.f32.mxu0 0.0
        %1640 = vmatmul.mubr.f32.gmra.mxu0 %v1484
        %v1641 = vpop.f32.mrf.mxu0
        %v1642 = vadd.f32 %v1508, %v1641
        %v1643 = vpop.f32.mrf.mxu0
        %1644 = vmatprep.mubr.f32.mxu0 0.0
        %1645 = vmatmul.mubr.f32.gmra.mxu0 %v1485
        %v1646 = vpop.f32.mrf.mxu0
        %v1647 = vadd.f32 %v1508, %v1646
        %v1648 = vpop.f32.mrf.mxu0
        %1649 = vmatprep.mubr.f32.mxu0 0.0
        %1650 = vmatmul.mubr.f32.gmra.mxu0 %v1486
        %v1651 = vpop.f32.mrf.mxu0
        %v1652 = vadd.f32 %v1508, %v1651
        %v1653 = vpop.f32.mrf.mxu0
        %1654 = vdwg.mxu0
        %1655 = vst [vmem:[%s503] sm:$0xff] %v1577
        %1656 = vst [vmem:[%s503 + $0x8] sm:$0xff] %v1582
        %1657 = vst [vmem:[%s503 + $0x10] sm:$0xff] %v1587
        %1658 = vst [vmem:[%s503 + $0x18] sm:$0xff] %v1592
        %1659 = vst [vmem:[%s503 + $0x20] sm:$0xff] %v1597
        %1660 = vst [vmem:[%s503 + $0x28] sm:$0xff] %v1602
        %1661 = vst [vmem:[%s503 + $0x30] sm:$0xff] %v1607
        %1662 = vst [vmem:[%s503 + $0x38] sm:$0xff] %v1612
        %1663 = vst [vmem:[%s503 + $0x40] sm:$0xff] %v1617
        %1664 = vst [vmem:[%s503 + $0x48] sm:$0xff] %v1622
        %1665 = vst [vmem:[%s503 + $0x50] sm:$0xff] %v1627
        %1666 = vst [vmem:[%s503 + $0x58] sm:$0xff] %v1632
        %1667 = vst [vmem:[%s503 + $0x60] sm:$0xff] %v1637
        %1668 = vst [vmem:[%s503 + $0x68] sm:$0xff] %v1642
        %1669 = vst [vmem:[%s503 + $0x70] sm:$0xff] %v1647
        %1670 = vst [vmem:[%s503 + $0x78] sm:$0xff] %v1652
        %s1671 = sand.u32 %s299, 1
        %s1672 = scalar_lea.sflag [#allocation4], %s1671
        %s1673 = sand.u32 %s299, 1
        %s1674 = smul.addr %s1673, 128
        %s1675 = scalar_lea.vmem [#allocation10], %s1674
        // Predicated region
        $region77: #{tpu_custom_call.1} parent=59 // pred_check
          %p1676 = pneg %p309
        $region78: #{tpu_custom_call.1} parent=59 // pred_check_branch
          %1678 = sbr.rel (%p1676) target = $region80
        $region79: #{tpu_custom_call.1} parent=59 // pred_region
          %s1680 = ssub.s32 2048, 2048
          %1681 = vsyncadd %s1672, %s1680
          %s1682 = smul.addr %s33, 16
          %s1683 = smul.addr %s1682, 128
          %s1684 = scalar_lea.hbm %s10, %s1683
          %s1685 = sshll.u32 %s1675, 4
          %s1686 = int_to_ptr.vmem [resolvable:$true] %s1685
          %1691 = dma.vmem_to_hbm [thread:$0]  %s1686, 2048, %s1684, %s1672, 128, 128, 8
        $region80: #{tpu_custom_call.1} parent=59 // pred_fallthru
          _
      $region60: #{tpu_custom_call.1} parent=5 // pred_fallthru
        _
      %p1692 = scmp.le.s32.totalorder 2, %s24
      // Predicated region
      $region81: #{tpu_custom_call.1} parent=5 // pred_check
        %p1693 = pneg %p1692
      $region82: #{tpu_custom_call.1} parent=5 // pred_check_branch
        %1695 = sbr.rel (%p1693) target = $region84
      $region83: #{tpu_custom_call.1} parent=5 // pred_region
        %s1696 = ssub.s32 %s24, 2
        // Predicated region
        $region85: #{tpu_custom_call.1} parent=83 // pred_check
          %p1697 = pneg %p315
        $region86: #{tpu_custom_call.1} parent=83 // pred_check_branch
          %1699 = sbr.rel (%p1697) target = $region88
        $region87: #{tpu_custom_call.1} parent=83 // pred_region
          %s1700 = sand.u32 %s300, 1
          %s1701 = scalar_lea.sflag [#allocation4], %s1700
          %s1702 = sand.u32 %s300, 1
          %s1703 = smul.addr %s1702, 128
          %s1704 = scalar_lea.vmem [#allocation10], %s1703
          %1705 = dma.done %s1701, 2048
        $region88: #{tpu_custom_call.1} parent=83 // pred_fallthru
          _
      $region84: #{tpu_custom_call.1} parent=5 // pred_fallthru
        _
    $region6: #{tpu_custom_call.1} parent=1 // loop_footer
      %s28 = sadd.s32 1, %s24
    $region7: #{tpu_custom_call.1} parent=1 // loop_footer_branch
      %23 = sbr.rel target = $region3
    $region8: #{tpu_custom_call.1} parent=1 // loop_exit
      _
    %1706 = vsyncpa [#allocation3], 1
    %s1707 = scalar_lea.sflag [#allocation3], 1
    %1708 = vsyncpa %s1707, 1
    %1709 = vsyncpa [#allocation6], 1
    %1710 = vsyncpa [#allocation9], 1
    %1711 = vsyncpa [#allocation4], 1
    %s1712 = scalar_lea.sflag [#allocation4], 1
    %1713 = vsyncpa %s1712, 1

// kernel: tpu_custom_call.1
$region0: #{tpu_custom_call.1}
  #allocation0 [shape = 'u32[]', space=smem, size = 0x4, offset = 0x4, fixed_abs, tag = 'smem constant byte address 0x4 - core index']
  #allocation1 [shape = 'u32[144,128]{1,0:T(1,128)}', space=vmem, size = 0x12000, scoped, tag = 'internal scratch']
  %s0 = inlined_call_operand.hbm [shape: f32[2,128,128], index: 0, kind: input, shape index: {}]
  %s1 = inlined_call_operand.hbm [shape: f32[128,128], index: 1, kind: input, shape index: {}]
  %s2 = inlined_call_operand.vmem [shape: f32[1,128], index: 2, kind: input, shape index: {}]
  %s3 = inlined_call_operand.hbm [shape: f32[256,128], index: 3, kind: input, shape index: {}]
  %s4 = inlined_call_operand.vmem [shape: f32[1,128], index: 4, kind: input, shape index: {}]
  %s5 = inlined_call_operand.vmem [shape: f32[1,128], index: 5, kind: input, shape index: {}]
  %s6 = inlined_call_operand.vmem [shape: f32[1,128], index: 6, kind: input, shape index: {}]
  %s7 = inlined_call_operand.vmem [shape: f32[1,128], index: 7, kind: input, shape index: {}]
  %s8 = inlined_call_operand.hbm [shape: f32[128,128], index: 8, kind: input, shape index: {}]
  %s9 = inlined_call_operand.vmem [shape: f32[1,128], index: 9, kind: input, shape index: {}]
  %s10 = inlined_call_operand.hbm [shape: f32[2,128,128], index: 10, kind: output, shape index: {}]
  %s11 = sld [smem:[#allocation0]]
  $region89: #{tpu_custom_call.1} parent=0
    _
  %s13 = ssub.s32 1, %s11
  %s14 = scalar_select 0, %s13, %s11
  $region1: #{tpu_custom_call.1} parent=0
    #allocation2 [shape = 'u8[131072]{0}', space=vmem, size = 0x20000, scoped, tag = 'input window, operand 0']
    #allocation3 [shape = 's32[2]{0}', space=sflag, size = 0x8, scoped, tag = 'scoped memory for tpu_custom_call.1']
    #allocation4 [shape = 's32[2]{0}', space=sflag, size = 0x8, scoped, tag = 'scoped memory for tpu_custom_call.1']
    #allocation5 [shape = 'u8[65536]{0}', space=vmem, size = 0x10000, scoped, tag = 'input window, operand 1, single buffered']
    #allocation6 [shape = 's32[1]{0}', space=sflag, size = 0x4, scoped, tag = 'scoped memory for tpu_custom_call.1']
    #allocation7 [shape = 'u8[131072]{0}', space=vmem, size = 0x20000, scoped, tag = 'input window, operand 3, single buffered']
    #allocation8 [shape = 'u8[65536]{0}', space=vmem, size = 0x10000, scoped, tag = 'input window, operand 8, single buffered']
    #allocation9 [shape = 's32[1]{0}', space=sflag, size = 0x4, scoped, tag = 'scoped memory for tpu_custom_call.1']
    #allocation10 [shape = 'u8[131072]{0}', space=vmem, size = 0x20000, scoped, tag = 'output window, operand 0']
    %15 = vsyncpa [#allocation3], 0
    %s16 = scalar_lea.sflag [#allocation3], 1
    %17 = vsyncpa %s16, 0
    %18 = vsyncpa [#allocation6], 0
    %19 = vsyncpa [#allocation9], 0
    %20 = vsyncpa [#allocation4], 0
    %s21 = scalar_lea.sflag [#allocation4], 1
    %22 = vsyncpa %s21, 0
    loop: start=0, step=1, limit=4
    $region2: #{tpu_custom_call.1} parent=1 // loop_pre_header
      _
    $region3: #{tpu_custom_call.1} parent=1 // loop_header
      %s24 = sphi 0, %s28
      %p25 = scmp.ge.s32.totalorder %s24, 4
      %s31 = sphi 0, %s43
      %s32 = sphi 0, %s39
      %s33 = sphi 0, %s31
      %s34 = sphi 0, %s32
      %s35 = sphi 0, %s33
      %s36 = sphi 0, %s34
      %s46 = sphi 0, %s48
      %s49 = sphi 0, %s46
      %s50 = sphi 0, %s49
      %s66 = sphi 0, %s50
      %s72 = sphi 0, %s74
      %s75 = sphi 0, %s72
      %s76 = sphi 0, %s75
      %s92 = sphi 0, %s76
      %s98 = sphi 0, %s100
      %s101 = sphi 0, %s98
      %s102 = sphi 0, %s101
      %s118 = sphi 0, %s102
      %s122 = sphi 0, %s122
      %s124 = sphi 0, %s122
      %s125 = sphi 0, %s124
      %s139 = sphi 0, %s125
      %s145 = sphi 0, %s147
      %s148 = sphi 0, %s145
      %s149 = sphi 0, %s148
      %s165 = sphi 0, %s149
      %s171 = sphi 0, %s173
      %s174 = sphi 0, %s171
      %s175 = sphi 0, %s174
      %s191 = sphi 0, %s175
      %s197 = sphi 0, %s199
      %s200 = sphi 0, %s197
      %s201 = sphi 0, %s200
      %s217 = sphi 0, %s201
      %s223 = sphi 0, %s225
      %s226 = sphi 0, %s223
      %s227 = sphi 0, %s226
      %s243 = sphi 0, %s227
      %s249 = sphi 0, %s251
      %s252 = sphi 0, %s249
      %s253 = sphi 0, %s252
      %s269 = sphi 0, %s253
      %s273 = sphi 0, %s273
      %s275 = sphi 0, %s273
      %s276 = sphi 0, %s275
      %s290 = sphi 0, %s276
      %s296 = sphi 0, %s298
      %s299 = sphi 0, %s296
      %s300 = sphi 0, %s299
      %s316 = sphi 0, %s300
    $region4: #{tpu_custom_call.1} parent=1 // loop_header_branch
      %27 = sbr.rel (%p25) target = $region8
    $region5: #{tpu_custom_call.1} parent=1 // loop_body
      %s29 = ssub.s32 %s24, 1
      %s30 = ssub.s32 %s24, 2
      %s37 = sadd.s32 1, %s32
      %p38 = scmp.ge.s32.totalorder %s37, 1
      %s39 = scalar_select %p38, 0, %s37
      %s40 = sadd.s32 1, %s31
      %s41 = scalar_select %p38, %s40, %s31
      %p42 = scmp.ge.s32.totalorder %s41, 2
      %s43 = scalar_select %p42, 0, %s41
      %s44 = ssub.s32 %s31, %s43
      %p45 = scmp.eq.s32.totalorder %s44, 0
      %s47 = sadd.s32 %s46, 1
      %s48 = scalar_select %p45, %s46, %s47
      %p51 = pneg %p45
      %p52 = scmp.eq.s32.totalorder %s24, 1
      %p53 = por %p51, %p52
      %p54 = scmp.ne.s32.totalorder %s46, %s49
      %p55 = scmp.eq.s32.totalorder %s24, 0
      %p56 = por %p54, %p55
      %p57 = scmp.ne.s32.totalorder %s46, %s49
      %p58 = scmp.eq.s32.totalorder %s29, 1
      %p59 = por %p57, %p58
      %p60 = scmp.ne.s32.totalorder %s49, %s50
      %p61 = scmp.eq.s32.totalorder %s29, 0
      %p62 = por %p60, %p61
      %p63 = scmp.ne.s32.totalorder %s49, %s50
      %p64 = scmp.eq.s32.totalorder %s30, 1
      %p65 = por %p63, %p64
      %p67 = scmp.ne.s32.totalorder %s50, %s66
      %p68 = scmp.eq.s32.totalorder %s30, 0
      %p69 = por %p67, %p68
      %s70 = ssub.s32 %s32, %s39
      %p71 = scmp.eq.s32.totalorder %s70, 0
      %s73 = sadd.s32 %s72, 1
      %s74 = scalar_select %p71, %s72, %s73
      %p77 = pneg %p71
      %p78 = scmp.eq.s32.totalorder %s24, 1
      %p79 = por %p77, %p78
      %p80 = scmp.ne.s32.totalorder %s72, %s75
      %p81 = scmp.eq.s32.totalorder %s24, 0
      %p82 = por %p80, %p81
      %p83 = scmp.ne.s32.totalorder %s72, %s75
      %p84 = scmp.eq.s32.totalorder %s29, 1
      %p85 = por %p83, %p84
      %p86 = scmp.ne.s32.totalorder %s75, %s76
      %p87 = scmp.eq.s32.totalorder %s29, 0
      %p88 = por %p86, %p87
      %p89 = scmp.ne.s32.totalorder %s75, %s76
      %p90 = scmp.eq.s32.totalorder %s30, 1
      %p91 = por %p89, %p90
      %p93 = scmp.ne.s32.totalorder %s76, %s92
      %p94 = scmp.eq.s32.totalorder %s30, 0
      %p95 = por %p93, %p94
      %s96 = ssub.s32 %s32, %s39
      %p97 = scmp.eq.s32.totalorder %s96, 0
      %s99 = sadd.s32 %s98, 1
      %s100 = scalar_select %p97, %s98, %s99
      %p103 = pneg %p97
      %p104 = scmp.eq.s32.totalorder %s24, 1
      %p105 = por %p103, %p104
      %p106 = scmp.ne.s32.totalorder %s98, %s101
      %p107 = scmp.eq.s32.totalorder %s24, 0
      %p108 = por %p106, %p107
      %p109 = scmp.ne.s32.totalorder %s98, %s101
      %p110 = scmp.eq.s32.totalorder %s29, 1
      %p111 = por %p109, %p110
      %p112 = scmp.ne.s32.totalorder %s101, %s102
      %p113 = scmp.eq.s32.totalorder %s29, 0
      %p114 = por %p112, %p113
      %p115 = scmp.ne.s32.totalorder %s101, %s102
      %p116 = scmp.eq.s32.totalorder %s30, 1
      %p117 = por %p115, %p116
      %p119 = scmp.ne.s32.totalorder %s102, %s118
      %p120 = scmp.eq.s32.totalorder %s30, 0
      %p121 = por %p119, %p120
      %s123 = sadd.s32 %s122, 1
      %p126 = scmp.eq.s32.totalorder %s24, 1
      %p127 = scmp.ne.s32.totalorder %s122, %s124
      %p128 = scmp.eq.s32.totalorder %s24, 0
      %p129 = por %p127, %p128
      %p130 = scmp.ne.s32.totalorder %s122, %s124
      %p131 = scmp.eq.s32.totalorder %s29, 1
      %p132 = por %p130, %p131
      %p133 = scmp.ne.s32.totalorder %s124, %s125
      %p134 = scmp.eq.s32.totalorder %s29, 0
      %p135 = por %p133, %p134
      %p136 = scmp.ne.s32.totalorder %s124, %s125
      %p137 = scmp.eq.s32.totalorder %s30, 1
      %p138 = por %p136, %p137
      %p140 = scmp.ne.s32.totalorder %s125, %s139
      %p141 = scmp.eq.s32.totalorder %s30, 0
      %p142 = por %p140, %p141
      %s143 = ssub.s32 %s32, %s39
      %p144 = scmp.eq.s32.totalorder %s143, 0
      %s146 = sadd.s32 %s145, 1
      %s147 = scalar_select %p144, %s145, %s146
      %p150 = pneg %p144
      %p151 = scmp.eq.s32.totalorder %s24, 1
      %p152 = por %p150, %p151
      %p153 = scmp.ne.s32.totalorder %s145, %s148
      %p154 = scmp.eq.s32.totalorder %s24, 0
      %p155 = por %p153, %p154
      %p156 = scmp.ne.s32.totalorder %s145, %s148
      %p157 = scmp.eq.s32.totalorder %s29, 1
      %p158 = por %p156, %p157
      %p159 = scmp.ne.s32.totalorder %s148, %s149
      %p160 = scmp.eq.s32.totalorder %s29, 0
      %p161 = por %p159, %p160
      %p162 = scmp.ne.s32.totalorder %s148, %s149
      %p163 = scmp.eq.s32.totalorder %s30, 1
      %p164 = por %p162, %p163
      %p166 = scmp.ne.s32.totalorder %s149, %s165
      %p167 = scmp.eq.s32.totalorder %s30, 0
      %p168 = por %p166, %p167
      %s169 = ssub.s32 %s32, %s39
      %p170 = scmp.eq.s32.totalorder %s169, 0
      %s172 = sadd.s32 %s171, 1
      %s173 = scalar_select %p170, %s171, %s172
      %p176 = pneg %p170
      %p177 = scmp.eq.s32.totalorder %s24, 1
      %p178 = por %p176, %p177
      %p179 = scmp.ne.s32.totalorder %s171, %s174
      %p180 = scmp.eq.s32.totalorder %s24, 0
      %p181 = por %p179, %p180
      %p182 = scmp.ne.s32.totalorder %s171, %s174
      %p183 = scmp.eq.s32.totalorder %s29, 1
      %p184 = por %p182, %p183
      %p185 = scmp.ne.s32.totalorder %s174, %s175
      %p186 = scmp.eq.s32.totalorder %s29, 0
      %p187 = por %p185, %p186
      %p188 = scmp.ne.s32.totalorder %s174, %s175
      %p189 = scmp.eq.s32.totalorder %s30, 1
      %p190 = por %p188, %p189
      %p192 = scmp.ne.s32.totalorder %s175, %s191
      %p193 = scmp.eq.s32.totalorder %s30, 0
      %p194 = por %p192, %p193
      %s195 = ssub.s32 %s32, %s39
      %p196 = scmp.eq.s32.totalorder %s195, 0
      %s198 = sadd.s32 %s197, 1
      %s199 = scalar_select %p196, %s197, %s198
      %p202 = pneg %p196
      %p203 = scmp.eq.s32.totalorder %s24, 1
      %p204 = por %p202, %p203
      %p205 = scmp.ne.s32.totalorder %s197, %s200
      %p206 = scmp.eq.s32.totalorder %s24, 0
      %p207 = por %p205, %p206
      %p208 = scmp.ne.s32.totalorder %s197, %s200
      %p209 = scmp.eq.s32.totalorder %s29, 1
      %p210 = por %p208, %p209
      %p211 = scmp.ne.s32.totalorder %s200, %s201
      %p212 = scmp.eq.s32.totalorder %s29, 0
      %p213 = por %p211, %p212
      %p214 = scmp.ne.s32.totalorder %s200, %s201
      %p215 = scmp.eq.s32.totalorder %s30, 1
      %p216 = por %p214, %p215
      %p218 = scmp.ne.s32.totalorder %s201, %s217
      %p219 = scmp.eq.s32.totalorder %s30, 0
      %p220 = por %p218, %p219
      %s221 = ssub.s32 %s32, %s39
      %p222 = scmp.eq.s32.totalorder %s221, 0
      %s224 = sadd.s32 %s223, 1
      %s225 = scalar_select %p222, %s223, %s224
      %p228 = pneg %p222
      %p229 = scmp.eq.s32.totalorder %s24, 1
      %p230 = por %p228, %p229
      %p231 = scmp.ne.s32.totalorder %s223, %s226
      %p232 = scmp.eq.s32.totalorder %s24, 0
      %p233 = por %p231, %p232
      %p234 = scmp.ne.s32.totalorder %s223, %s226
      %p235 = scmp.eq.s32.totalorder %s29, 1
      %p236 = por %p234, %p235
      %p237 = scmp.ne.s32.totalorder %s226, %s227
      %p238 = scmp.eq.s32.totalorder %s29, 0
      %p239 = por %p237, %p238
      %p240 = scmp.ne.s32.totalorder %s226, %s227
      %p241 = scmp.eq.s32.totalorder %s30, 1
      %p242 = por %p240, %p241
      %p244 = scmp.ne.s32.totalorder %s227, %s243
      %p245 = scmp.eq.s32.totalorder %s30, 0
      %p246 = por %p244, %p245
      %s247 = ssub.s32 %s32, %s39
      %p248 = scmp.eq.s32.totalorder %s247, 0
      %s250 = sadd.s32 %s249, 1
      %s251 = scalar_select %p248, %s249, %s250
      %p254 = pneg %p248
      %p255 = scmp.eq.s32.totalorder %s24, 1
      %p256 = por %p254, %p255
      %p257 = scmp.ne.s32.totalorder %s249, %s252
      %p258 = scmp.eq.s32.totalorder %s24, 0
      %p259 = por %p257, %p258
      %p260 = scmp.ne.s32.totalorder %s249, %s252
      %p261 = scmp.eq.s32.totalorder %s29, 1
      %p262 = por %p260, %p261
      %p263 = scmp.ne.s32.totalorder %s252, %s253
      %p264 = scmp.eq.s32.totalorder %s29, 0
      %p265 = por %p263, %p264
      %p266 = scmp.ne.s32.totalorder %s252, %s253
      %p267 = scmp.eq.s32.totalorder %s30, 1
      %p268 = por %p266, %p267
      %p270 = scmp.ne.s32.totalorder %s253, %s269
      %p271 = scmp.eq.s32.totalorder %s30, 0
      %p272 = por %p270, %p271
      %s274 = sadd.s32 %s273, 1
      %p277 = scmp.eq.s32.totalorder %s24, 1
      %p278 = scmp.ne.s32.totalorder %s273, %s275
      %p279 = scmp.eq.s32.totalorder %s24, 0
      %p280 = por %p278, %p279
      %p281 = scmp.ne.s32.totalorder %s273, %s275
      %p282 = scmp.eq.s32.totalorder %s29, 1
      %p283 = por %p281, %p282
      %p284 = scmp.ne.s32.totalorder %s275, %s276
      %p285 = scmp.eq.s32.totalorder %s29, 0
      %p286 = por %p284, %p285
      %p287 = scmp.ne.s32.totalorder %s275, %s276
      %p288 = scmp.eq.s32.totalorder %s30, 1
      %p289 = por %p287, %p288
      %p291 = scmp.ne.s32.totalorder %s276, %s290
      %p292 = scmp.eq.s32.totalorder %s30, 0
      %p293 = por %p291, %p292
      %s294 = ssub.s32 %s31, %s43
      %p295 = scmp.eq.s32.totalorder %s294, 0
      %s297 = sadd.s32 %s296, 1
      %s298 = scalar_select %p295, %s296, %s297
      %p301 = pneg %p295
      %p302 = scmp.eq.s32.totalorder %s24, 1
      %p303 = por %p301, %p302
      %p304 = scmp.ne.s32.totalorder %s296, %s299
      %p305 = scmp.eq.s32.totalorder %s24, 0
      %p306 = por %p304, %p305
      %p307 = scmp.ne.s32.totalorder %s296, %s299
      %p308 = scmp.eq.s32.totalorder %s29, 1
      %p309 = por %p307, %p308
      %p310 = scmp.ne.s32.totalorder %s299, %s300
      %p311 = scmp.eq.s32.totalorder %s29, 0
      %p312 = por %p310, %p311
      %p313 = scmp.ne.s32.totalorder %s299, %s300
      %p314 = scmp.eq.s32.totalorder %s30, 1
      %p315 = por %p313, %p314
      %p317 = scmp.ne.s32.totalorder %s300, %s316
      %p318 = scmp.eq.s32.totalorder %s30, 0
      %p319 = por %p317, %p318
      %p320 = scmp.le.s32.totalorder 1, %s24
      %p321 = scmp.lt.s32.totalorder %s24, 3
      %p322 = pnand %p320, %p321
      %p323 = pneg %p322
      // Predicated region
      $region9: #{tpu_custom_call.1} parent=5 // pred_check
        _
      $region10: #{tpu_custom_call.1} parent=5 // pred_check_branch
        %325 = sbr.rel (%p322) target = $region12
      $region11: #{tpu_custom_call.1} parent=5 // pred_region
        %s326 = ssub.s32 %s24, 1
        // Predicated region
        $region13: #{tpu_custom_call.1} parent=11 // pred_check
          %p327 = pneg %p88
        $region14: #{tpu_custom_call.1} parent=11 // pred_check_branch
          %329 = sbr.rel (%p327) target = $region16
        $region15: #{tpu_custom_call.1} parent=11 // pred_region
          %s331 = ssub.s32 2048, 2048
          %332 = vsyncadd [#allocation6], %s331
          %s333 = smul.addr %s34, 128
          %s334 = scalar_lea.hbm %s1, %s333
          %s335 = sshll.u32 [#allocation5], 4
          %s336 = int_to_ptr.vmem [resolvable:$true] %s335
          %341 = dma.hbm_to_vmem [thread:$0]  %s334, 2048, %s336, [#allocation6], 128, 128, 8
        $region16: #{tpu_custom_call.1} parent=11 // pred_fallthru
          _
        // Predicated region
        $region17: #{tpu_custom_call.1} parent=11 // pred_check
          %p342 = pneg %p114
        $region18: #{tpu_custom_call.1} parent=11 // pred_check_branch
          %344 = sbr.rel (%p342) target = $region20
        $region19: #{tpu_custom_call.1} parent=11 // pred_region
          %p345 = scmp.lt.s32.totalorder %s34, 0
          %s346 = scalar_select %p345, %s34, 0
          %s347 = scalar_lea.vmem %s2, %s346
        $region20: #{tpu_custom_call.1} parent=11 // pred_fallthru
          _
        // Predicated region
        $region21: #{tpu_custom_call.1} parent=11 // pred_check
          %p348 = pneg %p135
        $region22: #{tpu_custom_call.1} parent=11 // pred_check_branch
          %350 = sbr.rel (%p348) target = $region24
        $region23: #{tpu_custom_call.1} parent=11 // pred_region
          %s352 = ssub.s32 4096, 4096
          %353 = vsyncadd [#allocation6], %s352
          %s354 = sshll.u32 [#allocation7], 4
          %s355 = int_to_ptr.vmem [resolvable:$true] %s354
          %360 = dma.hbm_to_vmem [thread:$0]  %s3, 4096, %s355, [#allocation6], 128, 128, 8
        $region24: #{tpu_custom_call.1} parent=11 // pred_fallthru
          _
        // Predicated region
        $region25: #{tpu_custom_call.1} parent=11 // pred_check
          %p361 = pneg %p161
        $region26: #{tpu_custom_call.1} parent=11 // pred_check_branch
          %363 = sbr.rel (%p361) target = $region28
        $region27: #{tpu_custom_call.1} parent=11 // pred_region
          %p364 = scmp.lt.s32.totalorder %s34, 0
          %s365 = scalar_select %p364, %s34, 0
          %s366 = scalar_lea.vmem %s4, %s365
        $region28: #{tpu_custom_call.1} parent=11 // pred_fallthru
          _
        // Predicated region
        $region29: #{tpu_custom_call.1} parent=11 // pred_check
          %p367 = pneg %p187
        $region30: #{tpu_custom_call.1} parent=11 // pred_check_branch
          %369 = sbr.rel (%p367) target = $region32
        $region31: #{tpu_custom_call.1} parent=11 // pred_region
          %p370 = scmp.lt.s32.totalorder %s34, 0
          %s371 = scalar_select %p370, %s34, 0
          %s372 = scalar_lea.vmem %s5, %s371
        $region32: #{tpu_custom_call.1} parent=11 // pred_fallthru
          _
        // Predicated region
        $region33: #{tpu_custom_call.1} parent=11 // pred_check
          %p373 = pneg %p213
        $region34: #{tpu_custom_call.1} parent=11 // pred_check_branch
          %375 = sbr.rel (%p373) target = $region36
        $region35: #{tpu_custom_call.1} parent=11 // pred_region
          %p376 = scmp.lt.s32.totalorder %s34, 0
          %s377 = scalar_select %p376, %s34, 0
          %s378 = scalar_lea.vmem %s6, %s377
        $region36: #{tpu_custom_call.1} parent=11 // pred_fallthru
          _
        // Predicated region
        $region37: #{tpu_custom_call.1} parent=11 // pred_check
          %p379 = pneg %p239
        $region38: #{tpu_custom_call.1} parent=11 // pred_check_branch
          %381 = sbr.rel (%p379) target = $region40
        $region39: #{tpu_custom_call.1} parent=11 // pred_region
          %p382 = scmp.lt.s32.totalorder %s34, 0
          %s383 = scalar_select %p382, %s34, 0
          %s384 = scalar_lea.vmem %s7, %s383
        $region40: #{tpu_custom_call.1} parent=11 // pred_fallthru
          _
        // Predicated region
        $region41: #{tpu_custom_call.1} parent=11 // pred_check
          %p385 = pneg %p265
        $region42: #{tpu_custom_call.1} parent=11 // pred_check_branch
          %387 = sbr.rel (%p385) target = $region44
        $region43: #{tpu_custom_call.1} parent=11 // pred_region
          %s388 = smul.u32 16, %s34
          %s390 = ssub.s32 2048, 2048
          %391 = vsyncadd [#allocation9], %s390
          %s392 = smul.addr %s388, 128
          %s393 = scalar_lea.hbm %s8, %s392
          %s394 = sshll.u32 [#allocation8], 4
          %s395 = int_to_ptr.vmem [resolvable:$true] %s394
          %400 = dma.hbm_to_vmem [thread:$0]  %s393, 2048, %s395, [#allocation9], 128, 128, 8
        $region44: #{tpu_custom_call.1} parent=11 // pred_fallthru
          _
        // Predicated region
        $region45: #{tpu_custom_call.1} parent=11 // pred_check
          %p401 = pneg %p286
        $region46: #{tpu_custom_call.1} parent=11 // pred_check_branch
          %403 = sbr.rel (%p401) target = $region48
        $region47: #{tpu_custom_call.1} parent=11 // pred_region
          _
        $region48: #{tpu_custom_call.1} parent=11 // pred_fallthru
          _
      $region12: #{tpu_custom_call.1} parent=5 // pred_fallthru
        _
      %p404 = scmp.lt.s32.totalorder %s24, 2
      // Predicated region
      $region49: #{tpu_custom_call.1} parent=5 // pred_check
        %p405 = pneg %p404
      $region50: #{tpu_custom_call.1} parent=5 // pred_check_branch
        %407 = sbr.rel (%p405) target = $region52
      $region51: #{tpu_custom_call.1} parent=5 // pred_region
        // Predicated region
        $region53: #{tpu_custom_call.1} parent=51 // pred_check
          %p408 = pneg %p56
        $region54: #{tpu_custom_call.1} parent=51 // pred_check_branch
          %410 = sbr.rel (%p408) target = $region56
        $region55: #{tpu_custom_call.1} parent=51 // pred_region
          %s411 = sand.u32 %s46, 1
          %s412 = scalar_lea.sflag [#allocation3], %s411
          %s413 = sand.u32 %s46, 1
          %s414 = smul.addr %s413, 128
          %s415 = scalar_lea.vmem [#allocation2], %s414
          %s417 = ssub.s32 2048, 2048
          %418 = vsyncadd %s412, %s417
          %s419 = smul.addr %s31, 16
          %s420 = smul.addr %s419, 128
          %s421 = scalar_lea.hbm %s0, %s420
          %s422 = sshll.u32 %s415, 4
          %s423 = int_to_ptr.vmem [resolvable:$true] %s422
          %428 = dma.hbm_to_vmem [thread:$0]  %s421, 2048, %s423, %s412, 128, 128, 8
        $region56: #{tpu_custom_call.1} parent=51 // pred_fallthru
          _
      $region52: #{tpu_custom_call.1} parent=5 // pred_fallthru
        _
      %p429 = scmp.le.s32.totalorder 1, %s24
      %p430 = scmp.lt.s32.totalorder %s24, 3
      %p431 = pnand %p429, %p430
      %p432 = pneg %p431
      // Predicated region
      $region57: #{tpu_custom_call.1} parent=5 // pred_check
        _
      $region58: #{tpu_custom_call.1} parent=5 // pred_check_branch
        %434 = sbr.rel (%p431) target = $region60
      $region59: #{tpu_custom_call.1} parent=5 // pred_region
        %s435 = ssub.s32 %s24, 1
        %s436 = sand.u32 %s49, 1
        %s437 = scalar_lea.sflag [#allocation3], %s436
        %s438 = sand.u32 %s49, 1
        %s439 = smul.addr %s438, 128
        %s440 = scalar_lea.vmem [#allocation2], %s439
        // Predicated region
        $region61: #{tpu_custom_call.1} parent=59 // pred_check
          %p441 = pneg %p62
        $region62: #{tpu_custom_call.1} parent=59 // pred_check_branch
          %443 = sbr.rel (%p441) target = $region64
        $region63: #{tpu_custom_call.1} parent=59 // pred_region
          %444 = dma.done %s437, 2048
        $region64: #{tpu_custom_call.1} parent=59 // pred_fallthru
          _
        // Predicated region
        $region65: #{tpu_custom_call.1} parent=59 // pred_check
          %p445 = pneg %p88
        $region66: #{tpu_custom_call.1} parent=59 // pred_check_branch
          %447 = sbr.rel (%p445) target = $region68
        $region67: #{tpu_custom_call.1} parent=59 // pred_region
          %448 = dma.done [#allocation6], 2048
        $region68: #{tpu_custom_call.1} parent=59 // pred_fallthru
          _
        // Predicated region
        $region69: #{tpu_custom_call.1} parent=59 // pred_check
          %p449 = pneg %p135
        $region70: #{tpu_custom_call.1} parent=59 // pred_check_branch
          %451 = sbr.rel (%p449) target = $region72
        $region71: #{tpu_custom_call.1} parent=59 // pred_region
          %452 = dma.done [#allocation6], 4096
        $region72: #{tpu_custom_call.1} parent=59 // pred_fallthru
          _
        // Predicated region
        $region73: #{tpu_custom_call.1} parent=59 // pred_check
          %p453 = pneg %p265
        $region74: #{tpu_custom_call.1} parent=59 // pred_check_branch
          %455 = sbr.rel (%p453) target = $region76
        $region75: #{tpu_custom_call.1} parent=59 // pred_region
          %456 = dma.done [#allocation9], 2048
        $region76: #{tpu_custom_call.1} parent=59 // pred_fallthru
          _
        %s457 = sand.u32 %s49, 1
        %s458 = scalar_lea.sflag [#allocation3], %s457
        %s459 = sand.u32 %s49, 1
        %s460 = smul.addr %s459, 128
        %s461 = scalar_lea.vmem [#allocation2], %s460
        %p462 = pneg %p62
        %p463 = pneg %p59
        %p464 = pneg %p88
        %p465 = pneg %p85
        %p466 = scmp.lt.s32.totalorder %s34, 0
        %s467 = scalar_select %p466, %s34, 0
        %s468 = scalar_lea.vmem %s2, %s467
        %p469 = pneg %p114
        %p470 = pneg %p111
        %p471 = pneg %p135
        %p472 = pneg %p132
        %p473 = scmp.lt.s32.totalorder %s34, 0
        %s474 = scalar_select %p473, %s34, 0
        %s475 = scalar_lea.vmem %s4, %s474
        %p476 = pneg %p161
        %p477 = pneg %p158
        %p478 = scmp.lt.s32.totalorder %s34, 0
        %s479 = scalar_select %p478, %s34, 0
        %s480 = scalar_lea.vmem %s5, %s479
        %p481 = pneg %p187
        %p482 = pneg %p184
        %p483 = scmp.lt.s32.totalorder %s34, 0
        %s484 = scalar_select %p483, %s34, 0
        %s485 = scalar_lea.vmem %s6, %s484
        %p486 = pneg %p213
        %p487 = pneg %p210
        %p488 = scmp.lt.s32.totalorder %s34, 0
        %s489 = scalar_select %p488, %s34, 0
        %s490 = scalar_lea.vmem %s7, %s489
        %p491 = pneg %p239
        %p492 = pneg %p236
        %p493 = pneg %p265
        %p494 = pneg %p262
        %p495 = pneg %p286
        %p496 = pneg %p283
        %p497 = pneg %p312
        %p498 = pneg %p309
        %s499 = sand.u32 %s299, 1
        %s500 = scalar_lea.sflag [#allocation4], %s499
        %s501 = sand.u32 %s299, 1
        %s502 = smul.addr %s501, 128
        %s503 = scalar_lea.vmem [#allocation10], %s502
        %p504 = scmp.lt.s32.totalorder %s34, 0
        %s505 = scalar_select %p504, %s34, 0
        %s506 = scalar_lea.vmem %s2, %s505
        %p507 = scmp.lt.s32.totalorder %s34, 0
        %s508 = scalar_select %p507, %s34, 0
        %s509 = scalar_lea.vmem %s4, %s508
        %p510 = scmp.lt.s32.totalorder %s34, 0
        %s511 = scalar_select %p510, %s34, 0
        %s512 = scalar_lea.vmem %s5, %s511
        %p513 = scmp.lt.s32.totalorder %s34, 0
        %s514 = scalar_select %p513, %s34, 0
        %s515 = scalar_lea.vmem %s6, %s514
        %p516 = scmp.lt.s32.totalorder %s34, 0
        %s517 = scalar_select %p516, %s34, 0
        %s518 = scalar_lea.vmem %s7, %s517
        %s519 = smul.u32 16, %s34
        %v520 = vld [vmem:[%s440] sm:$0xff]
        %v521 = vld [vmem:[%s440 + $0x8] sm:$0xff]
        %v522 = vld [vmem:[%s440 + $0x10] sm:$0xff]
        %v523 = vld [vmem:[%s440 + $0x18] sm:$0xff]
        %v524 = vld [vmem:[%s440 + $0x20] sm:$0xff]
        %v525 = vld [vmem:[%s440 + $0x28] sm:$0xff]
        %v526 = vld [vmem:[%s440 + $0x30] sm:$0xff]
        %v527 = vld [vmem:[%s440 + $0x38] sm:$0xff]
        %v528 = vld [vmem:[%s440 + $0x40] sm:$0xff]
        %v529 = vld [vmem:[%s440 + $0x48] sm:$0xff]
        %v530 = vld [vmem:[%s440 + $0x50] sm:$0xff]
        %v531 = vld [vmem:[%s440 + $0x58] sm:$0xff]
        %v532 = vld [vmem:[%s440 + $0x60] sm:$0xff]
        %v533 = vld [vmem:[%s440 + $0x68] sm:$0xff]
        %v534 = vld [vmem:[%s440 + $0x70] sm:$0xff]
        %v535 = vld [vmem:[%s440 + $0x78] sm:$0xff]
        %v536 = vld [vmem:[#allocation5] sm:$0xff]
        %v537 = vld [vmem:[#allocation5 + $0x8] sm:$0xff]
        %v538 = vld [vmem:[#allocation5 + $0x10] sm:$0xff]
        %v539 = vld [vmem:[#allocation5 + $0x18] sm:$0xff]
        %v540 = vld [vmem:[#allocation5 + $0x20] sm:$0xff]
        %v541 = vld [vmem:[#allocation5 + $0x28] sm:$0xff]
        %v542 = vld [vmem:[#allocation5 + $0x30] sm:$0xff]
        %v543 = vld [vmem:[#allocation5 + $0x38] sm:$0xff]
        %v544 = vld [vmem:[#allocation5 + $0x40] sm:$0xff]
        %v545 = vld [vmem:[#allocation5 + $0x48] sm:$0xff]
        %v546 = vld [vmem:[#allocation5 + $0x50] sm:$0xff]
        %v547 = vld [vmem:[#allocation5 + $0x58] sm:$0xff]
        %v548 = vld [vmem:[#allocation5 + $0x60] sm:$0xff]
        %v549 = vld [vmem:[#allocation5 + $0x68] sm:$0xff]
        %v550 = vld [vmem:[#allocation5 + $0x70] sm:$0xff]
        %v551 = vld [vmem:[#allocation5 + $0x78] sm:$0xff]
        %v552 = vld [vmem:[%s506] sm:$0x1]
        %v554 = vlaneseq
        %v555 = vshrl.u32 %v554, 7
        %v556 = vsub.s32 0, %v555
        %v557 = vrot.slane %v552, %v556
        %559 = vmatprep.subr.mxu0 0.0
        %560 = vmatpush1.msra.mxu0 %v551
        %561 = vmatprep.subr.mxu0 0.0
        %562 = vmatpush1.msra.mxu0 %v550
        %563 = vmatprep.subr.mxu0 0.0
        %564 = vmatpush1.msra.mxu0 %v549
        %565 = vmatprep.subr.mxu0 0.0
        %566 = vmatpush1.msra.mxu0 %v548
        %567 = vmatprep.subr.mxu0 0.0
        %568 = vmatpush1.msra.mxu0 %v547
        %569 = vmatprep.subr.mxu0 0.0
        %570 = vmatpush1.msra.mxu0 %v546
        %571 = vmatprep.subr.mxu0 0.0
        %572 = vmatpush1.msra.mxu0 %v545
        %573 = vmatprep.subr.mxu0 0.0
        %574 = vmatpush1.msra.mxu0 %v544
        %575 = vmatprep.subr.mxu0 0.0
        %576 = vmatpush1.msra.mxu0 %v543
        %577 = vmatprep.subr.mxu0 0.0
        %578 = vmatpush1.msra.mxu0 %v542
        %579 = vmatprep.subr.mxu0 0.0
        %580 = vmatpush1.msra.mxu0 %v541
        %581 = vmatprep.subr.mxu0 0.0
        %582 = vmatpush1.msra.mxu0 %v540
        %583 = vmatprep.subr.mxu0 0.0
        %584 = vmatpush1.msra.mxu0 %v539
        %585 = vmatprep.subr.mxu0 0.0
        %586 = vmatpush1.msra.mxu0 %v538
        %587 = vmatprep.subr.mxu0 0.0
        %588 = vmatpush1.msra.mxu0 %v537
        %589 = vmatprep.subr.mxu0 0.0
        %590 = vmatpush1.msra.mxu0 %v536
        %591 = vmatprep.subr.mxu0 0.0
        %592 = vmatpush2.msra.mxu0 0.0
        %593 = vmatprep.subr.mxu0 0.0
        %594 = vmatpush2.msra.mxu0 0.0
        %595 = vmatprep.subr.mxu0 0.0
        %596 = vmatpush2.msra.mxu0 0.0
        %597 = vmatprep.subr.mxu0 0.0
        %598 = vmatpush2.msra.mxu0 0.0
        %599 = vmatprep.subr.mxu0 0.0
        %600 = vmatpush2.msra.mxu0 0.0
        %601 = vmatprep.subr.mxu0 0.0
        %602 = vmatpush2.msra.mxu0 0.0
        %603 = vmatprep.subr.mxu0 0.0
        %604 = vmatpush2.msra.mxu0 0.0
        %605 = vmatprep.subr.mxu0 0.0
        %606 = vmatpush2.msra.mxu0 0.0
        %607 = vmatprep.subr.mxu0 0.0
        %608 = vmatpush2.msra.mxu0 0.0
        %609 = vmatprep.subr.mxu0 0.0
        %610 = vmatpush2.msra.mxu0 0.0
        %611 = vmatprep.subr.mxu0 0.0
        %612 = vmatpush2.msra.mxu0 0.0
        %613 = vmatprep.subr.mxu0 0.0
        %614 = vmatpush2.msra.mxu0 0.0
        %615 = vmatprep.subr.mxu0 0.0
        %616 = vmatpush2.msra.mxu0 0.0
        %617 = vmatprep.subr.mxu0 0.0
        %618 = vmatpush2.msra.mxu0 0.0
        %619 = vmatprep.subr.mxu0 0.0
        %620 = vmatpush2.msra.mxu0 0.0
        %621 = vmatprep.subr.mxu0 0.0
        %622 = vmatpush2.msra.mxu0 0.0
        %623 = vmatprep.mubr.f32.mxu0 0.0
        %624 = vmatmul.mubr.f32.gmra.mxu0 %v520
        %v625 = vpop.f32.mrf.mxu0
        %v626 = vadd.f32 %v557, %v625
        %v627 = vpop.f32.mrf.mxu0
        %628 = vmatprep.mubr.f32.mxu0 0.0
        %629 = vmatmul.mubr.f32.gmra.mxu0 %v521
        %v630 = vpop.f32.mrf.mxu0
        %v631 = vadd.f32 %v557, %v630
        %v632 = vpop.f32.mrf.mxu0
        %633 = vmatprep.mubr.f32.mxu0 0.0
        %634 = vmatmul.mubr.f32.gmra.mxu0 %v522
        %v635 = vpop.f32.mrf.mxu0
        %v636 = vadd.f32 %v557, %v635
        %v637 = vpop.f32.mrf.mxu0
        %638 = vmatprep.mubr.f32.mxu0 0.0
        %639 = vmatmul.mubr.f32.gmra.mxu0 %v523
        %v640 = vpop.f32.mrf.mxu0
        %v641 = vadd.f32 %v557, %v640
        %v642 = vpop.f32.mrf.mxu0
        %643 = vmatprep.mubr.f32.mxu0 0.0
        %644 = vmatmul.mubr.f32.gmra.mxu0 %v524
        %v645 = vpop.f32.mrf.mxu0
        %v646 = vadd.f32 %v557, %v645
        %v647 = vpop.f32.mrf.mxu0
        %648 = vmatprep.mubr.f32.mxu0 0.0
        %649 = vmatmul.mubr.f32.gmra.mxu0 %v525
        %v650 = vpop.f32.mrf.mxu0
        %v651 = vadd.f32 %v557, %v650
        %v652 = vpop.f32.mrf.mxu0
        %653 = vmatprep.mubr.f32.mxu0 0.0
        %654 = vmatmul.mubr.f32.gmra.mxu0 %v526
        %v655 = vpop.f32.mrf.mxu0
        %v656 = vadd.f32 %v557, %v655
        %v657 = vpop.f32.mrf.mxu0
        %658 = vmatprep.mubr.f32.mxu0 0.0
        %659 = vmatmul.mubr.f32.gmra.mxu0 %v527
        %v660 = vpop.f32.mrf.mxu0
        %v661 = vadd.f32 %v557, %v660
        %v662 = vpop.f32.mrf.mxu0
        %663 = vmatprep.mubr.f32.mxu0 0.0
        %664 = vmatmul.mubr.f32.gmra.mxu0 %v528
        %v665 = vpop.f32.mrf.mxu0
        %v666 = vadd.f32 %v557, %v665
        %v667 = vpop.f32.mrf.mxu0
        %668 = vmatprep.mubr.f32.mxu0 0.0
        %669 = vmatmul.mubr.f32.gmra.mxu0 %v529
        %v670 = vpop.f32.mrf.mxu0
        %v671 = vadd.f32 %v557, %v670
        %v672 = vpop.f32.mrf.mxu0
        %673 = vmatprep.mubr.f32.mxu0 0.0
        %674 = vmatmul.mubr.f32.gmra.mxu0 %v530
        %v675 = vpop.f32.mrf.mxu0
        %v676 = vadd.f32 %v557, %v675
        %v677 = vpop.f32.mrf.mxu0
        %678 = vmatprep.mubr.f32.mxu0 0.0
        %679 = vmatmul.mubr.f32.gmra.mxu0 %v531
        %v680 = vpop.f32.mrf.mxu0
        %v681 = vadd.f32 %v557, %v680
        %v682 = vpop.f32.mrf.mxu0
        %683 = vmatprep.mubr.f32.mxu0 0.0
        %684 = vmatmul.mubr.f32.gmra.mxu0 %v532
        %v685 = vpop.f32.mrf.mxu0
        %v686 = vadd.f32 %v557, %v685
        %v687 = vpop.f32.mrf.mxu0
        %688 = vmatprep.mubr.f32.mxu0 0.0
        %689 = vmatmul.mubr.f32.gmra.mxu0 %v533
        %v690 = vpop.f32.mrf.mxu0
        %v691 = vadd.f32 %v557, %v690
        %v692 = vpop.f32.mrf.mxu0
        %693 = vmatprep.mubr.f32.mxu0 0.0
        %694 = vmatmul.mubr.f32.gmra.mxu0 %v534
        %v695 = vpop.f32.mrf.mxu0
        %v696 = vadd.f32 %v557, %v695
        %v697 = vpop.f32.mrf.mxu0
        %698 = vmatprep.mubr.f32.mxu0 0.0
        %699 = vmatmul.mubr.f32.gmra.mxu0 %v535
        %v700 = vpop.f32.mrf.mxu0
        %v701 = vadd.f32 %v557, %v700
        %v702 = vpop.f32.mrf.mxu0
        %703 = vdwg.mxu0
        %v704 = vmax.f32 %v626, 0.0
        %v705 = vmax.f32 %v631, 0.0
        %v706 = vmax.f32 %v636, 0.0
        %v707 = vmax.f32 %v641, 0.0
        %v708 = vmax.f32 %v646, 0.0
        %v709 = vmax.f32 %v651, 0.0
        %v710 = vmax.f32 %v656, 0.0
        %v711 = vmax.f32 %v661, 0.0
        %v712 = vmax.f32 %v666, 0.0
        %v713 = vmax.f32 %v671, 0.0
        %v714 = vmax.f32 %v676, 0.0
        %v715 = vmax.f32 %v681, 0.0
        %v716 = vmax.f32 %v686, 0.0
        %v717 = vmax.f32 %v691, 0.0
        %v718 = vmax.f32 %v696, 0.0
        %v719 = vmax.f32 %v701, 0.0
        %v720 = vld [vmem:[#allocation7] sm:$0xff]
        %v721 = vld [vmem:[#allocation7 + $0x8] sm:$0xff]
        %v722 = vld [vmem:[#allocation7 + $0x10] sm:$0xff]
        %v723 = vld [vmem:[#allocation7 + $0x18] sm:$0xff]
        %v724 = vld [vmem:[#allocation7 + $0x20] sm:$0xff]
        %v725 = vld [vmem:[#allocation7 + $0x28] sm:$0xff]
        %v726 = vld [vmem:[#allocation7 + $0x30] sm:$0xff]
        %v727 = vld [vmem:[#allocation7 + $0x38] sm:$0xff]
        %v728 = vld [vmem:[#allocation7 + $0x40] sm:$0xff]
        %v729 = vld [vmem:[#allocation7 + $0x48] sm:$0xff]
        %v730 = vld [vmem:[#allocation7 + $0x50] sm:$0xff]
        %v731 = vld [vmem:[#allocation7 + $0x58] sm:$0xff]
        %v732 = vld [vmem:[#allocation7 + $0x60] sm:$0xff]
        %v733 = vld [vmem:[#allocation7 + $0x68] sm:$0xff]
        %v734 = vld [vmem:[#allocation7 + $0x70] sm:$0xff]
        %v735 = vld [vmem:[#allocation7 + $0x78] sm:$0xff]
        %v736 = vld [vmem:[#allocation7 + $0x80] sm:$0xff]
        %v737 = vld [vmem:[#allocation7 + $0x88] sm:$0xff]
        %v738 = vld [vmem:[#allocation7 + $0x90] sm:$0xff]
        %v739 = vld [vmem:[#allocation7 + $0x98] sm:$0xff]
        %v740 = vld [vmem:[#allocation7 + $0xa0] sm:$0xff]
        %v741 = vld [vmem:[#allocation7 + $0xa8] sm:$0xff]
        %v742 = vld [vmem:[#allocation7 + $0xb0] sm:$0xff]
        %v743 = vld [vmem:[#allocation7 + $0xb8] sm:$0xff]
        %v744 = vld [vmem:[#allocation7 + $0xc0] sm:$0xff]
        %v745 = vld [vmem:[#allocation7 + $0xc8] sm:$0xff]
        %v746 = vld [vmem:[#allocation7 + $0xd0] sm:$0xff]
        %v747 = vld [vmem:[#allocation7 + $0xd8] sm:$0xff]
        %v748 = vld [vmem:[#allocation7 + $0xe0] sm:$0xff]
        %v749 = vld [vmem:[#allocation7 + $0xe8] sm:$0xff]
        %v750 = vld [vmem:[#allocation7 + $0xf0] sm:$0xff]
        %v751 = vld [vmem:[#allocation7 + $0xf8] sm:$0xff]
        %752 = vmatprep.subr.mxu0 0.0
        %753 = vmatpush1.msra.mxu0 %v719
        %754 = vmatprep.subr.mxu0 0.0
        %755 = vmatpush1.msra.mxu0 %v718
        %756 = vmatprep.subr.mxu0 0.0
        %757 = vmatpush1.msra.mxu0 %v717
        %758 = vmatprep.subr.mxu0 0.0
        %759 = vmatpush1.msra.mxu0 %v716
        %760 = vmatprep.subr.mxu0 0.0
        %761 = vmatpush1.msra.mxu0 %v715
        %762 = vmatprep.subr.mxu0 0.0
        %763 = vmatpush1.msra.mxu0 %v714
        %764 = vmatprep.subr.mxu0 0.0
        %765 = vmatpush1.msra.mxu0 %v713
        %766 = vmatprep.subr.mxu0 0.0
        %767 = vmatpush1.msra.mxu0 %v712
        %768 = vmatprep.subr.mxu0 0.0
        %769 = vmatpush1.msra.mxu0 %v711
        %770 = vmatprep.subr.mxu0 0.0
        %771 = vmatpush1.msra.mxu0 %v710
        %772 = vmatprep.subr.mxu0 0.0
        %773 = vmatpush1.msra.mxu0 %v709
        %774 = vmatprep.subr.mxu0 0.0
        %775 = vmatpush1.msra.mxu0 %v708
        %776 = vmatprep.subr.mxu0 0.0
        %777 = vmatpush1.msra.mxu0 %v707
        %778 = vmatprep.subr.mxu0 0.0
        %779 = vmatpush1.msra.mxu0 %v706
        %780 = vmatprep.subr.mxu0 0.0
        %781 = vmatpush1.msra.mxu0 %v705
        %782 = vmatprep.subr.mxu0 0.0
        %783 = vmatpush1.msra.mxu0 %v704
        %784 = vmatprep.subr.mxu0 0.0
        %785 = vmatpush2.msra.mxu0 0.0
        %786 = vmatprep.subr.mxu0 0.0
        %787 = vmatpush2.msra.mxu0 0.0
        %788 = vmatprep.subr.mxu0 0.0
        %789 = vmatpush2.msra.mxu0 0.0
        %790 = vmatprep.subr.mxu0 0.0
        %791 = vmatpush2.msra.mxu0 0.0
        %792 = vmatprep.subr.mxu0 0.0
        %793 = vmatpush2.msra.mxu0 0.0
        %794 = vmatprep.subr.mxu0 0.0
        %795 = vmatpush2.msra.mxu0 0.0
        %796 = vmatprep.subr.mxu0 0.0
        %797 = vmatpush2.msra.mxu0 0.0
        %798 = vmatprep.subr.mxu0 0.0
        %799 = vmatpush2.msra.mxu0 0.0
        %800 = vmatprep.subr.mxu0 0.0
        %801 = vmatpush2.msra.mxu0 0.0
        %802 = vmatprep.subr.mxu0 0.0
        %803 = vmatpush2.msra.mxu0 0.0
        %804 = vmatprep.subr.mxu0 0.0
        %805 = vmatpush2.msra.mxu0 0.0
        %806 = vmatprep.subr.mxu0 0.0
        %807 = vmatpush2.msra.mxu0 0.0
        %808 = vmatprep.subr.mxu0 0.0
        %809 = vmatpush2.msra.mxu0 0.0
        %810 = vmatprep.subr.mxu0 0.0
        %811 = vmatpush2.msra.mxu0 0.0
        %812 = vmatprep.subr.mxu0 0.0
        %813 = vmatpush2.msra.mxu0 0.0
        %814 = vmatprep.subr.mxu0 0.0
        %815 = vmatpush2.msra.mxu0 0.0
        %816 = vmatprep.mubr.f32.mxu0 0.0
        %817 = vmatmul.mubr.f32.gmra.mxu0 %v720
        %v818 = vpop.f32.mrf.mxu0
        %v819 = vadd.f32 0.0, %v818
        %v820 = vpop.f32.mrf.mxu0
        %821 = vmatprep.mubr.f32.mxu0 0.0
        %822 = vmatmul.mubr.f32.gmra.mxu0 %v721
        %v823 = vpop.f32.mrf.mxu0
        %v824 = vadd.f32 0.0, %v823
        %v825 = vpop.f32.mrf.mxu0
        %826 = vmatprep.mubr.f32.mxu0 0.0
        %827 = vmatmul.mubr.f32.gmra.mxu0 %v722
        %v828 = vpop.f32.mrf.mxu0
        %v829 = vadd.f32 0.0, %v828
        %v830 = vpop.f32.mrf.mxu0
        %831 = vmatprep.mubr.f32.mxu0 0.0
        %832 = vmatmul.mubr.f32.gmra.mxu0 %v723
        %v833 = vpop.f32.mrf.mxu0
        %v834 = vadd.f32 0.0, %v833
        %v835 = vpop.f32.mrf.mxu0
        %836 = vmatprep.mubr.f32.mxu0 0.0
        %837 = vmatmul.mubr.f32.gmra.mxu0 %v724
        %v838 = vpop.f32.mrf.mxu0
        %v839 = vadd.f32 0.0, %v838
        %v840 = vpop.f32.mrf.mxu0
        %841 = vmatprep.mubr.f32.mxu0 0.0
        %842 = vmatmul.mubr.f32.gmra.mxu0 %v725
        %v843 = vpop.f32.mrf.mxu0
        %v844 = vadd.f32 0.0, %v843
        %v845 = vpop.f32.mrf.mxu0
        %846 = vmatprep.mubr.f32.mxu0 0.0
        %847 = vmatmul.mubr.f32.gmra.mxu0 %v726
        %v848 = vpop.f32.mrf.mxu0
        %v849 = vadd.f32 0.0, %v848
        %v850 = vpop.f32.mrf.mxu0
        %851 = vmatprep.mubr.f32.mxu0 0.0
        %852 = vmatmul.mubr.f32.gmra.mxu0 %v727
        %v853 = vpop.f32.mrf.mxu0
        %v854 = vadd.f32 0.0, %v853
        %v855 = vpop.f32.mrf.mxu0
        %856 = vmatprep.mubr.f32.mxu0 0.0
        %857 = vmatmul.mubr.f32.gmra.mxu0 %v728
        %v858 = vpop.f32.mrf.mxu0
        %v859 = vadd.f32 0.0, %v858
        %v860 = vpop.f32.mrf.mxu0
        %861 = vmatprep.mubr.f32.mxu0 0.0
        %862 = vmatmul.mubr.f32.gmra.mxu0 %v729
        %v863 = vpop.f32.mrf.mxu0
        %v864 = vadd.f32 0.0, %v863
        %v865 = vpop.f32.mrf.mxu0
        %866 = vmatprep.mubr.f32.mxu0 0.0
        %867 = vmatmul.mubr.f32.gmra.mxu0 %v730
        %v868 = vpop.f32.mrf.mxu0
        %v869 = vadd.f32 0.0, %v868
        %v870 = vpop.f32.mrf.mxu0
        %871 = vmatprep.mubr.f32.mxu0 0.0
        %872 = vmatmul.mubr.f32.gmra.mxu0 %v731
        %v873 = vpop.f32.mrf.mxu0
        %v874 = vadd.f32 0.0, %v873
        %v875 = vpop.f32.mrf.mxu0
        %876 = vmatprep.mubr.f32.mxu0 0.0
        %877 = vmatmul.mubr.f32.gmra.mxu0 %v732
        %v878 = vpop.f32.mrf.mxu0
        %v879 = vadd.f32 0.0, %v878
        %v880 = vpop.f32.mrf.mxu0
        %881 = vmatprep.mubr.f32.mxu0 0.0
        %882 = vmatmul.mubr.f32.gmra.mxu0 %v733
        %v883 = vpop.f32.mrf.mxu0
        %v884 = vadd.f32 0.0, %v883
        %v885 = vpop.f32.mrf.mxu0
        %886 = vmatprep.mubr.f32.mxu0 0.0
        %887 = vmatmul.mubr.f32.gmra.mxu0 %v734
        %v888 = vpop.f32.mrf.mxu0
        %v889 = vadd.f32 0.0, %v888
        %v890 = vpop.f32.mrf.mxu0
        %891 = vmatprep.mubr.f32.mxu0 0.0
        %892 = vmatmul.mubr.f32.gmra.mxu0 %v735
        %v893 = vpop.f32.mrf.mxu0
        %v894 = vadd.f32 0.0, %v893
        %v895 = vpop.f32.mrf.mxu0
        %896 = vmatprep.mubr.f32.mxu0 0.0
        %897 = vmatmul.mubr.f32.gmra.mxu0 %v736
        %v898 = vpop.f32.mrf.mxu0
        %v899 = vadd.f32 0.0, %v898
        %v900 = vpop.f32.mrf.mxu0
        %901 = vmatprep.mubr.f32.mxu0 0.0
        %902 = vmatmul.mubr.f32.gmra.mxu0 %v737
        %v903 = vpop.f32.mrf.mxu0
        %v904 = vadd.f32 0.0, %v903
        %v905 = vpop.f32.mrf.mxu0
        %906 = vmatprep.mubr.f32.mxu0 0.0
        %907 = vmatmul.mubr.f32.gmra.mxu0 %v738
        %v908 = vpop.f32.mrf.mxu0
        %v909 = vadd.f32 0.0, %v908
        %v910 = vpop.f32.mrf.mxu0
        %911 = vmatprep.mubr.f32.mxu0 0.0
        %912 = vmatmul.mubr.f32.gmra.mxu0 %v739
        %v913 = vpop.f32.mrf.mxu0
        %v914 = vadd.f32 0.0, %v913
        %v915 = vpop.f32.mrf.mxu0
        %916 = vmatprep.mubr.f32.mxu0 0.0
        %917 = vmatmul.mubr.f32.gmra.mxu0 %v740
        %v918 = vpop.f32.mrf.mxu0
        %v919 = vadd.f32 0.0, %v918
        %v920 = vpop.f32.mrf.mxu0
        %921 = vmatprep.mubr.f32.mxu0 0.0
        %922 = vmatmul.mubr.f32.gmra.mxu0 %v741
        %v923 = vpop.f32.mrf.mxu0
        %v924 = vadd.f32 0.0, %v923
        %v925 = vpop.f32.mrf.mxu0
        %926 = vmatprep.mubr.f32.mxu0 0.0
        %927 = vmatmul.mubr.f32.gmra.mxu0 %v742
        %v928 = vpop.f32.mrf.mxu0
        %v929 = vadd.f32 0.0, %v928
        %v930 = vpop.f32.mrf.mxu0
        %931 = vmatprep.mubr.f32.mxu0 0.0
        %932 = vmatmul.mubr.f32.gmra.mxu0 %v743
        %v933 = vpop.f32.mrf.mxu0
        %v934 = vadd.f32 0.0, %v933
        %v935 = vpop.f32.mrf.mxu0
        %936 = vmatprep.mubr.f32.mxu0 0.0
        %937 = vmatmul.mubr.f32.gmra.mxu0 %v744
        %v938 = vpop.f32.mrf.mxu0
        %v939 = vadd.f32 0.0, %v938
        %v940 = vpop.f32.mrf.mxu0
        %941 = vmatprep.mubr.f32.mxu0 0.0
        %942 = vmatmul.mubr.f32.gmra.mxu0 %v745
        %v943 = vpop.f32.mrf.mxu0
        %v944 = vadd.f32 0.0, %v943
        %v945 = vpop.f32.mrf.mxu0
        %946 = vmatprep.mubr.f32.mxu0 0.0
        %947 = vmatmul.mubr.f32.gmra.mxu0 %v746
        %v948 = vpop.f32.mrf.mxu0
        %v949 = vadd.f32 0.0, %v948
        %v950 = vpop.f32.mrf.mxu0
        %951 = vmatprep.mubr.f32.mxu0 0.0
        %952 = vmatmul.mubr.f32.gmra.mxu0 %v747
        %v953 = vpop.f32.mrf.mxu0
        %v954 = vadd.f32 0.0, %v953
        %v955 = vpop.f32.mrf.mxu0
        %956 = vmatprep.mubr.f32.mxu0 0.0
        %957 = vmatmul.mubr.f32.gmra.mxu0 %v748
        %v958 = vpop.f32.mrf.mxu0
        %v959 = vadd.f32 0.0, %v958
        %v960 = vpop.f32.mrf.mxu0
        %961 = vmatprep.mubr.f32.mxu0 0.0
        %962 = vmatmul.mubr.f32.gmra.mxu0 %v749
        %v963 = vpop.f32.mrf.mxu0
        %v964 = vadd.f32 0.0, %v963
        %v965 = vpop.f32.mrf.mxu0
        %966 = vmatprep.mubr.f32.mxu0 0.0
        %967 = vmatmul.mubr.f32.gmra.mxu0 %v750
        %v968 = vpop.f32.mrf.mxu0
        %v969 = vadd.f32 0.0, %v968
        %v970 = vpop.f32.mrf.mxu0
        %971 = vmatprep.mubr.f32.mxu0 0.0
        %972 = vmatmul.mubr.f32.gmra.mxu0 %v751
        %v973 = vpop.f32.mrf.mxu0
        %v974 = vadd.f32 0.0, %v973
        %v975 = vpop.f32.mrf.mxu0
        %976 = vdwg.mxu0
        %v977 = vld [vmem:[%s509] sm:$0x1]
        %v978 = vld [vmem:[%s512] sm:$0x1]
        %v980 = vlaneseq
        %v981 = vshrl.u32 %v980, 7
        %v982 = vsub.s32 0, %v981
        %v983 = vrot.slane %v977, %v982
        %v985 = vmul.f32 %v819, %v983
        %v986 = vmul.f32 %v824, %v983
        %v987 = vmul.f32 %v829, %v983
        %v988 = vmul.f32 %v834, %v983
        %v989 = vmul.f32 %v839, %v983
        %v990 = vmul.f32 %v844, %v983
        %v991 = vmul.f32 %v849, %v983
        %v992 = vmul.f32 %v854, %v983
        %v993 = vmul.f32 %v859, %v983
        %v994 = vmul.f32 %v864, %v983
        %v995 = vmul.f32 %v869, %v983
        %v996 = vmul.f32 %v874, %v983
        %v997 = vmul.f32 %v879, %v983
        %v998 = vmul.f32 %v884, %v983
        %v999 = vmul.f32 %v889, %v983
        %v1000 = vmul.f32 %v894, %v983
        %v1002 = vlaneseq
        %v1003 = vshrl.u32 %v1002, 7
        %v1004 = vsub.s32 0, %v1003
        %v1005 = vrot.slane %v978, %v1004
        %v1007 = vmul.f32 %v899, %v1005
        %v1008 = vmul.f32 %v904, %v1005
        %v1009 = vmul.f32 %v909, %v1005
        %v1010 = vmul.f32 %v914, %v1005
        %v1011 = vmul.f32 %v919, %v1005
        %v1012 = vmul.f32 %v924, %v1005
        %v1013 = vmul.f32 %v929, %v1005
        %v1014 = vmul.f32 %v934, %v1005
        %v1015 = vmul.f32 %v939, %v1005
        %v1016 = vmul.f32 %v944, %v1005
        %v1017 = vmul.f32 %v949, %v1005
        %v1018 = vmul.f32 %v954, %v1005
        %v1019 = vmul.f32 %v959, %v1005
        %v1020 = vmul.f32 %v964, %v1005
        %v1021 = vmul.f32 %v969, %v1005
        %v1022 = vmul.f32 %v974, %v1005
        %v1023 = vadd.f32 %v985, %v1007
        %v1024 = vadd.f32 %v986, %v1008
        %v1025 = vadd.f32 %v987, %v1009
        %v1026 = vadd.f32 %v988, %v1010
        %v1027 = vadd.f32 %v989, %v1011
        %v1028 = vadd.f32 %v990, %v1012
        %v1029 = vadd.f32 %v991, %v1013
        %v1030 = vadd.f32 %v992, %v1014
        %v1031 = vadd.f32 %v993, %v1015
        %v1032 = vadd.f32 %v994, %v1016
        %v1033 = vadd.f32 %v995, %v1017
        %v1034 = vadd.f32 %v996, %v1018
        %v1035 = vadd.f32 %v997, %v1019
        %v1036 = vadd.f32 %v998, %v1020
        %v1037 = vadd.f32 %v999, %v1021
        %v1038 = vadd.f32 %v1000, %v1022
        %v1039 = vld [vmem:[%s515] sm:$0x1]
        %v1041 = vlaneseq
        %v1042 = vshrl.u32 %v1041, 7
        %v1043 = vsub.s32 0, %v1042
        %v1044 = vrot.slane %v1039, %v1043
        %v1046 = vadd.f32 %v1023, %v1044
        %v1047 = vadd.f32 %v1024, %v1044
        %v1048 = vadd.f32 %v1025, %v1044
        %v1049 = vadd.f32 %v1026, %v1044
        %v1050 = vadd.f32 %v1027, %v1044
        %v1051 = vadd.f32 %v1028, %v1044
        %v1052 = vadd.f32 %v1029, %v1044
        %v1053 = vadd.f32 %v1030, %v1044
        %v1054 = vadd.f32 %v1031, %v1044
        %v1055 = vadd.f32 %v1032, %v1044
        %v1056 = vadd.f32 %v1033, %v1044
        %v1057 = vadd.f32 %v1034, %v1044
        %v1058 = vadd.f32 %v1035, %v1044
        %v1059 = vadd.f32 %v1036, %v1044
        %v1060 = vadd.f32 %v1037, %v1044
        %v1061 = vadd.f32 %v1038, %v1044
        %v1062 = vmax.f32 %v1046, 0.0
        %v1063 = vmax.f32 %v1047, 0.0
        %v1064 = vmax.f32 %v1048, 0.0
        %v1065 = vmax.f32 %v1049, 0.0
        %v1066 = vmax.f32 %v1050, 0.0
        %v1067 = vmax.f32 %v1051, 0.0
        %v1068 = vmax.f32 %v1052, 0.0
        %v1069 = vmax.f32 %v1053, 0.0
        %v1070 = vmax.f32 %v1054, 0.0
        %v1071 = vmax.f32 %v1055, 0.0
        %v1072 = vmax.f32 %v1056, 0.0
        %v1073 = vmax.f32 %v1057, 0.0
        %v1074 = vmax.f32 %v1058, 0.0
        %v1075 = vmax.f32 %v1059, 0.0
        %v1076 = vmax.f32 %v1060, 0.0
        %v1077 = vmax.f32 %v1061, 0.0
        %v1078 = vmul.f32 %v819, %v1005
        %v1079 = vmul.f32 %v824, %v1005
        %v1080 = vmul.f32 %v829, %v1005
        %v1081 = vmul.f32 %v834, %v1005
        %v1082 = vmul.f32 %v839, %v1005
        %v1083 = vmul.f32 %v844, %v1005
        %v1084 = vmul.f32 %v849, %v1005
        %v1085 = vmul.f32 %v854, %v1005
        %v1086 = vmul.f32 %v859, %v1005
        %v1087 = vmul.f32 %v864, %v1005
        %v1088 = vmul.f32 %v869, %v1005
        %v1089 = vmul.f32 %v874, %v1005
        %v1090 = vmul.f32 %v879, %v1005
        %v1091 = vmul.f32 %v884, %v1005
        %v1092 = vmul.f32 %v889, %v1005
        %v1093 = vmul.f32 %v894, %v1005
        %v1094 = vmul.f32 %v899, %v983
        %v1095 = vmul.f32 %v904, %v983
        %v1096 = vmul.f32 %v909, %v983
        %v1097 = vmul.f32 %v914, %v983
        %v1098 = vmul.f32 %v919, %v983
        %v1099 = vmul.f32 %v924, %v983
        %v1100 = vmul.f32 %v929, %v983
        %v1101 = vmul.f32 %v934, %v983
        %v1102 = vmul.f32 %v939, %v983
        %v1103 = vmul.f32 %v944, %v983
        %v1104 = vmul.f32 %v949, %v983
        %v1105 = vmul.f32 %v954, %v983
        %v1106 = vmul.f32 %v959, %v983
        %v1107 = vmul.f32 %v964, %v983
        %v1108 = vmul.f32 %v969, %v983
        %v1109 = vmul.f32 %v974, %v983
        %v1110 = vsub.f32 %v1078, %v1094
        %v1111 = vsub.f32 %v1079, %v1095
        %v1112 = vsub.f32 %v1080, %v1096
        %v1113 = vsub.f32 %v1081, %v1097
        %v1114 = vsub.f32 %v1082, %v1098
        %v1115 = vsub.f32 %v1083, %v1099
        %v1116 = vsub.f32 %v1084, %v1100
        %v1117 = vsub.f32 %v1085, %v1101
        %v1118 = vsub.f32 %v1086, %v1102
        %v1119 = vsub.f32 %v1087, %v1103
        %v1120 = vsub.f32 %v1088, %v1104
        %v1121 = vsub.f32 %v1089, %v1105
        %v1122 = vsub.f32 %v1090, %v1106
        %v1123 = vsub.f32 %v1091, %v1107
        %v1124 = vsub.f32 %v1092, %v1108
        %v1125 = vsub.f32 %v1093, %v1109
        %v1126 = vld [vmem:[%s518] sm:$0x1]
        %v1128 = vlaneseq
        %v1129 = vshrl.u32 %v1128, 7
        %v1130 = vsub.s32 0, %v1129
        %v1131 = vrot.slane %v1126, %v1130
        %v1133 = vadd.f32 %v1110, %v1131
        %v1134 = vadd.f32 %v1111, %v1131
        %v1135 = vadd.f32 %v1112, %v1131
        %v1136 = vadd.f32 %v1113, %v1131
        %v1137 = vadd.f32 %v1114, %v1131
        %v1138 = vadd.f32 %v1115, %v1131
        %v1139 = vadd.f32 %v1116, %v1131
        %v1140 = vadd.f32 %v1117, %v1131
        %v1141 = vadd.f32 %v1118, %v1131
        %v1142 = vadd.f32 %v1119, %v1131
        %v1143 = vadd.f32 %v1120, %v1131
        %v1144 = vadd.f32 %v1121, %v1131
        %v1145 = vadd.f32 %v1122, %v1131
        %v1146 = vadd.f32 %v1123, %v1131
        %v1147 = vadd.f32 %v1124, %v1131
        %v1148 = vadd.f32 %v1125, %v1131
        %v1149 = vmax.f32 %v1133, 0.0
        %v1150 = vmax.f32 %v1134, 0.0
        %v1151 = vmax.f32 %v1135, 0.0
        %v1152 = vmax.f32 %v1136, 0.0
        %v1153 = vmax.f32 %v1137, 0.0
        %v1154 = vmax.f32 %v1138, 0.0
        %v1155 = vmax.f32 %v1139, 0.0
        %v1156 = vmax.f32 %v1140, 0.0
        %v1157 = vmax.f32 %v1141, 0.0
        %v1158 = vmax.f32 %v1142, 0.0
        %v1159 = vmax.f32 %v1143, 0.0
        %v1160 = vmax.f32 %v1144, 0.0
        %v1161 = vmax.f32 %v1145, 0.0
        %v1162 = vmax.f32 %v1146, 0.0
        %v1163 = vmax.f32 %v1147, 0.0
        %v1164 = vmax.f32 %v1148, 0.0
        %v1165 = vld [vmem:[#allocation7] sm:$0xff]
        %v1166 = vld [vmem:[#allocation7 + $0x8] sm:$0xff]
        %v1167 = vld [vmem:[#allocation7 + $0x10] sm:$0xff]
        %v1168 = vld [vmem:[#allocation7 + $0x18] sm:$0xff]
        %v1169 = vld [vmem:[#allocation7 + $0x20] sm:$0xff]
        %v1170 = vld [vmem:[#allocation7 + $0x28] sm:$0xff]
        %v1171 = vld [vmem:[#allocation7 + $0x30] sm:$0xff]
        %v1172 = vld [vmem:[#allocation7 + $0x38] sm:$0xff]
        %v1173 = vld [vmem:[#allocation7 + $0x40] sm:$0xff]
        %v1174 = vld [vmem:[#allocation7 + $0x48] sm:$0xff]
        %v1175 = vld [vmem:[#allocation7 + $0x50] sm:$0xff]
        %v1176 = vld [vmem:[#allocation7 + $0x58] sm:$0xff]
        %v1177 = vld [vmem:[#allocation7 + $0x60] sm:$0xff]
        %v1178 = vld [vmem:[#allocation7 + $0x68] sm:$0xff]
        %v1179 = vld [vmem:[#allocation7 + $0x70] sm:$0xff]
        %v1180 = vld [vmem:[#allocation7 + $0x78] sm:$0xff]
        %1181 = vmatprep.subr.mxu0 0.0
        %1182 = vmatpush1.msra.mxu0 %v1077
        %1183 = vmatprep.subr.mxu0 0.0
        %1184 = vmatpush1.msra.mxu0 %v1076
        %1185 = vmatprep.subr.mxu0 0.0
        %1186 = vmatpush1.msra.mxu0 %v1075
        %1187 = vmatprep.subr.mxu0 0.0
        %1188 = vmatpush1.msra.mxu0 %v1074
        %1189 = vmatprep.subr.mxu0 0.0
        %1190 = vmatpush1.msra.mxu0 %v1073
        %1191 = vmatprep.subr.mxu0 0.0
        %1192 = vmatpush1.msra.mxu0 %v1072
        %1193 = vmatprep.subr.mxu0 0.0
        %1194 = vmatpush1.msra.mxu0 %v1071
        %1195 = vmatprep.subr.mxu0 0.0
        %1196 = vmatpush1.msra.mxu0 %v1070
        %1197 = vmatprep.subr.mxu0 0.0
        %1198 = vmatpush1.msra.mxu0 %v1069
        %1199 = vmatprep.subr.mxu0 0.0
        %1200 = vmatpush1.msra.mxu0 %v1068
        %1201 = vmatprep.subr.mxu0 0.0
        %1202 = vmatpush1.msra.mxu0 %v1067
        %1203 = vmatprep.subr.mxu0 0.0
        %1204 = vmatpush1.msra.mxu0 %v1066
        %1205 = vmatprep.subr.mxu0 0.0
        %1206 = vmatpush1.msra.mxu0 %v1065
        %1207 = vmatprep.subr.mxu0 0.0
        %1208 = vmatpush1.msra.mxu0 %v1064
        %1209 = vmatprep.subr.mxu0 0.0
        %1210 = vmatpush1.msra.mxu0 %v1063
        %1211 = vmatprep.subr.mxu0 0.0
        %1212 = vmatpush1.msra.mxu0 %v1062
        %1213 = vmatprep.subr.mxu0 0.0
        %1214 = vmatpush2.msra.mxu0 0.0
        %1215 = vmatprep.subr.mxu0 0.0
        %1216 = vmatpush2.msra.mxu0 0.0
        %1217 = vmatprep.subr.mxu0 0.0
        %1218 = vmatpush2.msra.mxu0 0.0
        %1219 = vmatprep.subr.mxu0 0.0
        %1220 = vmatpush2.msra.mxu0 0.0
        %1221 = vmatprep.subr.mxu0 0.0
        %1222 = vmatpush2.msra.mxu0 0.0
        %1223 = vmatprep.subr.mxu0 0.0
        %1224 = vmatpush2.msra.mxu0 0.0
        %1225 = vmatprep.subr.mxu0 0.0
        %1226 = vmatpush2.msra.mxu0 0.0
        %1227 = vmatprep.subr.mxu0 0.0
        %1228 = vmatpush2.msra.mxu0 0.0
        %1229 = vmatprep.subr.mxu0 0.0
        %1230 = vmatpush2.msra.mxu0 0.0
        %1231 = vmatprep.subr.mxu0 0.0
        %1232 = vmatpush2.msra.mxu0 0.0
        %1233 = vmatprep.subr.mxu0 0.0
        %1234 = vmatpush2.msra.mxu0 0.0
        %1235 = vmatprep.subr.mxu0 0.0
        %1236 = vmatpush2.msra.mxu0 0.0
        %1237 = vmatprep.subr.mxu0 0.0
        %1238 = vmatpush2.msra.mxu0 0.0
        %1239 = vmatprep.subr.mxu0 0.0
        %1240 = vmatpush2.msra.mxu0 0.0
        %1241 = vmatprep.subr.mxu0 0.0
        %1242 = vmatpush2.msra.mxu0 0.0
        %1243 = vmatprep.subr.mxu0 0.0
        %1244 = vmatpush2.msra.mxu0 0.0
        %1245 = vmatprep.mubr.f32.mxu0 0.0
        %1246 = vmatmul.mubr.f32.gmra.mxu0 %v1165
        %v1247 = vpop.f32.mrf.mxu0
        %v1248 = vadd.f32 0.0, %v1247
        %v1249 = vpop.f32.mrf.mxu0
        %1250 = vmatprep.mubr.f32.mxu0 0.0
        %1251 = vmatmul.mubr.f32.gmra.mxu0 %v1166
        %v1252 = vpop.f32.mrf.mxu0
        %v1253 = vadd.f32 0.0, %v1252
        %v1254 = vpop.f32.mrf.mxu0
        %1255 = vmatprep.mubr.f32.mxu0 0.0
        %1256 = vmatmul.mubr.f32.gmra.mxu0 %v1167
        %v1257 = vpop.f32.mrf.mxu0
        %v1258 = vadd.f32 0.0, %v1257
        %v1259 = vpop.f32.mrf.mxu0
        %1260 = vmatprep.mubr.f32.mxu0 0.0
        %1261 = vmatmul.mubr.f32.gmra.mxu0 %v1168
        %v1262 = vpop.f32.mrf.mxu0
        %v1263 = vadd.f32 0.0, %v1262
        %v1264 = vpop.f32.mrf.mxu0
        %1265 = vmatprep.mubr.f32.mxu0 0.0
        %1266 = vmatmul.mubr.f32.gmra.mxu0 %v1169
        %v1267 = vpop.f32.mrf.mxu0
        %v1268 = vadd.f32 0.0, %v1267
        %v1269 = vpop.f32.mrf.mxu0
        %1270 = vmatprep.mubr.f32.mxu0 0.0
        %1271 = vmatmul.mubr.f32.gmra.mxu0 %v1170
        %v1272 = vpop.f32.mrf.mxu0
        %v1273 = vadd.f32 0.0, %v1272
        %v1274 = vpop.f32.mrf.mxu0
        %1275 = vmatprep.mubr.f32.mxu0 0.0
        %1276 = vmatmul.mubr.f32.gmra.mxu0 %v1171
        %v1277 = vpop.f32.mrf.mxu0
        %v1278 = vadd.f32 0.0, %v1277
        %v1279 = vpop.f32.mrf.mxu0
        %1280 = vmatprep.mubr.f32.mxu0 0.0
        %1281 = vmatmul.mubr.f32.gmra.mxu0 %v1172
        %v1282 = vpop.f32.mrf.mxu0
        %v1283 = vadd.f32 0.0, %v1282
        %v1284 = vpop.f32.mrf.mxu0
        %1285 = vmatprep.mubr.f32.mxu0 0.0
        %1286 = vmatmul.mubr.f32.gmra.mxu0 %v1173
        %v1287 = vpop.f32.mrf.mxu0
        %v1288 = vadd.f32 0.0, %v1287
        %v1289 = vpop.f32.mrf.mxu0
        %1290 = vmatprep.mubr.f32.mxu0 0.0
        %1291 = vmatmul.mubr.f32.gmra.mxu0 %v1174
        %v1292 = vpop.f32.mrf.mxu0
        %v1293 = vadd.f32 0.0, %v1292
        %v1294 = vpop.f32.mrf.mxu0
        %1295 = vmatprep.mubr.f32.mxu0 0.0
        %1296 = vmatmul.mubr.f32.gmra.mxu0 %v1175
        %v1297 = vpop.f32.mrf.mxu0
        %v1298 = vadd.f32 0.0, %v1297
        %v1299 = vpop.f32.mrf.mxu0
        %1300 = vmatprep.mubr.f32.mxu0 0.0
        %1301 = vmatmul.mubr.f32.gmra.mxu0 %v1176
        %v1302 = vpop.f32.mrf.mxu0
        %v1303 = vadd.f32 0.0, %v1302
        %v1304 = vpop.f32.mrf.mxu0
        %1305 = vmatprep.mubr.f32.mxu0 0.0
        %1306 = vmatmul.mubr.f32.gmra.mxu0 %v1177
        %v1307 = vpop.f32.mrf.mxu0
        %v1308 = vadd.f32 0.0, %v1307
        %v1309 = vpop.f32.mrf.mxu0
        %1310 = vmatprep.mubr.f32.mxu0 0.0
        %1311 = vmatmul.mubr.f32.gmra.mxu0 %v1178
        %v1312 = vpop.f32.mrf.mxu0
        %v1313 = vadd.f32 0.0, %v1312
        %v1314 = vpop.f32.mrf.mxu0
        %1315 = vmatprep.mubr.f32.mxu0 0.0
        %1316 = vmatmul.mubr.f32.gmra.mxu0 %v1179
        %v1317 = vpop.f32.mrf.mxu0
        %v1318 = vadd.f32 0.0, %v1317
        %v1319 = vpop.f32.mrf.mxu0
        %1320 = vmatprep.mubr.f32.mxu0 0.0
        %1321 = vmatmul.mubr.f32.gmra.mxu0 %v1180
        %v1322 = vpop.f32.mrf.mxu0
        %v1323 = vadd.f32 0.0, %v1322
        %v1324 = vpop.f32.mrf.mxu0
        %1325 = vdwg.mxu0
        %1326 = vmatprep.subr.mxu0 0.0
        %1327 = vmatpush1.msra.mxu0 %v1164
        %1328 = vmatprep.subr.mxu0 0.0
        %1329 = vmatpush1.msra.mxu0 %v1163
        %1330 = vmatprep.subr.mxu0 0.0
        %1331 = vmatpush1.msra.mxu0 %v1162
        %1332 = vmatprep.subr.mxu0 0.0
        %1333 = vmatpush1.msra.mxu0 %v1161
        %1334 = vmatprep.subr.mxu0 0.0
        %1335 = vmatpush1.msra.mxu0 %v1160
        %1336 = vmatprep.subr.mxu0 0.0
        %1337 = vmatpush1.msra.mxu0 %v1159
        %1338 = vmatprep.subr.mxu0 0.0
        %1339 = vmatpush1.msra.mxu0 %v1158
        %1340 = vmatprep.subr.mxu0 0.0
        %1341 = vmatpush1.msra.mxu0 %v1157
        %1342 = vmatprep.subr.mxu0 0.0
        %1343 = vmatpush1.msra.mxu0 %v1156
        %1344 = vmatprep.subr.mxu0 0.0
        %1345 = vmatpush1.msra.mxu0 %v1155
        %1346 = vmatprep.subr.mxu0 0.0
        %1347 = vmatpush1.msra.mxu0 %v1154
        %1348 = vmatprep.subr.mxu0 0.0
        %1349 = vmatpush1.msra.mxu0 %v1153
        %1350 = vmatprep.subr.mxu0 0.0
        %1351 = vmatpush1.msra.mxu0 %v1152
        %1352 = vmatprep.subr.mxu0 0.0
        %1353 = vmatpush1.msra.mxu0 %v1151
        %1354 = vmatprep.subr.mxu0 0.0
        %1355 = vmatpush1.msra.mxu0 %v1150
        %1356 = vmatprep.subr.mxu0 0.0
        %1357 = vmatpush1.msra.mxu0 %v1149
        %1358 = vmatprep.subr.mxu0 0.0
        %1359 = vmatpush2.msra.mxu0 0.0
        %1360 = vmatprep.subr.mxu0 0.0
        %1361 = vmatpush2.msra.mxu0 0.0
        %1362 = vmatprep.subr.mxu0 0.0
        %1363 = vmatpush2.msra.mxu0 0.0
        %1364 = vmatprep.subr.mxu0 0.0
        %1365 = vmatpush2.msra.mxu0 0.0
        %1366 = vmatprep.subr.mxu0 0.0
        %1367 = vmatpush2.msra.mxu0 0.0
        %1368 = vmatprep.subr.mxu0 0.0
        %1369 = vmatpush2.msra.mxu0 0.0
        %1370 = vmatprep.subr.mxu0 0.0
        %1371 = vmatpush2.msra.mxu0 0.0
        %1372 = vmatprep.subr.mxu0 0.0
        %1373 = vmatpush2.msra.mxu0 0.0
        %1374 = vmatprep.subr.mxu0 0.0
        %1375 = vmatpush2.msra.mxu0 0.0
        %1376 = vmatprep.subr.mxu0 0.0
        %1377 = vmatpush2.msra.mxu0 0.0
        %1378 = vmatprep.subr.mxu0 0.0
        %1379 = vmatpush2.msra.mxu0 0.0
        %1380 = vmatprep.subr.mxu0 0.0
        %1381 = vmatpush2.msra.mxu0 0.0
        %1382 = vmatprep.subr.mxu0 0.0
        %1383 = vmatpush2.msra.mxu0 0.0
        %1384 = vmatprep.subr.mxu0 0.0
        %1385 = vmatpush2.msra.mxu0 0.0
        %1386 = vmatprep.subr.mxu0 0.0
        %1387 = vmatpush2.msra.mxu0 0.0
        %1388 = vmatprep.subr.mxu0 0.0
        %1389 = vmatpush2.msra.mxu0 0.0
        %1390 = vmatprep.mubr.f32.mxu0 0.0
        %1391 = vmatmul.mubr.f32.gmra.mxu0 %v736
        %v1392 = vpop.f32.mrf.mxu0
        %v1393 = vadd.f32 0.0, %v1392
        %v1394 = vpop.f32.mrf.mxu0
        %1395 = vmatprep.mubr.f32.mxu0 0.0
        %1396 = vmatmul.mubr.f32.gmra.mxu0 %v737
        %v1397 = vpop.f32.mrf.mxu0
        %v1398 = vadd.f32 0.0, %v1397
        %v1399 = vpop.f32.mrf.mxu0
        %1400 = vmatprep.mubr.f32.mxu0 0.0
        %1401 = vmatmul.mubr.f32.gmra.mxu0 %v738
        %v1402 = vpop.f32.mrf.mxu0
        %v1403 = vadd.f32 0.0, %v1402
        %v1404 = vpop.f32.mrf.mxu0
        %1405 = vmatprep.mubr.f32.mxu0 0.0
        %1406 = vmatmul.mubr.f32.gmra.mxu0 %v739
        %v1407 = vpop.f32.mrf.mxu0
        %v1408 = vadd.f32 0.0, %v1407
        %v1409 = vpop.f32.mrf.mxu0
        %1410 = vmatprep.mubr.f32.mxu0 0.0
        %1411 = vmatmul.mubr.f32.gmra.mxu0 %v740
        %v1412 = vpop.f32.mrf.mxu0
        %v1413 = vadd.f32 0.0, %v1412
        %v1414 = vpop.f32.mrf.mxu0
        %1415 = vmatprep.mubr.f32.mxu0 0.0
        %1416 = vmatmul.mubr.f32.gmra.mxu0 %v741
        %v1417 = vpop.f32.mrf.mxu0
        %v1418 = vadd.f32 0.0, %v1417
        %v1419 = vpop.f32.mrf.mxu0
        %1420 = vmatprep.mubr.f32.mxu0 0.0
        %1421 = vmatmul.mubr.f32.gmra.mxu0 %v742
        %v1422 = vpop.f32.mrf.mxu0
        %v1423 = vadd.f32 0.0, %v1422
        %v1424 = vpop.f32.mrf.mxu0
        %1425 = vmatprep.mubr.f32.mxu0 0.0
        %1426 = vmatmul.mubr.f32.gmra.mxu0 %v743
        %v1427 = vpop.f32.mrf.mxu0
        %v1428 = vadd.f32 0.0, %v1427
        %v1429 = vpop.f32.mrf.mxu0
        %1430 = vmatprep.mubr.f32.mxu0 0.0
        %1431 = vmatmul.mubr.f32.gmra.mxu0 %v744
        %v1432 = vpop.f32.mrf.mxu0
        %v1433 = vadd.f32 0.0, %v1432
        %v1434 = vpop.f32.mrf.mxu0
        %1435 = vmatprep.mubr.f32.mxu0 0.0
        %1436 = vmatmul.mubr.f32.gmra.mxu0 %v745
        %v1437 = vpop.f32.mrf.mxu0
        %v1438 = vadd.f32 0.0, %v1437
        %v1439 = vpop.f32.mrf.mxu0
        %1440 = vmatprep.mubr.f32.mxu0 0.0
        %1441 = vmatmul.mubr.f32.gmra.mxu0 %v746
        %v1442 = vpop.f32.mrf.mxu0
        %v1443 = vadd.f32 0.0, %v1442
        %v1444 = vpop.f32.mrf.mxu0
        %1445 = vmatprep.mubr.f32.mxu0 0.0
        %1446 = vmatmul.mubr.f32.gmra.mxu0 %v747
        %v1447 = vpop.f32.mrf.mxu0
        %v1448 = vadd.f32 0.0, %v1447
        %v1449 = vpop.f32.mrf.mxu0
        %1450 = vmatprep.mubr.f32.mxu0 0.0
        %1451 = vmatmul.mubr.f32.gmra.mxu0 %v748
        %v1452 = vpop.f32.mrf.mxu0
        %v1453 = vadd.f32 0.0, %v1452
        %v1454 = vpop.f32.mrf.mxu0
        %1455 = vmatprep.mubr.f32.mxu0 0.0
        %1456 = vmatmul.mubr.f32.gmra.mxu0 %v749
        %v1457 = vpop.f32.mrf.mxu0
        %v1458 = vadd.f32 0.0, %v1457
        %v1459 = vpop.f32.mrf.mxu0
        %1460 = vmatprep.mubr.f32.mxu0 0.0
        %1461 = vmatmul.mubr.f32.gmra.mxu0 %v750
        %v1462 = vpop.f32.mrf.mxu0
        %v1463 = vadd.f32 0.0, %v1462
        %v1464 = vpop.f32.mrf.mxu0
        %1465 = vmatprep.mubr.f32.mxu0 0.0
        %1466 = vmatmul.mubr.f32.gmra.mxu0 %v751
        %v1467 = vpop.f32.mrf.mxu0
        %v1468 = vadd.f32 0.0, %v1467
        %v1469 = vpop.f32.mrf.mxu0
        %1470 = vdwg.mxu0
        %v1471 = vsub.f32 %v1248, %v1393
        %v1472 = vsub.f32 %v1253, %v1398
        %v1473 = vsub.f32 %v1258, %v1403
        %v1474 = vsub.f32 %v1263, %v1408
        %v1475 = vsub.f32 %v1268, %v1413
        %v1476 = vsub.f32 %v1273, %v1418
        %v1477 = vsub.f32 %v1278, %v1423
        %v1478 = vsub.f32 %v1283, %v1428
        %v1479 = vsub.f32 %v1288, %v1433
        %v1480 = vsub.f32 %v1293, %v1438
        %v1481 = vsub.f32 %v1298, %v1443
        %v1482 = vsub.f32 %v1303, %v1448
        %v1483 = vsub.f32 %v1308, %v1453
        %v1484 = vsub.f32 %v1313, %v1458
        %v1485 = vsub.f32 %v1318, %v1463
        %v1486 = vsub.f32 %v1323, %v1468
        %v1487 = vld [vmem:[#allocation8] sm:$0xff]
        %v1488 = vld [vmem:[#allocation8 + $0x8] sm:$0xff]
        %v1489 = vld [vmem:[#allocation8 + $0x10] sm:$0xff]
        %v1490 = vld [vmem:[#allocation8 + $0x18] sm:$0xff]
        %v1491 = vld [vmem:[#allocation8 + $0x20] sm:$0xff]
        %v1492 = vld [vmem:[#allocation8 + $0x28] sm:$0xff]
        %v1493 = vld [vmem:[#allocation8 + $0x30] sm:$0xff]
        %v1494 = vld [vmem:[#allocation8 + $0x38] sm:$0xff]
        %v1495 = vld [vmem:[#allocation8 + $0x40] sm:$0xff]
        %v1496 = vld [vmem:[#allocation8 + $0x48] sm:$0xff]
        %v1497 = vld [vmem:[#allocation8 + $0x50] sm:$0xff]
        %v1498 = vld [vmem:[#allocation8 + $0x58] sm:$0xff]
        %v1499 = vld [vmem:[#allocation8 + $0x60] sm:$0xff]
        %v1500 = vld [vmem:[#allocation8 + $0x68] sm:$0xff]
        %v1501 = vld [vmem:[#allocation8 + $0x70] sm:$0xff]
        %v1502 = vld [vmem:[#allocation8 + $0x78] sm:$0xff]
        %v1503 = vld [vmem:[%s9] sm:$0x1]
        %v1505 = vlaneseq
        %v1506 = vshrl.u32 %v1505, 7
        %v1507 = vsub.s32 0, %v1506
        %v1508 = vrot.slane %v1503, %v1507
        %1510 = vmatprep.subr.mxu0 0.0
        %1511 = vmatpush1.msra.mxu0 %v1502
        %1512 = vmatprep.subr.mxu0 0.0
        %1513 = vmatpush1.msra.mxu0 %v1501
        %1514 = vmatprep.subr.mxu0 0.0
        %1515 = vmatpush1.msra.mxu0 %v1500
        %1516 = vmatprep.subr.mxu0 0.0
        %1517 = vmatpush1.msra.mxu0 %v1499
        %1518 = vmatprep.subr.mxu0 0.0
        %1519 = vmatpush1.msra.mxu0 %v1498
        %1520 = vmatprep.subr.mxu0 0.0
        %1521 = vmatpush1.msra.mxu0 %v1497
        %1522 = vmatprep.subr.mxu0 0.0
        %1523 = vmatpush1.msra.mxu0 %v1496
        %1524 = vmatprep.subr.mxu0 0.0
        %1525 = vmatpush1.msra.mxu0 %v1495
        %1526 = vmatprep.subr.mxu0 0.0
        %1527 = vmatpush1.msra.mxu0 %v1494
        %1528 = vmatprep.subr.mxu0 0.0
        %1529 = vmatpush1.msra.mxu0 %v1493
        %1530 = vmatprep.subr.mxu0 0.0
        %1531 = vmatpush1.msra.mxu0 %v1492
        %1532 = vmatprep.subr.mxu0 0.0
        %1533 = vmatpush1.msra.mxu0 %v1491
        %1534 = vmatprep.subr.mxu0 0.0
        %1535 = vmatpush1.msra.mxu0 %v1490
        %1536 = vmatprep.subr.mxu0 0.0
        %1537 = vmatpush1.msra.mxu0 %v1489
        %1538 = vmatprep.subr.mxu0 0.0
        %1539 = vmatpush1.msra.mxu0 %v1488
        %1540 = vmatprep.subr.mxu0 0.0
        %1541 = vmatpush1.msra.mxu0 %v1487
        %1542 = vmatprep.subr.mxu0 0.0
        %1543 = vmatpush2.msra.mxu0 0.0
        %1544 = vmatprep.subr.mxu0 0.0
        %1545 = vmatpush2.msra.mxu0 0.0
        %1546 = vmatprep.subr.mxu0 0.0
        %1547 = vmatpush2.msra.mxu0 0.0
        %1548 = vmatprep.subr.mxu0 0.0
        %1549 = vmatpush2.msra.mxu0 0.0
        %1550 = vmatprep.subr.mxu0 0.0
        %1551 = vmatpush2.msra.mxu0 0.0
        %1552 = vmatprep.subr.mxu0 0.0
        %1553 = vmatpush2.msra.mxu0 0.0
        %1554 = vmatprep.subr.mxu0 0.0
        %1555 = vmatpush2.msra.mxu0 0.0
        %1556 = vmatprep.subr.mxu0 0.0
        %1557 = vmatpush2.msra.mxu0 0.0
        %1558 = vmatprep.subr.mxu0 0.0
        %1559 = vmatpush2.msra.mxu0 0.0
        %1560 = vmatprep.subr.mxu0 0.0
        %1561 = vmatpush2.msra.mxu0 0.0
        %1562 = vmatprep.subr.mxu0 0.0
        %1563 = vmatpush2.msra.mxu0 0.0
        %1564 = vmatprep.subr.mxu0 0.0
        %1565 = vmatpush2.msra.mxu0 0.0
        %1566 = vmatprep.subr.mxu0 0.0
        %1567 = vmatpush2.msra.mxu0 0.0
        %1568 = vmatprep.subr.mxu0 0.0
        %1569 = vmatpush2.msra.mxu0 0.0
        %1570 = vmatprep.subr.mxu0 0.0
        %1571 = vmatpush2.msra.mxu0 0.0
        %1572 = vmatprep.subr.mxu0 0.0
        %1573 = vmatpush2.msra.mxu0 0.0
        %1574 = vmatprep.mubr.f32.mxu0 0.0
        %1575 = vmatmul.mubr.f32.gmra.mxu0 %v1471
        %v1576 = vpop.f32.mrf.mxu0
        %v1577 = vadd.f32 %v1508, %v1576
        %v1578 = vpop.f32.mrf.mxu0
        %1579 = vmatprep.mubr.f32.mxu0 0.0
        %1580 = vmatmul.mubr.f32.gmra.mxu0 %v1472
        %v1581 = vpop.f32.mrf.mxu0
        %v1582 = vadd.f32 %v1508, %v1581
        %v1583 = vpop.f32.mrf.mxu0
        %1584 = vmatprep.mubr.f32.mxu0 0.0
        %1585 = vmatmul.mubr.f32.gmra.mxu0 %v1473
        %v1586 = vpop.f32.mrf.mxu0
        %v1587 = vadd.f32 %v1508, %v1586
        %v1588 = vpop.f32.mrf.mxu0
        %1589 = vmatprep.mubr.f32.mxu0 0.0
        %1590 = vmatmul.mubr.f32.gmra.mxu0 %v1474
        %v1591 = vpop.f32.mrf.mxu0
        %v1592 = vadd.f32 %v1508, %v1591
        %v1593 = vpop.f32.mrf.mxu0
        %1594 = vmatprep.mubr.f32.mxu0 0.0
        %1595 = vmatmul.mubr.f32.gmra.mxu0 %v1475
        %v1596 = vpop.f32.mrf.mxu0
        %v1597 = vadd.f32 %v1508, %v1596
        %v1598 = vpop.f32.mrf.mxu0
        %1599 = vmatprep.mubr.f32.mxu0 0.0
        %1600 = vmatmul.mubr.f32.gmra.mxu0 %v1476
        %v1601 = vpop.f32.mrf.mxu0
        %v1602 = vadd.f32 %v1508, %v1601
        %v1603 = vpop.f32.mrf.mxu0
        %1604 = vmatprep.mubr.f32.mxu0 0.0
        %1605 = vmatmul.mubr.f32.gmra.mxu0 %v1477
        %v1606 = vpop.f32.mrf.mxu0
        %v1607 = vadd.f32 %v1508, %v1606
        %v1608 = vpop.f32.mrf.mxu0
        %1609 = vmatprep.mubr.f32.mxu0 0.0
        %1610 = vmatmul.mubr.f32.gmra.mxu0 %v1478
        %v1611 = vpop.f32.mrf.mxu0
        %v1612 = vadd.f32 %v1508, %v1611
        %v1613 = vpop.f32.mrf.mxu0
        %1614 = vmatprep.mubr.f32.mxu0 0.0
        %1615 = vmatmul.mubr.f32.gmra.mxu0 %v1479
        %v1616 = vpop.f32.mrf.mxu0
        %v1617 = vadd.f32 %v1508, %v1616
        %v1618 = vpop.f32.mrf.mxu0
        %1619 = vmatprep.mubr.f32.mxu0 0.0
        %1620 = vmatmul.mubr.f32.gmra.mxu0 %v1480
        %v1621 = vpop.f32.mrf.mxu0
        %v1622 = vadd.f32 %v1508, %v1621
        %v1623 = vpop.f32.mrf.mxu0
        %1624 = vmatprep.mubr.f32.mxu0 0.0
        %1625 = vmatmul.mubr.f32.gmra.mxu0 %v1481
        %v1626 = vpop.f32.mrf.mxu0
        %v1627 = vadd.f32 %v1508, %v1626
        %v1628 = vpop.f32.mrf.mxu0
        %1629 = vmatprep.mubr.f32.mxu0 0.0
        %1630 = vmatmul.mubr.f32.gmra.mxu0 %v1482
        %v1631 = vpop.f32.mrf.mxu0
        %v1632 = vadd.f32 %v1508, %v1631
        %v1633 = vpop.f32.mrf.mxu0
        %1634 = vmatprep.mubr.f32.mxu0 0.0
        %1635 = vmatmul.mubr.f32.gmra.mxu0 %v1483
        %v1636 = vpop.f32.mrf.mxu0
        %v1637 = vadd.f32 %v1508, %v1636
        %v1638 = vpop.f32.mrf.mxu0
        %1639 = vmatprep.mubr.f32.mxu0 0.0
        %1640 = vmatmul.mubr.f32.gmra.mxu0 %v1484
        %v1641 = vpop.f32.mrf.mxu0
        %v1642 = vadd.f32 %v1508, %v1641
        %v1643 = vpop.f32.mrf.mxu0
        %1644 = vmatprep.mubr.f32.mxu0 0.0
        %1645 = vmatmul.mubr.f32.gmra.mxu0 %v1485
        %v1646 = vpop.f32.mrf.mxu0
        %v1647 = vadd.f32 %v1508, %v1646
        %v1648 = vpop.f32.mrf.mxu0
        %1649 = vmatprep.mubr.f32.mxu0 0.0
        %1650 = vmatmul.mubr.f32.gmra.mxu0 %v1486
        %v1651 = vpop.f32.mrf.mxu0
        %v1652 = vadd.f32 %v1508, %v1651
        %v1653 = vpop.f32.mrf.mxu0
        %1654 = vdwg.mxu0
        %1655 = vst [vmem:[%s503] sm:$0xff] %v1577
        %1656 = vst [vmem:[%s503 + $0x8] sm:$0xff] %v1582
        %1657 = vst [vmem:[%s503 + $0x10] sm:$0xff] %v1587
        %1658 = vst [vmem:[%s503 + $0x18] sm:$0xff] %v1592
        %1659 = vst [vmem:[%s503 + $0x20] sm:$0xff] %v1597
        %1660 = vst [vmem:[%s503 + $0x28] sm:$0xff] %v1602
        %1661 = vst [vmem:[%s503 + $0x30] sm:$0xff] %v1607
        %1662 = vst [vmem:[%s503 + $0x38] sm:$0xff] %v1612
        %1663 = vst [vmem:[%s503 + $0x40] sm:$0xff] %v1617
        %1664 = vst [vmem:[%s503 + $0x48] sm:$0xff] %v1622
        %1665 = vst [vmem:[%s503 + $0x50] sm:$0xff] %v1627
        %1666 = vst [vmem:[%s503 + $0x58] sm:$0xff] %v1632
        %1667 = vst [vmem:[%s503 + $0x60] sm:$0xff] %v1637
        %1668 = vst [vmem:[%s503 + $0x68] sm:$0xff] %v1642
        %1669 = vst [vmem:[%s503 + $0x70] sm:$0xff] %v1647
        %1670 = vst [vmem:[%s503 + $0x78] sm:$0xff] %v1652
        %s1671 = sand.u32 %s299, 1
        %s1672 = scalar_lea.sflag [#allocation4], %s1671
        %s1673 = sand.u32 %s299, 1
        %s1674 = smul.addr %s1673, 128
        %s1675 = scalar_lea.vmem [#allocation10], %s1674
        // Predicated region
        $region77: #{tpu_custom_call.1} parent=59 // pred_check
          %p1676 = pneg %p309
        $region78: #{tpu_custom_call.1} parent=59 // pred_check_branch
          %1678 = sbr.rel (%p1676) target = $region80
        $region79: #{tpu_custom_call.1} parent=59 // pred_region
          %s1680 = ssub.s32 2048, 2048
          %1681 = vsyncadd %s1672, %s1680
          %s1682 = smul.addr %s33, 16
          %s1683 = smul.addr %s1682, 128
          %s1684 = scalar_lea.hbm %s10, %s1683
          %s1685 = sshll.u32 %s1675, 4
          %s1686 = int_to_ptr.vmem [resolvable:$true] %s1685
          %1691 = dma.vmem_to_hbm [thread:$0]  %s1686, 2048, %s1684, %s1672, 128, 128, 8
        $region80: #{tpu_custom_call.1} parent=59 // pred_fallthru
          _
      $region60: #{tpu_custom_call.1} parent=5 // pred_fallthru
        _
      %p1692 = scmp.le.s32.totalorder 2, %s24
      // Predicated region
      $region81: #{tpu_custom_call.1} parent=5 // pred_check
        %p1693 = pneg %p1692
      $region82: #{tpu_custom_call.1} parent=5 // pred_check_branch
        %1695 = sbr.rel (%p1693) target = $region84
      $region83: #{tpu_custom_call.1} parent=5 // pred_region
        %s1696 = ssub.s32 %s24, 2
        // Predicated region
        $region85: #{tpu_custom_call.1} parent=83 // pred_check
          %p1697 = pneg %p315
        $region86: #{tpu_custom_call.1} parent=83 // pred_check_branch
          %1699 = sbr.rel (%p1697) target = $region88
        $region87: #{tpu_custom_call.1} parent=83 // pred_region
          %s1700 = sand.u32 %s300, 1
          %s1701 = scalar_lea.sflag [#allocation4], %s1700
          %s1702 = sand.u32 %s300, 1
          %s1703 = smul.addr %s1702, 128
          %s1704 = scalar_lea.vmem [#allocation10], %s1703
          %1705 = dma.done %s1701, 2048
        $region88: #{tpu_custom_call.1} parent=83 // pred_fallthru
          _
      $region84: #{tpu_custom_call.1} parent=5 // pred_fallthru
        _
    $region6: #{tpu_custom_call.1} parent=1 // loop_footer
      %s28 = sadd.s32 1, %s24
    $region7: #{tpu_custom_call.1} parent=1 // loop_footer_branch
      %23 = sbr.rel target = $region3
    $region8: #{tpu_custom_call.1} parent=1 // loop_exit
      _
    %1706 = vsyncpa [#allocation3], 1
    %s1707 = scalar_lea.sflag [#allocation3], 1
    %1708 = vsyncpa %s1707, 1
    %1709 = vsyncpa [#allocation6], 1
    %1710 = vsyncpa [#allocation9], 1
    %1711 = vsyncpa [#allocation4], 1
    %s1712 = scalar_lea.sflag [#allocation4], 1
    %1713 = vsyncpa %s1712, 1

</llo_original>
